<compile_context>
chip_gen: v7x
topology: tpu7x:2x2x1
jax: 0.10.0
libtpu: 0.0.40
codegen_flags: <defaults>
</compile_context>

<pallas_src>
import numpy as np
import jax
import jax.numpy as jnp
from jax import lax
from jax.experimental import pallas as pl
from jax.experimental.pallas import tpu as pltpu

# ----------------------------- model hyper-parameters -----------------------------
B         = 2      # batch
IN_CHAN   = 4      # EEG channels (conv1 kernel height)
DS        = 2      # downsample rate (AvgPool2d (1, DS))
BLOCKS    = 2      # number of SPD blocks (E2R epochs)
NUM_CLASS = 4
T         = 32     # raw time length

# fixed by the module definition
C1     = 22                      # conv1 output channels (s_chan)
C2     = 20                      # conv2 output channels (t_chan) == SPD size
D_OUT  = C2                      # AttentionManifold(t_chan, t_chan)
K2     = 12                      # conv2 temporal kernel
PAD    = 6                       # conv2 temporal padding
BN_EPS = 1e-5

T_POOL = T // DS                      # 16
T_OUT  = T_POOL + 2 * PAD - K2 + 1    # 17
DD     = D_OUT * D_OUT                # 400
TRIU_N = D_OUT * (D_OUT + 1) // 2     # 210

NBLK      = B * BLOCKS                # 4 (batch, block) covariance problems
ROWS      = B * T_OUT                 # 34 time rows for the whole batch
LANES_G   = NBLK * 3 * D_OUT          # 240 payload lanes of the QKV-Gram output
OUT_LANES = 256                       # padded to a lane-aligned store width
CW        = 256                       # constant-slab width


def patch_len(n, epochs):
    base = n // epochs
    lens = [base] * epochs
    for i in range(n - base * epochs):
        lens[i] += 1
    assert sum(lens) == n
    return lens


PATCH_LENS = tuple(patch_len(T_OUT, BLOCKS))   # (9, 8)


# --------------------- constant-slab row layout (8-row aligned) ---------------------
def _align8(n):
    return ((n + 7) // 8) * 8


R_WC   = 0                                   # (K2*Cin, C2)  combined conv weight
R_BT   = R_WC   + _align8(K2 * IN_CHAN)      # (ROWS, C2)    position-dependent bias (tiled over batch)
R_MC   = R_BT   + _align8(ROWS)              # (ROWS, ROWS)  block-diag centering matrix
R_MASK = R_MC   + _align8(ROWS)              # (ROWS, NBLK*C2) block membership mask
R_BLK  = R_MASK + _align8(ROWS)              # (NBLK*C2, NBLK*C2) ones on diagonal 20x20 blocks
R_EYE  = R_BLK  + _align8(NBLK * C2)         # (C2, NBLK*C2) [I|I|I|I]
R_WCAT = R_EYE  + _align8(C2)                # (C2, 3*D)     [Wq|Wk|Wv]
R_WBD  = R_WCAT + _align8(C2)                # (NBLK*C2, OUT_LANES) block_diag(Wcat x4), zero-padded
SLAB_ROWS = R_WBD + _align8(NBLK * C2)       # 376


# =============================== Pallas kernel ======================================

def frontend_kernel(xcol_ref, c_ref, o_ref):
    """Fused front end for the WHOLE batch in one grid step.

    xcol_ref : (ROWS, K2*Cin)   im2col of the pooled input, rows = b*T_OUT + t
    c_ref    : (SLAB_ROWS, CW)  packed invariant constants (see row layout above)
    o_ref    : (3*D, OUT_LANES) Gram slab; lane block idx*3D..(idx+1)*3D holds
                                G_idx = Wcat^T cov_idx Wcat, whose diagonal (D,D)
                                blocks are Q_idx, K_idx, V_idx.
    """
    wc    = c_ref[R_WC:R_WC + K2 * IN_CHAN, 0:C2]            # (48, 20)
    bterm = c_ref[R_BT:R_BT + ROWS, 0:C2]                    # (34, 20)
    mc    = c_ref[R_MC:R_MC + ROWS, 0:ROWS]                  # (34, 34)
    msk   = c_ref[R_MASK:R_MASK + ROWS, 0:NBLK * C2]         # (34, 80)
    blk1  = c_ref[R_BLK:R_BLK + NBLK * C2, 0:NBLK * C2]      # (80, 80)
    eyeL  = c_ref[R_EYE:R_EYE + C2, 0:NBLK * C2]             # (20, 80)
    wcat  = c_ref[R_WCAT:R_WCAT + C2, 0:3 * D_OUT]           # (20, 60)
    wbd   = c_ref[R_WBD:R_WBD + NBLK * C2, 0:OUT_LANES]      # (80, 256)

    # conv1+BN1+conv2+BN2 for the whole batch as one im2col matmul (exact folding)
    feats = jnp.dot(xcol_ref[...], wc,
                    preferred_element_type=jnp.float32) + bterm          # (34, 20)

    # per-(batch,block) mean removal via the constant block-diag centering matrix
    xc = jnp.dot(mc, feats, preferred_element_type=jnp.float32)          # (34, 20)

    # Z: lane block idx holds the centered rows of block idx, zeros elsewhere
    z = msk * jnp.concatenate([xc] * NBLK, axis=1)                       # (34, 80)

    # ALL 4 covariances in one push: covs[:, idx*20:(idx+1)*20] = Xc_idx^T Xc_idx
    covs = lax.dot_general(xc, z, (((0,), (0,)), ((), ())),
                           preferred_element_type=jnp.float32)           # (20, 80)

    # trace per block = ||Xc_idx||_F^2, broadcast to its 20 lanes (1/(L-1) cancels)
    tra = jnp.dot(jnp.sum(z * z, axis=0, keepdims=True), blk1,
                  preferred_element_type=jnp.float32)                    # (1, 80)
    covs_n = covs / tra + 1e-5 * eyeL                                    # (20, 80)

    # Q/K/V for all blocks via the Gram form: G_idx = Wcat^T cov_idx Wcat
    yt = lax.dot_general(wcat, covs_n, (((0,), (0,)), ((), ())),
                         preferred_element_type=jnp.float32)             # (60, 80)
    o_ref[...] = jnp.dot(yt, wbd, preferred_element_type=jnp.float32)    # (60, 256)


def frontend(xcol_flat, cslab):
    return pl.pallas_call(
        frontend_kernel,
        out_shape=jax.ShapeDtypeStruct((3 * D_OUT, OUT_LANES), jnp.float32),
        grid=(1,),
        in_specs=[
            pl.BlockSpec((ROWS, K2 * IN_CHAN), lambda i: (0, 0)),
            pl.BlockSpec((SLAB_ROWS, CW), lambda i: (0, 0)),
        ],
        out_specs=pl.BlockSpec((3 * D_OUT, OUT_LANES), lambda i: (0, 0)),
        compiler_params=pltpu.CompilerParams(dimension_semantics=("arbitrary",)),
    )(xcol_flat, cslab)


# =============================== plain-JAX glue =====================================
# TODO(synk): symmetric eigendecomposition (torch.svd / torch.linalg.eigh used by
# tensor_log / tensor_exp / SPDRectified / SPDTangentSpace) has no Pallas TPU
# primitive; these spectral maps are computed with jnp.linalg.eigh in plain JAX.

def _sym_rebuild(U, w):
    return jnp.einsum('...ij,...j,...kj->...ik', U, w, U)


def sym_log(M):
    w, U = jnp.linalg.eigh(M)
    return _sym_rebuild(U, jnp.log(w))


def sym_exp(M):
    w, U = jnp.linalg.eigh(M)
    return _sym_rebuild(U, jnp.exp(w))


def sym_rectify(M, eps=1e-4):
    w, U = jnp.linalg.eigh(M)
    return _sym_rebuild(U, jnp.maximum(w, eps))


def _matt_forward(x_nchw, p):
    bsz = x_nchw.shape[0]
    assert bsz == B, "constant slab is built for the static batch size B"
    t_pool = x_nchw.shape[-1] // DS

    # AvgPool2d((1, DS)) + channels-last / time-major layout (glue)
    xp = x_nchw[:, 0, :, : t_pool * DS].astype(jnp.float32)              # (B, Cin, T')
    xp = xp.reshape(bsz, IN_CHAN, t_pool, DS).mean(axis=-1)              # (B, Cin, T_pool)
    xp = jnp.transpose(xp, (0, 2, 1))                                    # (B, T_pool, Cin)

    # im2col of the pooled input (layout plumbing; zero time-padding as in conv2)
    xpad = jnp.pad(xp, ((0, 0), (PAD, PAD), (0, 0)))
    xcol = jnp.concatenate([xpad[:, k:k + T_OUT, :] for k in range(K2)],
                           axis=-1)                                      # (B, T_OUT, K2*Cin)
    xcol = xcol.reshape(bsz * T_OUT, K2 * IN_CHAN)                       # (34, 48)

    # fused Pallas kernel: conv block -> E2R covariances -> BiMap Q/K/V (Gram slab)
    gt = frontend(xcol, p['cslab'])                                      # (60, 256)
    g = gt[:, :LANES_G].reshape(3, D_OUT, NBLK, 3, D_OUT)                # rows=(h,d1), cols=(idx,h',d2)

    def take(h):
        return jnp.transpose(g[h, :, :, h, :], (1, 0, 2)).reshape(
            bsz, BLOCKS, D_OUT, D_OUT)

    Q, Km, V = take(0), take(1), take(2)                                 # (B, m, D, D)

    logQ = sym_log(Q).reshape(bsz, BLOCKS, DD)
    logK = sym_log(Km).reshape(bsz, BLOCKS, DD)
    logV = sym_log(V).reshape(bsz, BLOCKS, DD)

    # log-Euclidean attention in XLA (per perf review: a (2,2) softmax + (2,400)
    # contraction fuses with the surrounding eigh work; a pallas_call would cost
    # more in launch + HBM round trips than the math itself)
    diff = logQ[:, None, :, :] - logK[:, :, None, :]                     # (B, i, j, DD)
    energy = jnp.sum(diff * diff, axis=-1)                               # (B, i, j)
    scores = 1.0 / (1.0 + jnp.log1p(energy))
    prob = jax.nn.softmax(scores, axis=1)                                # softmax over keys i
    out_log = jnp.einsum('bij,bid->bjd', prob, logV)                     # (B, m, DD)

    att = sym_exp(out_log.reshape(bsz, BLOCKS, D_OUT, D_OUT))
    att = att.reshape(bsz * BLOCKS, D_OUT, D_OUT)

    # SPDRectified (ReEig) + SPDTangentSpace (LogEig + upper-triangular vectorize)
    rect = sym_rectify(att, eps=1e-4)
    tang = sym_log(rect)
    iu0, iu1 = np.triu_indices(D_OUT)
    vec = tang[:, iu0, iu1]                                              # (B*m, 210)

    fe = vec.reshape(bsz, BLOCKS * TRIU_N)                               # (B, 420)
    # final linear left to XLA per perf review (tiny GEMV)
    logits = fe @ p['w_lin'] + p['b_lin'][None, :]
    return fe, logits


matt_forward = jax.jit(_matt_forward)


# =============================== parameter init =====================================

def _orthogonal(key, n, m):
    a = jax.random.normal(key, (n, m), dtype=jnp.float32)
    q, r = jnp.linalg.qr(a)
    d = jnp.diagonal(r)
    q = q * jnp.where(d >= 0, 1.0, -1.0)[None, :]
    return q


def _static_blocks():
    """Constant masks that encode the (batch, block) row partition."""
    offs = np.concatenate([[0], np.cumsum(PATCH_LENS)])
    row_block = np.zeros((ROWS,), dtype=np.int64)
    for b in range(B):
        for j, L in enumerate(PATCH_LENS):
            r0 = b * T_OUT + offs[j]
            row_block[r0:r0 + L] = b * BLOCKS + j

    mask = np.zeros((ROWS, NBLK * C2), np.float32)
    for r in range(ROWS):
        idx = int(row_block[r])
        mask[r, idx * C2:(idx + 1) * C2] = 1.0

    Mc = np.eye(ROWS, dtype=np.float32)            # block-diag centering: I - J/L per block
    for idx in range(NBLK):
        rows = np.where(row_block == idx)[0]
        Mc[np.ix_(rows, rows)] -= 1.0 / len(rows)

    blk1 = np.zeros((NBLK * C2, NBLK * C2), np.float32)
    for idx in range(NBLK):
        blk1[idx * C2:(idx + 1) * C2, idx * C2:(idx + 1) * C2] = 1.0

    eyeL = np.tile(np.eye(C2, dtype=np.float32), (1, NBLK))
    return mask, Mc, blk1, eyeL


def _pack_consts(wc, bterm_all, mask, Mc, blk1, eyeL, wcat, wbd):
    slab = jnp.zeros((SLAB_ROWS, CW), jnp.float32)

    def put(s, r, a):
        a = jnp.asarray(a, jnp.float32)
        return s.at[r:r + a.shape[0], :a.shape[1]].set(a)

    slab = put(slab, R_WC, wc)
    slab = put(slab, R_BT, bterm_all)
    slab = put(slab, R_MC, Mc)
    slab = put(slab, R_MASK, mask)
    slab = put(slab, R_BLK, blk1)
    slab = put(slab, R_EYE, eyeL)
    slab = put(slab, R_WCAT, wcat)
    slab = put(slab, R_WBD, wbd)
    return slab


def init_params(key):
    ks = jax.random.split(key, 20)
    # conv1 + BN1
    w1 = 0.10 * jax.random.normal(ks[0], (IN_CHAN, C1), jnp.float32)
    b1 = 0.10 * jax.random.normal(ks[1], (C1,), jnp.float32)
    g1 = 1.0 + 0.10 * jax.random.normal(ks[2], (C1,), jnp.float32)
    be1 = 0.10 * jax.random.normal(ks[3], (C1,), jnp.float32)
    rm1 = 0.10 * jax.random.normal(ks[4], (C1,), jnp.float32)
    rv1 = 1.0 + 0.10 * jax.random.uniform(ks[5], (C1,), jnp.float32)
    # conv2 + BN2
    w2 = 0.05 * jax.random.normal(ks[6], (K2, C1, C2), jnp.float32)
    b2 = 0.10 * jax.random.normal(ks[7], (C2,), jnp.float32)
    g2 = 1.0 + 0.10 * jax.random.normal(ks[8], (C2,), jnp.float32)
    be2 = 0.10 * jax.random.normal(ks[9], (C2,), jnp.float32)
    rm2 = 0.10 * jax.random.normal(ks[10], (C2,), jnp.float32)
    rv2 = 1.0 + 0.10 * jax.random.uniform(ks[11], (C2,), jnp.float32)

    # fold eval-mode BatchNorm into the conv weights/biases (exact fusion)
    a1 = g1 / jnp.sqrt(rv1 + BN_EPS)
    a2 = g2 / jnp.sqrt(rv2 + BN_EPS)
    w1_eff = w1 * a1[None, :]                        # (Cin, C1)
    b1_eff = a1 * (b1 - rm1) + be1                   # (C1,)
    w2_eff = w2 * a2[None, None, :]                  # (K2, C1, C2)
    b2_eff = a2 * (b2 - rm2) + be2                   # (C2,)

    # combine conv1 and conv2 into a single im2col weight (exact: linear ops compose)
    wc = jnp.einsum('ci,kio->kco', w1_eff, w2_eff).reshape(K2 * IN_CHAN, C2)
    # position-dependent bias: conv1 bias only flows through non-padded taps
    pos = np.arange(T_OUT)[:, None] + np.arange(K2)[None, :]
    valid = ((pos >= PAD) & (pos < PAD + T_POOL)).astype(np.float32)     # (T_OUT, K2)
    bw = jnp.einsum('i,kio->ko', b1_eff, w2_eff)                         # (K2, C2)
    bterm = jnp.asarray(valid) @ bw + b2_eff[None, :]                    # (T_OUT, C2)
    bterm_all = jnp.tile(bterm, (B, 1))                                  # (ROWS, C2)

    # SPDTransform Stiefel weights (orthonormal columns, like nn.init.orthogonal_)
    wq = _orthogonal(ks[12], C2, D_OUT)
    wk = _orthogonal(ks[13], C2, D_OUT)
    wv = _orthogonal(ks[14], C2, D_OUT)
    wcat = jnp.concatenate([wq, wk, wv], axis=1)                         # (C2, 3*D)

    # block-diag(Wcat x NBLK), zero-padded to OUT_LANES for lane-aligned stores
    wbd = jnp.zeros((NBLK * C2, OUT_LANES), jnp.float32)
    for idx in range(NBLK):
        wbd = wbd.at[idx * C2:(idx + 1) * C2,
                     idx * 3 * D_OUT:(idx + 1) * 3 * D_OUT].set(wcat)

    mask, Mc, blk1, eyeL = _static_blocks()
    cslab = _pack_consts(wc, bterm_all, mask, Mc, blk1, eyeL, wcat, wbd)

    # final linear
    f = TRIU_N * BLOCKS
    w_lin = 0.05 * jax.random.normal(ks[15], (f, NUM_CLASS), jnp.float32)
    b_lin = 0.05 * jax.random.normal(ks[16], (NUM_CLASS,), jnp.float32)

    return dict(cslab=cslab, w_lin=w_lin, b_lin=b_lin)


# ===================================== main =========================================

if __name__ == "__main__":
    key = jax.random.PRNGKey(0)
    pkey, xkey = jax.random.split(key)
    params = init_params(pkey)

    x = jax.random.normal(xkey, (B, 1, IN_CHAN, T), dtype=jnp.float32)   # NCHW input

    fe, logits = matt_forward(x, params)
    jax.block_until_ready((fe, logits))

    assert fe.shape == (B, TRIU_N * BLOCKS), fe.shape
    assert logits.shape == (B, NUM_CLASS), logits.shape
    assert bool(jnp.all(jnp.isfinite(fe))) and bool(jnp.all(jnp.isfinite(logits)))
    print("KERNEL_OK")
</pallas_src>

<mosaic_0001>
module attributes {stable_mosaic.version = 11 : i64} {
  func.func @frontend_kernel(%arg0: i32, %arg1: memref<34x48xf32, #tpu.memory_space<vmem>>, %arg2: memref<376x256xf32, #tpu.memory_space<vmem>>, %arg3: memref<60x256xf32, #tpu.memory_space<vmem>>) attributes {dimension_semantics = [#tpu.dimension_semantics<arbitrary>], iteration_bounds = array<i64: 1>, scalar_prefetch = 0 : i64, scratch_operands = 0 : i64, tpu.core_type = #tpu.core_type<tc>, window_params = [{pipeline_mode = #tpu.pipeline_mode<synchronous>, transform_indices = @transform_0, window_bounds = array<i64: 34, 48>}, {pipeline_mode = #tpu.pipeline_mode<synchronous>, transform_indices = @transform_1, window_bounds = array<i64: 376, 256>}, {pipeline_mode = #tpu.pipeline_mode<synchronous>, transform_indices = @transform_2, window_bounds = array<i64: 60, 256>}]} {
    %c0 = arith.constant 0 : index
    %c0_0 = arith.constant 0 : index
    %0 = vector.load %arg2[%c0, %c0_0] : memref<376x256xf32, #tpu.memory_space<vmem>>, vector<48x20xf32>
    %c48 = arith.constant 48 : index
    %c0_1 = arith.constant 0 : index
    %1 = vector.load %arg2[%c48, %c0_1] : memref<376x256xf32, #tpu.memory_space<vmem>>, vector<34x20xf32>
    %c88 = arith.constant 88 : index
    %c0_2 = arith.constant 0 : index
    %2 = vector.load %arg2[%c88, %c0_2] : memref<376x256xf32, #tpu.memory_space<vmem>>, vector<34x34xf32>
    %c128 = arith.constant 128 : index
    %c0_3 = arith.constant 0 : index
    %3 = vector.load %arg2[%c128, %c0_3] : memref<376x256xf32, #tpu.memory_space<vmem>>, vector<34x80xf32>
    %c168 = arith.constant 168 : index
    %c0_4 = arith.constant 0 : index
    %4 = vector.load %arg2[%c168, %c0_4] : memref<376x256xf32, #tpu.memory_space<vmem>>, vector<80x80xf32>
    %c248 = arith.constant 248 : index
    %c0_5 = arith.constant 0 : index
    %5 = vector.load %arg2[%c248, %c0_5] : memref<376x256xf32, #tpu.memory_space<vmem>>, vector<20x80xf32>
    %c272 = arith.constant 272 : index
    %c0_6 = arith.constant 0 : index
    %6 = vector.load %arg2[%c272, %c0_6] : memref<376x256xf32, #tpu.memory_space<vmem>>, vector<20x60xf32>
    %c296 = arith.constant 296 : index
    %c0_7 = arith.constant 0 : index
    %7 = vector.load %arg2[%c296, %c0_7] : memref<376x256xf32, #tpu.memory_space<vmem>>, vector<80x256xf32>
    %c0_8 = arith.constant 0 : index
    %c0_9 = arith.constant 0 : index
    %8 = vector.load %arg1[%c0_8, %c0_9] : memref<34x48xf32, #tpu.memory_space<vmem>>, vector<34x48xf32>
    %cst = arith.constant dense<0.000000e+00> : vector<34x20xf32>
    %9 = tpu.matmul %8, %0, %cst {dimension_numbers = #tpu.dot_dimension_numbers<[1], [0], [0], [1], [0, 0, 1, 1], [], []>} : vector<34x48xf32>, vector<48x20xf32>, vector<34x20xf32> -> vector<34x20xf32>
    %10 = arith.addf %9, %1 : vector<34x20xf32>
    %cst_10 = arith.constant dense<0.000000e+00> : vector<34x20xf32>
    %11 = tpu.matmul %2, %10, %cst_10 {dimension_numbers = #tpu.dot_dimension_numbers<[1], [0], [0], [1], [0, 0, 1, 1], [], []>} : vector<34x34xf32>, vector<34x20xf32>, vector<34x20xf32> -> vector<34x20xf32>
    %12 = tpu.concatenate %11, %11, %11, %11 in 1 : vector<34x20xf32>, vector<34x20xf32>, vector<34x20xf32>, vector<34x20xf32> -> vector<34x80xf32>
    %13 = arith.mulf %3, %12 : vector<34x80xf32>
    %cst_11 = arith.constant dense<0.000000e+00> : vector<20x80xf32>
    %14 = tpu.matmul %11, %13, %cst_11 {dimension_numbers = #tpu.dot_dimension_numbers<[0], [0], [1], [1], [0, 1, 1, 1], [], []>} : vector<34x20xf32>, vector<34x80xf32>, vector<20x80xf32> -> vector<20x80xf32>
    %15 = arith.mulf %13, %13 : vector<34x80xf32>
    %cst_12 = arith.constant dense<0.000000e+00> : vector<80xf32>
    %16 = vector.multi_reduction <add>, %15, %cst_12 [0] : vector<34x80xf32> to vector<80xf32>
    %17 = vector.shape_cast %16 : vector<80xf32> to vector<1x80xf32>
    %cst_13 = arith.constant dense<0.000000e+00> : vector<1x80xf32>
    %18 = tpu.matmul %17, %4, %cst_13 {dimension_numbers = #tpu.dot_dimension_numbers<[1], [0], [0], [1], [0, 0, 1, 1], [], []>} : vector<1x80xf32>, vector<80x80xf32>, vector<1x80xf32> -> vector<1x80xf32>
    %19 = vector.broadcast %18 : vector<1x80xf32> to vector<20x80xf32>
    %20 = arith.divf %14, %19 : vector<20x80xf32>
    %cst_14 = arith.constant 9.99999974E-6 : f32
    %21 = vector.broadcast %cst_14 : f32 to vector<20x80xf32>
    %22 = arith.mulf %21, %5 : vector<20x80xf32>
    %23 = arith.addf %20, %22 : vector<20x80xf32>
    %cst_15 = arith.constant dense<0.000000e+00> : vector<60x80xf32>
    %24 = tpu.matmul %6, %23, %cst_15 {dimension_numbers = #tpu.dot_dimension_numbers<[0], [0], [1], [1], [0, 1, 1, 1], [], []>} : vector<20x60xf32>, vector<20x80xf32>, vector<60x80xf32> -> vector<60x80xf32>
    %cst_16 = arith.constant dense<0.000000e+00> : vector<60x256xf32>
    %25 = tpu.matmul %24, %7, %cst_16 {dimension_numbers = #tpu.dot_dimension_numbers<[1], [0], [0], [1], [0, 0, 1, 1], [], []>} : vector<60x80xf32>, vector<80x256xf32>, vector<60x256xf32> -> vector<60x256xf32>
    %c0_17 = arith.constant 0 : index
    %c0_18 = arith.constant 0 : index
    %26 = vector.load %arg3[%c0_17, %c0_18] : memref<60x256xf32, #tpu.memory_space<vmem>>, vector<60x256xf32>
    tpu.vector_store %arg3[%c0_17, %c0_18], %25 {strides = array<i32>} : memref<60x256xf32, #tpu.memory_space<vmem>>, vector<60x256xf32>,
    return
  }
  func.func @transform_0(%arg0: i32) -> (i32, i32) {
    %c0_i32 = arith.constant 0 : i32
    %c0_i32_0 = arith.constant 0 : i32
    %c0_i32_1 = arith.constant 0 : i32
    return %c0_i32, %c0_i32_0 : i32, i32
  }
  func.func @transform_1(%arg0: i32) -> (i32, i32) {
    %c0_i32 = arith.constant 0 : i32
    %c0_i32_0 = arith.constant 0 : i32
    %c0_i32_1 = arith.constant 0 : i32
    return %c0_i32, %c0_i32_0 : i32, i32
  }
  func.func @transform_2(%arg0: i32) -> (i32, i32) {
    %c0_i32 = arith.constant 0 : i32
    %c0_i32_0 = arith.constant 0 : i32
    %c0_i32_1 = arith.constant 0 : i32
    return %c0_i32, %c0_i32_0 : i32, i32
  }
}

</mosaic_0001>

<llo_original>
// kernel: custom-call.11
$region0: #{custom-call.11}
  %s0 = inlined_call_operand.vmem [shape: f32[2,2,10,10], index: 0, kind: input, shape index: {}]
  %s1 = inlined_call_operand.vmem [shape: f32[2,2,10,10], index: 1, kind: input, shape index: {}]
  %s2 = inlined_call_operand.vmem [shape: f32[2,2,10,10], index: 2, kind: input, shape index: {}]
  %s3 = inlined_call_operand.vmem [shape: f32[2,2,10,10], index: 3, kind: input, shape index: {}]
  %s4 = inlined_call_operand.vmem [shape: f32[2,2,10], index: 4, kind: output, shape index: {0}]
  %s5 = inlined_call_operand.vmem [shape: f32[2,2,10], index: 5, kind: output, shape index: {1}]
  %s6 = inlined_call_operand.vmem [shape: f32[2,2,10,10], index: 6, kind: output, shape index: {2}]
  %s7 = inlined_call_operand.vmem [shape: f32[2,2,10,10], index: 7, kind: output, shape index: {3}]
  %s8 = inlined_call_operand.vmem [shape: f32[2,2,10,10], index: 8, kind: output, shape index: {4}]
  %s9 = inlined_call_operand.vmem [shape: f32[2,2,10,10], index: 9, kind: output, shape index: {5}]
  %10 = xla_tuple %s4, %s5, %s6, %s7, %s8, %s9
  $region1: #{custom-call.11} parent=0
    #allocation0 [shape = 'u8[16384]{0}', space=vmem, size = 0x4000, scoped, tag = 'operand span for operand 0']
    #allocation1 [shape = 'u8[16384]{0}', space=vmem, size = 0x4000, scoped, tag = 'operand span for operand 1']
    #allocation2 [shape = 'u8[16384]{0}', space=vmem, size = 0x4000, scoped, tag = 'operand span for operand 2']
    #allocation3 [shape = 'u8[16384]{0}', space=vmem, size = 0x4000, scoped, tag = 'operand span for operand 3']
    #allocation4 [shape = 'u8[4096]{0}', space=vmem, size = 0x1000, scoped, tag = 'operand span for operand 4']
    #allocation5 [shape = 'u8[2048]{0}', space=vmem, size = 0x800, scoped, tag = 'packed  for operand 4']
    #allocation6 [shape = 'u8[4096]{0}', space=vmem, size = 0x1000, scoped, tag = 'operand span for operand 5']
    #allocation7 [shape = 'u8[2048]{0}', space=vmem, size = 0x800, scoped, tag = 'packed  for operand 5']
    #allocation8 [shape = 'u8[16384]{0}', space=vmem, size = 0x4000, scoped, tag = 'operand span for operand 6']
    #allocation9 [shape = 'u8[16384]{0}', space=vmem, size = 0x4000, scoped, tag = 'operand span for operand 7']
    #allocation10 [shape = 'u8[16384]{0}', space=vmem, size = 0x4000, scoped, tag = 'operand span for operand 8']
    #allocation11 [shape = 'u8[16384]{0}', space=vmem, size = 0x4000, scoped, tag = 'operand span for operand 9']
    loop: start=0, step=1, limit=6
    $region2: #{custom-call.11} parent=1 // loop_pre_header
      _
    $region3: #{custom-call.11} parent=1 // loop_header
      %s12 = sphi 0, %s16
      %p13 = scmp.ge.s32.totalorder %s12, 6
      %s19 = sphi 0, %s31
      %s20 = sphi 0, %s27
      %s21 = sphi 0, %s19
      %s22 = sphi 0, %s20
      %s23 = sphi 0, %s21
      %s24 = sphi 0, %s22
      %s38 = sphi 0, %s40
      %s41 = sphi 0, %s38
      %s42 = sphi 0, %s41
      %s58 = sphi 0, %s42
      %s68 = sphi 0, %s70
      %s71 = sphi 0, %s68
      %s72 = sphi 0, %s71
      %s88 = sphi 0, %s72
    $region4: #{custom-call.11} parent=1 // loop_header_branch
      %15 = sbr.rel (%p13) target = $region8
    $region5: #{custom-call.11} parent=1 // loop_body
      %s17 = ssub.s32 %s12, 1
      %s18 = ssub.s32 %s12, 2
      %s25 = sadd.s32 1, %s20
      %p26 = scmp.ge.s32.totalorder %s25, 2
      %s27 = scalar_select %p26, 0, %s25
      %s28 = sadd.s32 1, %s19
      %s29 = scalar_select %p26, %s28, %s19
      %p30 = scmp.ge.s32.totalorder %s29, 2
      %s31 = scalar_select %p30, 0, %s29
      %s32 = sshrl.u32 %s20, 3
      %s33 = sshrl.u32 %s27, 3
      %s34 = ssub.s32 %s19, %s31
      %s35 = ssub.s32 %s32, %s33
      %s36 = sor.u32 %s34, %s35
      %p37 = scmp.eq.s32.totalorder %s36, 0
      %s39 = sadd.s32 %s38, 1
      %s40 = scalar_select %p37, %s38, %s39
      %p43 = pneg %p37
      %p44 = scmp.eq.s32.totalorder %s12, 3
      %p45 = por %p43, %p44
      %p46 = scmp.ne.s32.totalorder %s38, %s41
      %p47 = scmp.eq.s32.totalorder %s12, 0
      %p48 = por %p46, %p47
      %p49 = scmp.ne.s32.totalorder %s38, %s41
      %p50 = scmp.eq.s32.totalorder %s17, 3
      %p51 = por %p49, %p50
      %p52 = scmp.ne.s32.totalorder %s41, %s42
      %p53 = scmp.eq.s32.totalorder %s17, 0
      %p54 = por %p52, %p53
      %p55 = scmp.ne.s32.totalorder %s41, %s42
      %p56 = scmp.eq.s32.totalorder %s18, 3
      %p57 = por %p55, %p56
      %p59 = scmp.ne.s32.totalorder %s42, %s58
      %p60 = scmp.eq.s32.totalorder %s18, 0
      %p61 = por %p59, %p60
      %s62 = sshrl.u32 %s20, 3
      %s63 = sshrl.u32 %s27, 3
      %s64 = ssub.s32 %s19, %s31
      %s65 = ssub.s32 %s62, %s63
      %s66 = sor.u32 %s64, %s65
      %p67 = scmp.eq.s32.totalorder %s66, 0
      %s69 = sadd.s32 %s68, 1
      %s70 = scalar_select %p67, %s68, %s69
      %p73 = pneg %p67
      %p74 = scmp.eq.s32.totalorder %s12, 3
      %p75 = por %p73, %p74
      %p76 = scmp.ne.s32.totalorder %s68, %s71
      %p77 = scmp.eq.s32.totalorder %s12, 0
      %p78 = por %p76, %p77
      %p79 = scmp.ne.s32.totalorder %s68, %s71
      %p80 = scmp.eq.s32.totalorder %s17, 3
      %p81 = por %p79, %p80
      %p82 = scmp.ne.s32.totalorder %s71, %s72
      %p83 = scmp.eq.s32.totalorder %s17, 0
      %p84 = por %p82, %p83
      %p85 = scmp.ne.s32.totalorder %s71, %s72
      %p86 = scmp.eq.s32.totalorder %s18, 3
      %p87 = por %p85, %p86
      %p89 = scmp.ne.s32.totalorder %s72, %s88
      %p90 = scmp.eq.s32.totalorder %s18, 0
      %p91 = por %p89, %p90
      %p92 = scmp.le.s32.totalorder 1, %s12
      %p93 = scmp.lt.s32.totalorder %s12, 5
      %p94 = pnand %p92, %p93
      %p95 = pneg %p94
      // Predicated region
      $region9: #{custom-call.11} parent=5 // pred_check
        _
      $region10: #{custom-call.11} parent=5 // pred_check_branch
        %97 = sbr.rel (%p94) target = $region12
      $region11: #{custom-call.11} parent=5 // pred_region
        %s98 = ssub.s32 %s12, 1
      $region12: #{custom-call.11} parent=5 // pred_fallthru
        _
      %p99 = scmp.lt.s32.totalorder %s12, 4
      // Predicated region
      $region13: #{custom-call.11} parent=5 // pred_check
        %p100 = pneg %p99
      $region14: #{custom-call.11} parent=5 // pred_check_branch
        %102 = sbr.rel (%p100) target = $region16
      $region15: #{custom-call.11} parent=5 // pred_region
        %s103 = sand.u32 %s12, 1
        %s104 = sand.u32 %s12, 1
        %s105 = smul.addr %s104, 16
        %s106 = scalar_lea.vmem [#allocation0], %s105
        %s107 = smul.addr %s19, 2
        %s108 = sadd.s32 %s20, %s107
        %s109 = smul.addr %s108, 16
        %s110 = scalar_lea.vmem %s0, %s109
        // Predicated region
        $region17: #{custom-call.11} parent=15 // pred_check
          _
        $region18: #{custom-call.11} parent=15 // pred_check_branch
          %112 = sbr.rel (0) target = $region20
        $region19: #{custom-call.11} parent=15 // pred_region
          // Predicated region
          $region21: #{custom-call.11} parent=19 // pred_check
            _
          $region22: #{custom-call.11} parent=19 // pred_check_branch
            %114 = sbr.rel (0) target = $region24
          $region23: #{custom-call.11} parent=19 // pred_region
            loop: start=0, step=1, limit=1
            $region25: #{custom-call.11} parent=23 // loop_pre_header
              _
            $region26: #{custom-call.11} parent=23 // loop_header
              %s116 = sphi 0, %s120
              %p117 = scmp.ge.s32.totalorder %s116, 1
              %s121 = sphi %s110, %s110
              %s122 = sphi %s106, %s106
            $region27: #{custom-call.11} parent=23 // loop_header_branch
              %119 = sbr.rel (%p117) target = $region31
            $region28: #{custom-call.11} parent=23 // loop_body
              %v123 = vld [vmem:[%s121] sm:$0xff]
              %124 = vst [vmem:[%s122] sm:$0xff] %v123
              %v125 = vld [vmem:[%s121 + $0x8] sm:$0xff]
              %126 = vst [vmem:[%s122 + $0x8] sm:$0xff] %v125
            $region29: #{custom-call.11} parent=23 // loop_footer
              %s120 = sadd.s32 1, %s116
            $region30: #{custom-call.11} parent=23 // loop_footer_branch
              %115 = sbr.rel target = $region26
            $region31: #{custom-call.11} parent=23 // loop_exit
              _
          $region24: #{custom-call.11} parent=19 // pred_fallthru
            _
          // Predicated region
          $region32: #{custom-call.11} parent=19 // pred_check
            _
          $region33: #{custom-call.11} parent=19 // pred_check_branch
            %128 = sbr.rel target = $region35
          $region34: #{custom-call.11} parent=19 // pred_region
            _
          $region35: #{custom-call.11} parent=19 // pred_fallthru
            _
        $region20: #{custom-call.11} parent=15 // pred_fallthru
          _
        %129 = vnop
        %s130 = sand.u32 %s12, 1
        %s131 = sand.u32 %s12, 1
        %s132 = smul.addr %s131, 16
        %s133 = scalar_lea.vmem [#allocation1], %s132
        %s134 = smul.addr %s19, 2
        %s135 = sadd.s32 %s20, %s134
        %s136 = smul.addr %s135, 16
        %s137 = scalar_lea.vmem %s1, %s136
        // Predicated region
        $region36: #{custom-call.11} parent=15 // pred_check
          _
        $region37: #{custom-call.11} parent=15 // pred_check_branch
          %139 = sbr.rel (0) target = $region39
        $region38: #{custom-call.11} parent=15 // pred_region
          // Predicated region
          $region40: #{custom-call.11} parent=38 // pred_check
            _
          $region41: #{custom-call.11} parent=38 // pred_check_branch
            %141 = sbr.rel (0) target = $region43
          $region42: #{custom-call.11} parent=38 // pred_region
            loop: start=0, step=1, limit=1
            $region44: #{custom-call.11} parent=42 // loop_pre_header
              _
            $region45: #{custom-call.11} parent=42 // loop_header
              %s143 = sphi 0, %s147
              %p144 = scmp.ge.s32.totalorder %s143, 1
              %s148 = sphi %s137, %s137
              %s149 = sphi %s133, %s133
            $region46: #{custom-call.11} parent=42 // loop_header_branch
              %146 = sbr.rel (%p144) target = $region50
            $region47: #{custom-call.11} parent=42 // loop_body
              %v150 = vld [vmem:[%s148] sm:$0xff]
              %151 = vst [vmem:[%s149] sm:$0xff] %v150
              %v152 = vld [vmem:[%s148 + $0x8] sm:$0xff]
              %153 = vst [vmem:[%s149 + $0x8] sm:$0xff] %v152
            $region48: #{custom-call.11} parent=42 // loop_footer
              %s147 = sadd.s32 1, %s143
            $region49: #{custom-call.11} parent=42 // loop_footer_branch
              %142 = sbr.rel target = $region45
            $region50: #{custom-call.11} parent=42 // loop_exit
              _
          $region43: #{custom-call.11} parent=38 // pred_fallthru
            _
          // Predicated region
          $region51: #{custom-call.11} parent=38 // pred_check
            _
          $region52: #{custom-call.11} parent=38 // pred_check_branch
            %155 = sbr.rel target = $region54
          $region53: #{custom-call.11} parent=38 // pred_region
            _
          $region54: #{custom-call.11} parent=38 // pred_fallthru
            _
        $region39: #{custom-call.11} parent=15 // pred_fallthru
          _
        %156 = vnop
        %s157 = sand.u32 %s12, 1
        %s158 = sand.u32 %s12, 1
        %s159 = smul.addr %s158, 16
        %s160 = scalar_lea.vmem [#allocation2], %s159
        %s161 = smul.addr %s19, 2
        %s162 = sadd.s32 %s20, %s161
        %s163 = smul.addr %s162, 16
        %s164 = scalar_lea.vmem %s2, %s163
        // Predicated region
        $region55: #{custom-call.11} parent=15 // pred_check
          _
        $region56: #{custom-call.11} parent=15 // pred_check_branch
          %166 = sbr.rel (0) target = $region58
        $region57: #{custom-call.11} parent=15 // pred_region
          // Predicated region
          $region59: #{custom-call.11} parent=57 // pred_check
            _
          $region60: #{custom-call.11} parent=57 // pred_check_branch
            %168 = sbr.rel (0) target = $region62
          $region61: #{custom-call.11} parent=57 // pred_region
            loop: start=0, step=1, limit=1
            $region63: #{custom-call.11} parent=61 // loop_pre_header
              _
            $region64: #{custom-call.11} parent=61 // loop_header
              %s170 = sphi 0, %s174
              %p171 = scmp.ge.s32.totalorder %s170, 1
              %s175 = sphi %s164, %s164
              %s176 = sphi %s160, %s160
            $region65: #{custom-call.11} parent=61 // loop_header_branch
              %173 = sbr.rel (%p171) target = $region69
            $region66: #{custom-call.11} parent=61 // loop_body
              %v177 = vld [vmem:[%s175] sm:$0xff]
              %178 = vst [vmem:[%s176] sm:$0xff] %v177
              %v179 = vld [vmem:[%s175 + $0x8] sm:$0xff]
              %180 = vst [vmem:[%s176 + $0x8] sm:$0xff] %v179
            $region67: #{custom-call.11} parent=61 // loop_footer
              %s174 = sadd.s32 1, %s170
            $region68: #{custom-call.11} parent=61 // loop_footer_branch
              %169 = sbr.rel target = $region64
            $region69: #{custom-call.11} parent=61 // loop_exit
              _
          $region62: #{custom-call.11} parent=57 // pred_fallthru
            _
          // Predicated region
          $region70: #{custom-call.11} parent=57 // pred_check
            _
          $region71: #{custom-call.11} parent=57 // pred_check_branch
            %182 = sbr.rel target = $region73
          $region72: #{custom-call.11} parent=57 // pred_region
            _
          $region73: #{custom-call.11} parent=57 // pred_fallthru
            _
        $region58: #{custom-call.11} parent=15 // pred_fallthru
          _
        %183 = vnop
        %s184 = sand.u32 %s12, 1
        %s185 = sand.u32 %s12, 1
        %s186 = smul.addr %s185, 16
        %s187 = scalar_lea.vmem [#allocation3], %s186
        %s188 = smul.addr %s19, 2
        %s189 = sadd.s32 %s20, %s188
        %s190 = smul.addr %s189, 16
        %s191 = scalar_lea.vmem %s3, %s190
        // Predicated region
        $region74: #{custom-call.11} parent=15 // pred_check
          _
        $region75: #{custom-call.11} parent=15 // pred_check_branch
          %193 = sbr.rel (0) target = $region77
        $region76: #{custom-call.11} parent=15 // pred_region
          // Predicated region
          $region78: #{custom-call.11} parent=76 // pred_check
            _
          $region79: #{custom-call.11} parent=76 // pred_check_branch
            %195 = sbr.rel (0) target = $region81
          $region80: #{custom-call.11} parent=76 // pred_region
            loop: start=0, step=1, limit=1
            $region82: #{custom-call.11} parent=80 // loop_pre_header
              _
            $region83: #{custom-call.11} parent=80 // loop_header
              %s197 = sphi 0, %s201
              %p198 = scmp.ge.s32.totalorder %s197, 1
              %s202 = sphi %s191, %s191
              %s203 = sphi %s187, %s187
            $region84: #{custom-call.11} parent=80 // loop_header_branch
              %200 = sbr.rel (%p198) target = $region88
            $region85: #{custom-call.11} parent=80 // loop_body
              %v204 = vld [vmem:[%s202] sm:$0xff]
              %205 = vst [vmem:[%s203] sm:$0xff] %v204
              %v206 = vld [vmem:[%s202 + $0x8] sm:$0xff]
              %207 = vst [vmem:[%s203 + $0x8] sm:$0xff] %v206
            $region86: #{custom-call.11} parent=80 // loop_footer
              %s201 = sadd.s32 1, %s197
            $region87: #{custom-call.11} parent=80 // loop_footer_branch
              %196 = sbr.rel target = $region83
            $region88: #{custom-call.11} parent=80 // loop_exit
              _
          $region81: #{custom-call.11} parent=76 // pred_fallthru
            _
          // Predicated region
          $region89: #{custom-call.11} parent=76 // pred_check
            _
          $region90: #{custom-call.11} parent=76 // pred_check_branch
            %209 = sbr.rel target = $region92
          $region91: #{custom-call.11} parent=76 // pred_region
            _
          $region92: #{custom-call.11} parent=76 // pred_fallthru
            _
        $region77: #{custom-call.11} parent=15 // pred_fallthru
          _
        %210 = vnop
      $region16: #{custom-call.11} parent=5 // pred_fallthru
        _
      %p211 = scmp.le.s32.totalorder 1, %s12
      %p212 = scmp.lt.s32.totalorder %s12, 5
      %p213 = pnand %p211, %p212
      %p214 = pneg %p213
      // Predicated region
      $region93: #{custom-call.11} parent=5 // pred_check
        _
      $region94: #{custom-call.11} parent=5 // pred_check_branch
        %216 = sbr.rel (%p213) target = $region96
      $region95: #{custom-call.11} parent=5 // pred_region
        #allocation12 [shape = 'f32[10,10]{1,0}', space=vmem, size = 0x2000, scoped, tag = 'a top-left matrix']
        #allocation13 [shape = 'f32[10,10]{1,0}', space=vmem, size = 0x2000, scoped, tag = 'a top-right matrix']
        #allocation14 [shape = 'f32[10,10]{1,0}', space=vmem, size = 0x2000, scoped, tag = 'a bottom-left matrix']
        #allocation15 [shape = 'f32[10,10]{1,0}', space=vmem, size = 0x2000, scoped, tag = 'a bottom-right matrix']
        %s217 = ssub.s32 %s12, 1
        %s218 = sand.u32 %s17, 1
        %s219 = sand.u32 %s17, 1
        %s220 = smul.addr %s219, 16
        %s221 = scalar_lea.vmem [#allocation0], %s220
        %s222 = sand.u32 %s17, 1
        %s223 = sand.u32 %s17, 1
        %s224 = smul.addr %s223, 16
        %s225 = scalar_lea.vmem [#allocation1], %s224
        %s226 = sand.u32 %s17, 1
        %s227 = sand.u32 %s17, 1
        %s228 = smul.addr %s227, 16
        %s229 = scalar_lea.vmem [#allocation2], %s228
        %s230 = sand.u32 %s17, 1
        %s231 = sand.u32 %s17, 1
        %s232 = smul.addr %s231, 16
        %s233 = scalar_lea.vmem [#allocation3], %s232
        %s234 = sand.u32 %s17, 1
        %s235 = sand.u32 %s17, 1
        %s236 = smul.addr %s235, 16
        %s237 = scalar_lea.vmem [#allocation0], %s236
        %s238 = sand.u32 %s17, 1
        %s239 = sand.u32 %s17, 1
        %s240 = smul.addr %s239, 16
        %s241 = scalar_lea.vmem [#allocation1], %s240
        %s242 = sand.u32 %s17, 1
        %s243 = sand.u32 %s17, 1
        %s244 = smul.addr %s243, 16
        %s245 = scalar_lea.vmem [#allocation2], %s244
        %s246 = sand.u32 %s17, 1
        %s247 = sand.u32 %s17, 1
        %s248 = smul.addr %s247, 16
        %s249 = scalar_lea.vmem [#allocation3], %s248
        %p250 = pneg %p54
        %p251 = pneg %p51
        %s252 = sand.u32 %s41, 1
        %s253 = sand.u32 %s41, 1
        %s254 = smul.addr %s253, 2
        %s255 = scalar_lea.vmem [#allocation5], %s254
        %p256 = pneg %p84
        %p257 = pneg %p81
        %s258 = sand.u32 %s71, 1
        %s259 = sand.u32 %s71, 1
        %s260 = smul.addr %s259, 2
        %s261 = scalar_lea.vmem [#allocation7], %s260
        %s262 = sand.u32 %s17, 1
        %s263 = sand.u32 %s17, 1
        %s264 = smul.addr %s263, 16
        %s265 = scalar_lea.vmem [#allocation8], %s264
        %s266 = sand.u32 %s17, 1
        %s267 = sand.u32 %s17, 1
        %s268 = smul.addr %s267, 16
        %s269 = scalar_lea.vmem [#allocation9], %s268
        %s270 = sand.u32 %s17, 1
        %s271 = sand.u32 %s17, 1
        %s272 = smul.addr %s271, 16
        %s273 = scalar_lea.vmem [#allocation10], %s272
        %s274 = sand.u32 %s17, 1
        %s275 = sand.u32 %s17, 1
        %s276 = smul.addr %s275, 16
        %s277 = scalar_lea.vmem [#allocation11], %s276
        %s278 = sshrl.u32 %s22, 3
        %s279 = sshrl.u32 %s22, 3
        %s280 = smov [#allocation12]
        %v281 = vld [vmem:[%s221] sm:$0xff]
        %282 = vst [vmem:[%s280] sm:$0xff] %v281
        %s283 = scalar_lea.vmem %s280, 8
        %s284 = scalar_lea.vmem %s221, 8 [#allocation0]
        %v285 = vld [vmem:[%s284] sm:$0xff]
        %286 = vst [vmem:[%s283] sm:$0xff] %v285
        %s287 = smov [#allocation13]
        %v288 = vld [vmem:[%s225] sm:$0xff]
        %289 = vst [vmem:[%s287] sm:$0xff] %v288
        %s290 = scalar_lea.vmem %s287, 8
        %s291 = scalar_lea.vmem %s225, 8 [#allocation1]
        %v292 = vld [vmem:[%s291] sm:$0xff]
        %293 = vst [vmem:[%s290] sm:$0xff] %v292
        %s294 = smov [#allocation14]
        %v295 = vld [vmem:[%s229] sm:$0xff]
        %296 = vst [vmem:[%s294] sm:$0xff] %v295
        %s297 = scalar_lea.vmem %s294, 8
        %s298 = scalar_lea.vmem %s229, 8 [#allocation2]
        %v299 = vld [vmem:[%s298] sm:$0xff]
        %300 = vst [vmem:[%s297] sm:$0xff] %v299
        %s301 = smov [#allocation15]
        %v302 = vld [vmem:[%s233] sm:$0xff]
        %303 = vst [vmem:[%s301] sm:$0xff] %v302
        %s304 = scalar_lea.vmem %s301, 8
        %s305 = scalar_lea.vmem %s233, 8 [#allocation3]
        %v306 = vld [vmem:[%s305] sm:$0xff]
        %307 = vst [vmem:[%s304] sm:$0xff] %v306
        %308 = vst [vmem:[%s265] sm:$0xff] 0.0
        %s309 = scalar_lea.vmem %s265, 8 [#allocation8]
        %310 = vst [vmem:[%s309] sm:$0xff] 0.0
        %311 = vst [vmem:[%s269] sm:$0xff] 0.0
        %s312 = scalar_lea.vmem %s269, 8 [#allocation9]
        %313 = vst [vmem:[%s312] sm:$0xff] 0.0
        %314 = vst [vmem:[%s273] sm:$0xff] 0.0
        %s315 = scalar_lea.vmem %s273, 8 [#allocation10]
        %316 = vst [vmem:[%s315] sm:$0xff] 0.0
        %317 = vst [vmem:[%s277] sm:$0xff] 0.0
        %s318 = scalar_lea.vmem %s277, 8 [#allocation11]
        %319 = vst [vmem:[%s318] sm:$0xff] 0.0
        %s320 = smov %s265
        %v321 = vlaneseq
        %v322 = vand.u32 %v321, 127
        %v323 = vmov %v322
        %v324 = vlaneseq
        %v325 = vshrl.u32 %v324, 7
        %v326 = vmov %v325
        %v327 = vld [vmem:[%s320] sm:$0xff]
        %vm330 = vcmp.eq.s32.totalorder %v326, %v323
        %v331 = vsel %vm330, 1.0, %v327
        %332 = vst [vmem:[%s320] sm:$0xff] %v331
        %s333 = scalar_lea.vmem %s320, 8
        %v334 = vld [vmem:[%s333] sm:$0x3]
        %v336 = vadd.s32 %v326, 8
        %vm337 = vcmp.eq.s32.totalorder %v336, %v323
        %v338 = vsel %vm337, 1.0, %v334
        %339 = vst [vmem:[%s333] sm:$0x3] %v338
        %s340 = smov %s277
        %v341 = vlaneseq
        %v342 = vand.u32 %v341, 127
        %v343 = vmov %v342
        %v344 = vlaneseq
        %v345 = vshrl.u32 %v344, 7
        %v346 = vmov %v345
        %v347 = vld [vmem:[%s340] sm:$0xff]
        %vm350 = vcmp.eq.s32.totalorder %v346, %v343
        %v351 = vsel %vm350, 1.0, %v347
        %352 = vst [vmem:[%s340] sm:$0xff] %v351
        %s353 = scalar_lea.vmem %s340, 8
        %v354 = vld [vmem:[%s353] sm:$0x3]
        %v356 = vadd.s32 %v346, 8
        %vm357 = vcmp.eq.s32.totalorder %v356, %v343
        %v358 = vsel %vm357, 1.0, %v354
        %359 = vst [vmem:[%s353] sm:$0x3] %v358
        // While loop
        $region97: #{custom-call.11} parent=95 // loop_pre_header
          _
        $region98: #{custom-call.11} parent=95 // loop_header
          %s361 = sphi 0, %s1259
          %v362 = vlaneseq
          %v363 = vand.u32 %v362, 127
          %v364 = vmov %v363
          %v365 = vlaneseq
          %v366 = vshrl.u32 %v365, 7
          %v367 = vmov %v366
          %s368 = smov [#allocation12]
          %v369 = vlaneseq
          %v370 = vand.u32 %v369, 127
          %vm371 = vcmp.ge.s32.totalorder %v370, 0
          %vm372 = vcmp.lt.s32.totalorder %v370, 10
          %vm373 = vmand %vm371, %vm372
          %v374 = vld [vmem:[%s368] sm:$0xff]
          %v375 = vsel %vm373, %v374, 0.0
          %v376 = vmul.f32 %v375, %v375
          %vm379 = vcmp.eq.s32.totalorder %v367, %v364
          %v380 = vsel %vm379, 0.0, %v376
          %s381 = scalar_lea.vmem %s368, 8
          %v382 = vld [vmem:[%s381] sm:$0x3]
          %v383 = vsel %vm373, %v382, 0.0
          %v384 = vmul.f32 %v383, %v383
          %v386 = vadd.s32 %v367, 8
          %vm387 = vcmp.eq.s32.totalorder %v386, %v364
          %v388 = vsel %vm387, 0.0, %v384
          %v389 = vadd.f32 %v380, %v388
          %v390 = vadd.f32 %v376, %v384
          %v391 = vlaneseq
          %v392 = vand.u32 %v391, 127
          %v393 = vmov %v392
          %v394 = vlaneseq
          %v395 = vshrl.u32 %v394, 7
          %v396 = vmov %v395
          %s397 = smov [#allocation13]
          %v398 = vlaneseq
          %v399 = vand.u32 %v398, 127
          %vm400 = vcmp.ge.s32.totalorder %v399, 0
          %vm401 = vcmp.lt.s32.totalorder %v399, 10
          %vm402 = vmand %vm400, %vm401
          %v403 = vld [vmem:[%s397] sm:$0xff]
          %v404 = vsel %vm402, %v403, 0.0
          %v405 = vmul.f32 %v404, %v404
          %v406 = vadd.f32 %v389, %v405
          %v407 = vadd.f32 %v390, %v405
          %s408 = scalar_lea.vmem %s397, 8
          %v409 = vld [vmem:[%s408] sm:$0x3]
          %v410 = vsel %vm402, %v409, 0.0
          %v411 = vmul.f32 %v410, %v410
          %v412 = vadd.f32 %v406, %v411
          %v413 = vadd.f32 %v407, %v411
          %v414 = vlaneseq
          %v415 = vand.u32 %v414, 127
          %v416 = vmov %v415
          %v417 = vlaneseq
          %v418 = vshrl.u32 %v417, 7
          %v419 = vmov %v418
          %s420 = smov [#allocation14]
          %v421 = vlaneseq
          %v422 = vand.u32 %v421, 127
          %vm423 = vcmp.ge.s32.totalorder %v422, 0
          %vm424 = vcmp.lt.s32.totalorder %v422, 10
          %vm425 = vmand %vm423, %vm424
          %v426 = vld [vmem:[%s420] sm:$0xff]
          %v427 = vsel %vm425, %v426, 0.0
          %v428 = vmul.f32 %v427, %v427
          %v429 = vadd.f32 %v412, %v428
          %v430 = vadd.f32 %v413, %v428
          %s431 = scalar_lea.vmem %s420, 8
          %v432 = vld [vmem:[%s431] sm:$0x3]
          %v433 = vsel %vm425, %v432, 0.0
          %v434 = vmul.f32 %v433, %v433
          %v435 = vadd.f32 %v429, %v434
          %v436 = vadd.f32 %v430, %v434
          %v437 = vlaneseq
          %v438 = vand.u32 %v437, 127
          %v439 = vmov %v438
          %v440 = vlaneseq
          %v441 = vshrl.u32 %v440, 7
          %v442 = vmov %v441
          %s443 = smov [#allocation15]
          %v444 = vlaneseq
          %v445 = vand.u32 %v444, 127
          %vm446 = vcmp.ge.s32.totalorder %v445, 0
          %vm447 = vcmp.lt.s32.totalorder %v445, 10
          %vm448 = vmand %vm446, %vm447
          %v449 = vld [vmem:[%s443] sm:$0xff]
          %v450 = vsel %vm448, %v449, 0.0
          %v451 = vmul.f32 %v450, %v450
          %vm454 = vcmp.eq.s32.totalorder %v442, %v439
          %v455 = vsel %vm454, 0.0, %v451
          %v456 = vadd.f32 %v435, %v455
          %v457 = vadd.f32 %v436, %v451
          %s458 = scalar_lea.vmem %s443, 8
          %v459 = vld [vmem:[%s458] sm:$0x3]
          %v460 = vsel %vm448, %v459, 0.0
          %v461 = vmul.f32 %v460, %v460
          %v463 = vadd.s32 %v442, 8
          %vm464 = vcmp.eq.s32.totalorder %v463, %v439
          %v465 = vsel %vm464, 0.0, %v461
          %v466 = vadd.f32 %v456, %v465
          %v467 = vadd.f32 %v457, %v461
          %468 = vadd.xlane.f32.xlu0 %v467
          %v469 = vpop.xlane.xlu0 %468
          %v470 = vrot.slane %v469, 4
          %v471 = vadd.f32 %v469, %v470
          %v472 = vrot.slane %v471, 2
          %v473 = vadd.f32 %v471, %v472
          %v474 = vrot.slane %v473, 1
          %v475 = vadd.f32 %v473, %v474
          %476 = vadd.xlane.f32.xlu0 %v466
          %v477 = vpop.xlane.xlu0 %476
          %v478 = vrot.slane %v477, 4
          %v479 = vadd.f32 %v477, %v478
          %v480 = vrot.slane %v479, 2
          %v481 = vadd.f32 %v479, %v480
          %v482 = vrot.slane %v481, 1
          %v483 = vadd.f32 %v481, %v482
          %s484 = vtos %v483
          %s485 = vtos %v475
          %s486 = smul.f32 1e-10, %s485
          %p487 = scmp.le.f32.partialorder %s484, %s486
          %p488 = scmp.ge.s32.totalorder %s361, 15
          %p489 = por %p487, %p488
        $region99: #{custom-call.11} parent=95 // loop_header_branch
          %1261 = sbr.rel (%p489) target = $region103
        $region100: #{custom-call.11} parent=95 // loop_body
          loop: start=0, step=1, limit=19
          $region104: #{custom-call.11} parent=100 // loop_pre_header
            _
          $region105: #{custom-call.11} parent=100 // loop_header
            %s491 = sphi 0, %s495
            %p492 = scmp.ge.s32.totalorder %s491, 19
          $region106: #{custom-call.11} parent=100 // loop_header_branch
            %494 = sbr.rel (%p492) target = $region110
          $region107: #{custom-call.11} parent=100 // loop_body
            #allocation16 [shape = 'f32[1024]{0}', space=vmem, size = 0x1000, scoped, tag = 'a_tl_diag vmem']
            #allocation17 [shape = 'f32[1024]{0}', space=vmem, size = 0x1000, scoped, tag = 'a_tr_diag vmem']
            #allocation18 [shape = 'f32[1024]{0}', space=vmem, size = 0x1000, scoped, tag = 'a_br_diag vmem']
            #allocation19 [shape = 'f32[1024]{0}', space=vmem, size = 0x1000, scoped, tag = 'rt1 vmem']
            #allocation20 [shape = 'f32[1024]{0}', space=vmem, size = 0x1000, scoped, tag = 'rt2 vmem']
            #allocation21 [shape = 'f32[1024]{0}', space=vmem, size = 0x1000, scoped, tag = 'c vmem']
            #allocation22 [shape = 'f32[1024]{0}', space=vmem, size = 0x1000, scoped, tag = 's vmem']
            #allocation23 [shape = 'f32[8192]{0}', space=vmem, size = 0x8000, scoped, tag = 'c broadcast']
            #allocation24 [shape = 'f32[8192]{0}', space=vmem, size = 0x8000, scoped, tag = 's broadcast']
            %s496 = smov [#allocation12]
            %s497 = smov [#allocation16]
            %v498 = vlaneseq
            %v499 = vand.u32 %v498, 127
            %v500 = vmov %v499
            %v501 = vlaneseq
            %v502 = vshrl.u32 %v501, 7
            %v503 = vmov %v502
            %v504 = vld [vmem:[%s496] sm:$0xff]
            %vm507 = vcmp.eq.s32.totalorder %v503, %v500
            %v508 = vsel %vm507, %v504, 0.0
            %s509 = scalar_lea.vmem %s496, 8
            %v510 = vld [vmem:[%s509] sm:$0x3]
            %v512 = vadd.s32 %v503, 8
            %vm513 = vcmp.eq.s32.totalorder %v512, %v500
            %v514 = vsel %vm513, %v510, %v508
            %v515 = vrot.slane %v514, 4
            %v516 = vadd.f32 %v514, %v515
            %v517 = vrot.slane %v516, 2
            %v518 = vadd.f32 %v516, %v517
            %v519 = vrot.slane %v518, 1
            %v520 = vadd.f32 %v518, %v519
            %521 = vst [vmem:[%s497] sm:$0x1] %v520
            %s522 = smov [#allocation13]
            %s523 = smov [#allocation17]
            %v524 = vlaneseq
            %v525 = vand.u32 %v524, 127
            %v526 = vmov %v525
            %v527 = vlaneseq
            %v528 = vshrl.u32 %v527, 7
            %v529 = vmov %v528
            %v530 = vld [vmem:[%s522] sm:$0xff]
            %vm533 = vcmp.eq.s32.totalorder %v529, %v526
            %v534 = vsel %vm533, %v530, 0.0
            %s535 = scalar_lea.vmem %s522, 8
            %v536 = vld [vmem:[%s535] sm:$0x3]
            %v538 = vadd.s32 %v529, 8
            %vm539 = vcmp.eq.s32.totalorder %v538, %v526
            %v540 = vsel %vm539, %v536, %v534
            %v541 = vrot.slane %v540, 4
            %v542 = vadd.f32 %v540, %v541
            %v543 = vrot.slane %v542, 2
            %v544 = vadd.f32 %v542, %v543
            %v545 = vrot.slane %v544, 1
            %v546 = vadd.f32 %v544, %v545
            %547 = vst [vmem:[%s523] sm:$0x1] %v546
            %s548 = smov [#allocation15]
            %s549 = smov [#allocation18]
            %v550 = vlaneseq
            %v551 = vand.u32 %v550, 127
            %v552 = vmov %v551
            %v553 = vlaneseq
            %v554 = vshrl.u32 %v553, 7
            %v555 = vmov %v554
            %v556 = vld [vmem:[%s548] sm:$0xff]
            %vm559 = vcmp.eq.s32.totalorder %v555, %v552
            %v560 = vsel %vm559, %v556, 0.0
            %s561 = scalar_lea.vmem %s548, 8
            %v562 = vld [vmem:[%s561] sm:$0x3]
            %v564 = vadd.s32 %v555, 8
            %vm565 = vcmp.eq.s32.totalorder %v564, %v552
            %v566 = vsel %vm565, %v562, %v560
            %v567 = vrot.slane %v566, 4
            %v568 = vadd.f32 %v566, %v567
            %v569 = vrot.slane %v568, 2
            %v570 = vadd.f32 %v568, %v569
            %v571 = vrot.slane %v570, 1
            %v572 = vadd.f32 %v570, %v571
            %573 = vst [vmem:[%s549] sm:$0x1] %v572
            %s574 = smov [#allocation21]
            %s575 = smov [#allocation22]
            %s576 = smov [#allocation16]
            %v577 = vld [vmem:[%s576] sm:$0xff]
            %s578 = smov [#allocation17]
            %v579 = vld [vmem:[%s578] sm:$0xff]
            %s580 = smov [#allocation18]
            %v581 = vld [vmem:[%s580] sm:$0xff]
            %v582 = vsub.f32 %v581, %v577
            %v583 = vmul.f32 2.0, %v579
            %v584 = vrcp.pop %v583
            %v585 = vmul.f32 %v582, %v584
            %vm586 = vcmp.ge.f32.partialorder %v585, 0.0
            %v587 = vmul.f32 %v585, %v585
            %v588 = vadd.f32 1.0, %v587
            %v589 = vrsqrt.pop %v588
            %v590 = vmul.f32 %v588, %v589
            %vm591 = vcmp.eq.f32.partialorder %v588, inf
            %v592 = vsel %vm591, %v588, %v590
            %vm593 = vcmp.eq.f32.partialorder %v588, 0.0
            %v594 = vand.u32 %v588, 2147483648
            %v595 = vsel %vm593, %v594, %v592
            %v596 = vxor.u32 %v595, 2147483648
            %v597 = vsel %vm586, %v595, %v596
            %v598 = vadd.f32 %v585, %v597
            %v599 = vrcp.pop %v598
            %v600 = vand.u32 2147483647, %v577
            %v601 = vand.u32 2147483647, %v579
            %v602 = vand.u32 2147483647, %v581
            %v603 = vmin.f32 %v600, %v602
            %v604 = vmul.f32 1.1920929e-08, %v603
            %vm605 = vcmp.le.f32.partialorder %v601, %v604
            %v606 = vsel %vm605, 0.0, %v599
            %v607 = vmul.f32 %v606, %v606
            %v608 = vadd.f32 1.0, %v607
            %v609 = vrsqrt.pop %v608
            %v610 = vmul.f32 %v606, %v609
            %v611 = vmul.f32 %v606, %v579
            %v612 = vsub.f32 %v577, %v611
            %v613 = vmul.f32 %v606, %v579
            %v614 = vadd.f32 %v581, %v613
            %s615 = smov [#allocation19]
            %616 = vst [vmem:[%s615] sm:$0xff] %v612
            %s617 = smov [#allocation20]
            %618 = vst [vmem:[%s617] sm:$0xff] %v614
            %s619 = smov %s574
            %620 = vst [vmem:[%s619] sm:$0xff] %v609
            %s621 = smov %s575
            %622 = vst [vmem:[%s621] sm:$0xff] %v610
            %s623 = smov [#allocation21]
            %v624 = vld [vmem:[%s623] ss:$0 sm:$0xff]
            %v625 = vlaneseq
            %v626 = vand.u32 %v625, 127
            %v627 = vmov %v626
            %v628 = vlaneseq
            %v629 = vshrl.u32 %v628, 7
            %v630 = vmov %v629
            %vm632 = vcmp.eq.s32.totalorder %v630, %v627
            %v633 = vsel %vm632, %v624, 0.0
            %634 = vadd.xlane.f32.xlu0 %v633
            %v635 = vpop.xlane.xlu0 %634
            %s636 = smov [#allocation23]
            %637 = vst [vmem:[%s636] sm:$0xff] %v635
            %s638 = smov [#allocation21]
            %v639 = vld [vmem:[%s638] ss:$0 sm:$0xff]
            %v640 = vlaneseq
            %v641 = vand.u32 %v640, 127
            %v642 = vmov %v641
            %v643 = vlaneseq
            %v644 = vshrl.u32 %v643, 7
            %v645 = vmov %v644
            %v646 = vadd.s32 %v645, 8
            %vm647 = vcmp.eq.s32.totalorder %v646, %v642
            %v648 = vsel %vm647, %v639, 0.0
            %649 = vadd.xlane.f32.xlu0 %v648
            %v650 = vpop.xlane.xlu0 %649
            %s651 = smov [#allocation23]
            %s652 = scalar_lea.vmem %s651, 8
            %653 = vst [vmem:[%s652] sm:$0xff] %v650
            %s654 = smov [#allocation22]
            %v655 = vld [vmem:[%s654] ss:$0 sm:$0xff]
            %v656 = vlaneseq
            %v657 = vand.u32 %v656, 127
            %v658 = vmov %v657
            %v659 = vlaneseq
            %v660 = vshrl.u32 %v659, 7
            %v661 = vmov %v660
            %vm663 = vcmp.eq.s32.totalorder %v661, %v658
            %v664 = vsel %vm663, %v655, 0.0
            %665 = vadd.xlane.f32.xlu0 %v664
            %v666 = vpop.xlane.xlu0 %665
            %s667 = smov [#allocation24]
            %668 = vst [vmem:[%s667] sm:$0xff] %v666
            %s669 = smov [#allocation22]
            %v670 = vld [vmem:[%s669] ss:$0 sm:$0xff]
            %v671 = vlaneseq
            %v672 = vand.u32 %v671, 127
            %v673 = vmov %v672
            %v674 = vlaneseq
            %v675 = vshrl.u32 %v674, 7
            %v676 = vmov %v675
            %v677 = vadd.s32 %v676, 8
            %vm678 = vcmp.eq.s32.totalorder %v677, %v673
            %v679 = vsel %vm678, %v670, 0.0
            %680 = vadd.xlane.f32.xlu0 %v679
            %v681 = vpop.xlane.xlu0 %680
            %s682 = smov [#allocation24]
            %s683 = scalar_lea.vmem %s682, 8
            %684 = vst [vmem:[%s683] sm:$0xff] %v681
            %s685 = smov [#allocation23]
            %v686 = vld [vmem:[%s685] sm:$0xff]
            %s687 = smov [#allocation24]
            %v688 = vld [vmem:[%s687] sm:$0xff]
            %s689 = smov [#allocation12]
            %s690 = smov [#allocation13]
            %s691 = smov [#allocation14]
            %s692 = smov [#allocation15]
            %v693 = vld [vmem:[%s689] sm:$0xff]
            %v694 = vld [vmem:[%s690] sm:$0xff]
            %v695 = vld [vmem:[%s691] sm:$0xff]
            %v696 = vld [vmem:[%s692] sm:$0xff]
            %v697 = vmul.f32 %v686, %v693
            %v698 = vmul.f32 %v688, %v695
            %v699 = vsub.f32 %v697, %v698
            %v700 = vmul.f32 %v686, %v694
            %v701 = vmul.f32 %v688, %v696
            %v702 = vsub.f32 %v700, %v701
            %v703 = vmul.f32 %v688, %v693
            %v704 = vmul.f32 %v686, %v695
            %v705 = vadd.f32 %v703, %v704
            %v706 = vmul.f32 %v688, %v694
            %v707 = vmul.f32 %v686, %v696
            %v708 = vadd.f32 %v706, %v707
            %709 = vst [vmem:[%s689] sm:$0xff] %v699
            %710 = vst [vmem:[%s690] sm:$0xff] %v702
            %711 = vst [vmem:[%s691] sm:$0xff] %v705
            %712 = vst [vmem:[%s692] sm:$0xff] %v708
            %s713 = smov [#allocation23]
            %s714 = scalar_lea.vmem %s713, 8
            %v715 = vld [vmem:[%s714] sm:$0xff]
            %s716 = smov [#allocation24]
            %s717 = scalar_lea.vmem %s716, 8
            %v718 = vld [vmem:[%s717] sm:$0xff]
            %s719 = smov [#allocation12]
            %s720 = scalar_lea.vmem %s719, 8
            %s721 = smov [#allocation13]
            %s722 = scalar_lea.vmem %s721, 8
            %s723 = smov [#allocation14]
            %s724 = scalar_lea.vmem %s723, 8
            %s725 = smov [#allocation15]
            %s726 = scalar_lea.vmem %s725, 8
            %v727 = vld [vmem:[%s720] sm:$0x3]
            %v728 = vld [vmem:[%s722] sm:$0x3]
            %v729 = vld [vmem:[%s724] sm:$0x3]
            %v730 = vld [vmem:[%s726] sm:$0x3]
            %v731 = vmul.f32 %v715, %v727
            %v732 = vmul.f32 %v718, %v729
            %v733 = vsub.f32 %v731, %v732
            %v734 = vmul.f32 %v715, %v728
            %v735 = vmul.f32 %v718, %v730
            %v736 = vsub.f32 %v734, %v735
            %v737 = vmul.f32 %v718, %v727
            %v738 = vmul.f32 %v715, %v729
            %v739 = vadd.f32 %v737, %v738
            %v740 = vmul.f32 %v718, %v728
            %v741 = vmul.f32 %v715, %v730
            %v742 = vadd.f32 %v740, %v741
            %743 = vst [vmem:[%s720] sm:$0x3] %v733
            %744 = vst [vmem:[%s722] sm:$0x3] %v736
            %745 = vst [vmem:[%s724] sm:$0x3] %v739
            %746 = vst [vmem:[%s726] sm:$0x3] %v742
            %s747 = smov [#allocation21]
            %v748 = vld [vmem:[%s747] ss:$0 sm:$0xff]
            %s749 = smov [#allocation22]
            %v750 = vld [vmem:[%s749] ss:$0 sm:$0xff]
            %s751 = smov [#allocation12]
            %s752 = smov [#allocation13]
            %s753 = smov [#allocation14]
            %s754 = smov [#allocation15]
            %v755 = vld [vmem:[%s751] sm:$0xff]
            %v756 = vld [vmem:[%s752] sm:$0xff]
            %v757 = vld [vmem:[%s753] sm:$0xff]
            %v758 = vld [vmem:[%s754] sm:$0xff]
            %v759 = vmul.f32 %v748, %v755
            %v760 = vmul.f32 %v750, %v756
            %v761 = vsub.f32 %v759, %v760
            %v762 = vmul.f32 %v750, %v755
            %v763 = vmul.f32 %v748, %v756
            %v764 = vadd.f32 %v762, %v763
            %v765 = vmul.f32 %v748, %v757
            %v766 = vmul.f32 %v750, %v758
            %v767 = vsub.f32 %v765, %v766
            %v768 = vmul.f32 %v750, %v757
            %v769 = vmul.f32 %v748, %v758
            %v770 = vadd.f32 %v768, %v769
            %771 = vst [vmem:[%s751] sm:$0xff] %v761
            %772 = vst [vmem:[%s752] sm:$0xff] %v764
            %773 = vst [vmem:[%s753] sm:$0xff] %v767
            %774 = vst [vmem:[%s754] sm:$0xff] %v770
            %s775 = smov [#allocation12]
            %s776 = scalar_lea.vmem %s775, 8
            %s777 = smov [#allocation13]
            %s778 = scalar_lea.vmem %s777, 8
            %s779 = smov [#allocation14]
            %s780 = scalar_lea.vmem %s779, 8
            %s781 = smov [#allocation15]
            %s782 = scalar_lea.vmem %s781, 8
            %v783 = vld [vmem:[%s776] sm:$0x3]
            %v784 = vld [vmem:[%s778] sm:$0x3]
            %v785 = vld [vmem:[%s780] sm:$0x3]
            %v786 = vld [vmem:[%s782] sm:$0x3]
            %v787 = vmul.f32 %v748, %v783
            %v788 = vmul.f32 %v750, %v784
            %v789 = vsub.f32 %v787, %v788
            %v790 = vmul.f32 %v750, %v783
            %v791 = vmul.f32 %v748, %v784
            %v792 = vadd.f32 %v790, %v791
            %v793 = vmul.f32 %v748, %v785
            %v794 = vmul.f32 %v750, %v786
            %v795 = vsub.f32 %v793, %v794
            %v796 = vmul.f32 %v750, %v785
            %v797 = vmul.f32 %v748, %v786
            %v798 = vadd.f32 %v796, %v797
            %799 = vst [vmem:[%s776] sm:$0x3] %v789
            %800 = vst [vmem:[%s778] sm:$0x3] %v792
            %801 = vst [vmem:[%s780] sm:$0x3] %v795
            %802 = vst [vmem:[%s782] sm:$0x3] %v798
            %s803 = smov [#allocation12]
            %s804 = smov [#allocation19]
            %v805 = vlaneseq
            %v806 = vand.u32 %v805, 127
            %v807 = vmov %v806
            %v808 = vlaneseq
            %v809 = vshrl.u32 %v808, 7
            %v810 = vmov %v809
            %v811 = vld [vmem:[%s804] ss:$0 sm:$0xff]
            %v812 = vld [vmem:[%s803] sm:$0xff]
            %vm815 = vcmp.eq.s32.totalorder %v810, %v807
            %v816 = vsel %vm815, %v811, %v812
            %817 = vst [vmem:[%s803] sm:$0xff] %v816
            %v818 = vld [vmem:[%s804] ss:$0 sm:$0xff]
            %s819 = scalar_lea.vmem %s803, 8
            %v820 = vld [vmem:[%s819] sm:$0x3]
            %v822 = vadd.s32 %v810, 8
            %vm823 = vcmp.eq.s32.totalorder %v822, %v807
            %v824 = vsel %vm823, %v818, %v820
            %825 = vst [vmem:[%s819] sm:$0x3] %v824
            %s826 = smov [#allocation13]
            %v827 = vlaneseq
            %v828 = vand.u32 %v827, 127
            %v829 = vmov %v828
            %v830 = vlaneseq
            %v831 = vshrl.u32 %v830, 7
            %v832 = vmov %v831
            %v833 = vld [vmem:[%s826] sm:$0xff]
            %vm836 = vcmp.eq.s32.totalorder %v832, %v829
            %v837 = vsel %vm836, 0.0, %v833
            %838 = vst [vmem:[%s826] sm:$0xff] %v837
            %s839 = scalar_lea.vmem %s826, 8
            %v840 = vld [vmem:[%s839] sm:$0x3]
            %v842 = vadd.s32 %v832, 8
            %vm843 = vcmp.eq.s32.totalorder %v842, %v829
            %v844 = vsel %vm843, 0.0, %v840
            %845 = vst [vmem:[%s839] sm:$0x3] %v844
            %s846 = smov [#allocation14]
            %v847 = vlaneseq
            %v848 = vand.u32 %v847, 127
            %v849 = vmov %v848
            %v850 = vlaneseq
            %v851 = vshrl.u32 %v850, 7
            %v852 = vmov %v851
            %v853 = vld [vmem:[%s846] sm:$0xff]
            %vm856 = vcmp.eq.s32.totalorder %v852, %v849
            %v857 = vsel %vm856, 0.0, %v853
            %858 = vst [vmem:[%s846] sm:$0xff] %v857
            %s859 = scalar_lea.vmem %s846, 8
            %v860 = vld [vmem:[%s859] sm:$0x3]
            %v862 = vadd.s32 %v852, 8
            %vm863 = vcmp.eq.s32.totalorder %v862, %v849
            %v864 = vsel %vm863, 0.0, %v860
            %865 = vst [vmem:[%s859] sm:$0x3] %v864
            %s866 = smov [#allocation15]
            %s867 = smov [#allocation20]
            %v868 = vlaneseq
            %v869 = vand.u32 %v868, 127
            %v870 = vmov %v869
            %v871 = vlaneseq
            %v872 = vshrl.u32 %v871, 7
            %v873 = vmov %v872
            %v874 = vld [vmem:[%s867] ss:$0 sm:$0xff]
            %v875 = vld [vmem:[%s866] sm:$0xff]
            %vm878 = vcmp.eq.s32.totalorder %v873, %v870
            %v879 = vsel %vm878, %v874, %v875
            %880 = vst [vmem:[%s866] sm:$0xff] %v879
            %v881 = vld [vmem:[%s867] ss:$0 sm:$0xff]
            %s882 = scalar_lea.vmem %s866, 8
            %v883 = vld [vmem:[%s882] sm:$0x3]
            %v885 = vadd.s32 %v873, 8
            %vm886 = vcmp.eq.s32.totalorder %v885, %v870
            %v887 = vsel %vm886, %v881, %v883
            %888 = vst [vmem:[%s882] sm:$0x3] %v887
            %s889 = smov [#allocation12]
            %s890 = smov [#allocation13]
            %v891 = vld [vmem:[%s890] sm:$0xff]
            %892 = vrot.lane.b32.xlu0 %v891, 1
            %v893 = vpop.permute.xlu0 %892
            %v894 = vld [vmem:[%s889] sm:$0xff]
            %v895 = vld [vmem:[%s889] sm:$0xff]
            %896 = vrot.lane.b32.xlu0 %v895, 1
            %v897 = vpop.permute.xlu0 %896
            %v898 = vlaneseq
            %v899 = vand.u32 %v898, 127
            %vm900 = vcmp.eq.s32.totalorder %v899, 0
            %v901 = vsel %vm900, %v895, %v897
            %v902 = vlaneseq
            %v903 = vand.u32 %v902, 127
            %vm904 = vcmp.eq.s32.totalorder %v903, 1
            %v905 = vsel %vm904, %v893, %v901
            %v906 = vlaneseq
            %v907 = vand.u32 %v906, 127
            %vm908 = vcmp.ge.s32.totalorder %v907, 0
            %vm909 = vcmp.lt.s32.totalorder %v907, 10
            %vm910 = vmand %vm908, %vm909
            %v911 = vsel %vm910, %v905, 0.0
            %v912 = vld [vmem:[%s890] sm:$0xff]
            %913 = vrot.lane.b32.xlu0 %v912, 127
            %v914 = vpop.permute.xlu0 %913
            %v915 = vlaneseq
            %v916 = vand.u32 %v915, 127
            %vm917 = vcmp.eq.s32.totalorder %v916, 9
            %v918 = vsel %vm917, %v894, %v914
            %s919 = smov [#allocation12]
            %s920 = scalar_lea.vmem %s919, 8
            %s921 = smov [#allocation13]
            %s922 = scalar_lea.vmem %s921, 8
            %v923 = vld [vmem:[%s922] sm:$0x3]
            %924 = vrot.lane.b32.xlu0 %v923, 1
            %v925 = vpop.permute.xlu0 %924
            %v926 = vld [vmem:[%s920] sm:$0x3]
            %v927 = vld [vmem:[%s920] sm:$0x3]
            %928 = vrot.lane.b32.xlu0 %v927, 1
            %v929 = vpop.permute.xlu0 %928
            %v930 = vlaneseq
            %v931 = vand.u32 %v930, 127
            %vm932 = vcmp.eq.s32.totalorder %v931, 0
            %v933 = vsel %vm932, %v927, %v929
            %v934 = vlaneseq
            %v935 = vand.u32 %v934, 127
            %vm936 = vcmp.eq.s32.totalorder %v935, 1
            %v937 = vsel %vm936, %v925, %v933
            %v938 = vlaneseq
            %v939 = vand.u32 %v938, 127
            %vm940 = vcmp.ge.s32.totalorder %v939, 0
            %vm941 = vcmp.lt.s32.totalorder %v939, 10
            %vm942 = vmand %vm940, %vm941
            %v943 = vsel %vm942, %v937, 0.0
            %v944 = vld [vmem:[%s922] sm:$0x3]
            %945 = vrot.lane.b32.xlu0 %v944, 127
            %v946 = vpop.permute.xlu0 %945
            %v947 = vlaneseq
            %v948 = vand.u32 %v947, 127
            %vm949 = vcmp.eq.s32.totalorder %v948, 9
            %v950 = vsel %vm949, %v926, %v946
            %951 = vst [vmem:[%s889] sm:$0xff] %v911
            %952 = vst [vmem:[%s890] sm:$0xff] %v918
            %953 = vst [vmem:[%s920] sm:$0x3] %v943
            %954 = vst [vmem:[%s922] sm:$0x3] %v950
            %s955 = smov [#allocation14]
            %s956 = smov [#allocation15]
            %v957 = vld [vmem:[%s956] sm:$0xff]
            %958 = vrot.lane.b32.xlu0 %v957, 1
            %v959 = vpop.permute.xlu0 %958
            %v960 = vld [vmem:[%s955] sm:$0xff]
            %v961 = vld [vmem:[%s955] sm:$0xff]
            %962 = vrot.lane.b32.xlu0 %v961, 1
            %v963 = vpop.permute.xlu0 %962
            %v964 = vlaneseq
            %v965 = vand.u32 %v964, 127
            %vm966 = vcmp.eq.s32.totalorder %v965, 0
            %v967 = vsel %vm966, %v961, %v963
            %v968 = vlaneseq
            %v969 = vand.u32 %v968, 127
            %vm970 = vcmp.eq.s32.totalorder %v969, 1
            %v971 = vsel %vm970, %v959, %v967
            %v972 = vlaneseq
            %v973 = vand.u32 %v972, 127
            %vm974 = vcmp.ge.s32.totalorder %v973, 0
            %vm975 = vcmp.lt.s32.totalorder %v973, 10
            %vm976 = vmand %vm974, %vm975
            %v977 = vsel %vm976, %v971, 0.0
            %v978 = vld [vmem:[%s956] sm:$0xff]
            %979 = vrot.lane.b32.xlu0 %v978, 127
            %v980 = vpop.permute.xlu0 %979
            %v981 = vlaneseq
            %v982 = vand.u32 %v981, 127
            %vm983 = vcmp.eq.s32.totalorder %v982, 9
            %v984 = vsel %vm983, %v960, %v980
            %s985 = smov [#allocation14]
            %s986 = scalar_lea.vmem %s985, 8
            %s987 = smov [#allocation15]
            %s988 = scalar_lea.vmem %s987, 8
            %v989 = vld [vmem:[%s988] sm:$0x3]
            %990 = vrot.lane.b32.xlu0 %v989, 1
            %v991 = vpop.permute.xlu0 %990
            %v992 = vld [vmem:[%s986] sm:$0x3]
            %v993 = vld [vmem:[%s986] sm:$0x3]
            %994 = vrot.lane.b32.xlu0 %v993, 1
            %v995 = vpop.permute.xlu0 %994
            %v996 = vlaneseq
            %v997 = vand.u32 %v996, 127
            %vm998 = vcmp.eq.s32.totalorder %v997, 0
            %v999 = vsel %vm998, %v993, %v995
            %v1000 = vlaneseq
            %v1001 = vand.u32 %v1000, 127
            %vm1002 = vcmp.eq.s32.totalorder %v1001, 1
            %v1003 = vsel %vm1002, %v991, %v999
            %v1004 = vlaneseq
            %v1005 = vand.u32 %v1004, 127
            %vm1006 = vcmp.ge.s32.totalorder %v1005, 0
            %vm1007 = vcmp.lt.s32.totalorder %v1005, 10
            %vm1008 = vmand %vm1006, %vm1007
            %v1009 = vsel %vm1008, %v1003, 0.0
            %v1010 = vld [vmem:[%s988] sm:$0x3]
            %1011 = vrot.lane.b32.xlu0 %v1010, 127
            %v1012 = vpop.permute.xlu0 %1011
            %v1013 = vlaneseq
            %v1014 = vand.u32 %v1013, 127
            %vm1015 = vcmp.eq.s32.totalorder %v1014, 9
            %v1016 = vsel %vm1015, %v992, %v1012
            %1017 = vst [vmem:[%s955] sm:$0xff] %v977
            %1018 = vst [vmem:[%s956] sm:$0xff] %v984
            %1019 = vst [vmem:[%s986] sm:$0x3] %v1009
            %1020 = vst [vmem:[%s988] sm:$0x3] %v1016
            %s1021 = smov [#allocation12]
            %s1022 = smov [#allocation14]
            %v1023 = vld [vmem:[%s1021] ss:$0 sm:$0xff]
            %s1025 = scalar_lea.vmem %s1021, 4294967295
            %v1026 = vld [vmem:[%s1025] sm:$0xfe]
            %v1027 = vlaneseq
            %v1028 = vshrl.u32 %v1027, 7
            %vm1029 = vcmp.eq.s32.totalorder %v1028, 0
            %v1030 = vsel %vm1029, %v1023, %v1026
            %s1031 = scalar_lea.vmem %s1021, 7
            %v1032 = vld [vmem:[%s1031] ss:$0 sm:$0xff]
            %1033 = vst [vmem:[%s1021] sm:$0xff] %v1030
            %s1034 = scalar_lea.vmem %s1021, 8
            %s1036 = scalar_lea.vmem %s1034, 4294967295
            %v1037 = vld [vmem:[%s1036] sm:$0x2]
            %v1038 = vlaneseq
            %v1039 = vshrl.u32 %v1038, 7
            %vm1040 = vcmp.eq.s32.totalorder %v1039, 0
            %v1041 = vsel %vm1040, %v1032, %v1037
            %s1042 = scalar_lea.vmem %s1034, 1
            %v1043 = vld [vmem:[%s1042] ss:$0 sm:$0xff]
            %1044 = vst [vmem:[%s1034] sm:$0x3] %v1041
            %v1045 = vld [vmem:[%s1022] ss:$0 sm:$0xff]
            %s1046 = scalar_lea.vmem %s1021, 1
            %1047 = vst [vmem:[%s1046] sm:$0x1] %v1045
            %s1048 = scalar_lea.vmem %s1022, 8
            %s1049 = scalar_lea.vmem %s1048, 1
            %v1050 = vld [vmem:[%s1049] sm:$0x1]
            %v1051 = vlaneseq
            %v1052 = vshrl.u32 %v1051, 7
            %vm1053 = vcmp.eq.s32.totalorder %v1052, 1
            %v1054 = vsel %vm1053, %v1043, %v1050
            %v1055 = vld [vmem:[%s1048] ss:$0 sm:$0xff]
            %1056 = vst [vmem:[%s1048] sm:$0x3] %v1054
            %s1057 = scalar_lea.vmem %s1022, 1
            %v1058 = vld [vmem:[%s1057] sm:$0x7f]
            %v1059 = vlaneseq
            %v1060 = vshrl.u32 %v1059, 7
            %vm1061 = vcmp.eq.s32.totalorder %v1060, 7
            %v1062 = vsel %vm1061, %v1055, %v1058
            %v1063 = vld [vmem:[%s1022] ss:$0 sm:$0xff]
            %1064 = vst [vmem:[%s1022] sm:$0xff] %v1062
            %s1065 = smov [#allocation13]
            %s1066 = smov [#allocation15]
            %v1067 = vld [vmem:[%s1065] ss:$0 sm:$0xff]
            %s1069 = scalar_lea.vmem %s1065, 4294967295
            %v1070 = vld [vmem:[%s1069] sm:$0xfe]
            %v1071 = vlaneseq
            %v1072 = vshrl.u32 %v1071, 7
            %vm1073 = vcmp.eq.s32.totalorder %v1072, 0
            %v1074 = vsel %vm1073, %v1067, %v1070
            %s1075 = scalar_lea.vmem %s1065, 7
            %v1076 = vld [vmem:[%s1075] ss:$0 sm:$0xff]
            %1077 = vst [vmem:[%s1065] sm:$0xff] %v1074
            %s1078 = scalar_lea.vmem %s1065, 8
            %s1080 = scalar_lea.vmem %s1078, 4294967295
            %v1081 = vld [vmem:[%s1080] sm:$0x2]
            %v1082 = vlaneseq
            %v1083 = vshrl.u32 %v1082, 7
            %vm1084 = vcmp.eq.s32.totalorder %v1083, 0
            %v1085 = vsel %vm1084, %v1076, %v1081
            %s1086 = scalar_lea.vmem %s1078, 1
            %v1087 = vld [vmem:[%s1086] ss:$0 sm:$0xff]
            %1088 = vst [vmem:[%s1078] sm:$0x3] %v1085
            %v1089 = vld [vmem:[%s1066] ss:$0 sm:$0xff]
            %s1090 = scalar_lea.vmem %s1065, 1
            %1091 = vst [vmem:[%s1090] sm:$0x1] %v1089
            %s1092 = scalar_lea.vmem %s1066, 8
            %s1093 = scalar_lea.vmem %s1092, 1
            %v1094 = vld [vmem:[%s1093] sm:$0x1]
            %v1095 = vlaneseq
            %v1096 = vshrl.u32 %v1095, 7
            %vm1097 = vcmp.eq.s32.totalorder %v1096, 1
            %v1098 = vsel %vm1097, %v1087, %v1094
            %v1099 = vld [vmem:[%s1092] ss:$0 sm:$0xff]
            %1100 = vst [vmem:[%s1092] sm:$0x3] %v1098
            %s1101 = scalar_lea.vmem %s1066, 1
            %v1102 = vld [vmem:[%s1101] sm:$0x7f]
            %v1103 = vlaneseq
            %v1104 = vshrl.u32 %v1103, 7
            %vm1105 = vcmp.eq.s32.totalorder %v1104, 7
            %v1106 = vsel %vm1105, %v1099, %v1102
            %v1107 = vld [vmem:[%s1066] ss:$0 sm:$0xff]
            %1108 = vst [vmem:[%s1066] sm:$0xff] %v1106
            %s1109 = smov [#allocation23]
            %v1110 = vld [vmem:[%s1109] sm:$0xff]
            %s1111 = smov [#allocation24]
            %v1112 = vld [vmem:[%s1111] sm:$0xff]
            %s1113 = smov %s265
            %s1114 = smov %s269
            %s1115 = smov %s273
            %s1116 = smov %s277
            %v1117 = vld [vmem:[%s1113] sm:$0xff]
            %v1118 = vld [vmem:[%s1114] sm:$0xff]
            %v1119 = vld [vmem:[%s1115] sm:$0xff]
            %v1120 = vld [vmem:[%s1116] sm:$0xff]
            %v1121 = vmul.f32 %v1110, %v1117
            %v1122 = vmul.f32 %v1112, %v1119
            %v1123 = vsub.f32 %v1121, %v1122
            %v1124 = vmul.f32 %v1110, %v1118
            %v1125 = vmul.f32 %v1112, %v1120
            %v1126 = vsub.f32 %v1124, %v1125
            %v1127 = vmul.f32 %v1112, %v1117
            %v1128 = vmul.f32 %v1110, %v1119
            %v1129 = vadd.f32 %v1127, %v1128
            %v1130 = vmul.f32 %v1112, %v1118
            %v1131 = vmul.f32 %v1110, %v1120
            %v1132 = vadd.f32 %v1130, %v1131
            %1133 = vst [vmem:[%s1113] sm:$0xff] %v1123
            %1134 = vst [vmem:[%s1114] sm:$0xff] %v1126
            %1135 = vst [vmem:[%s1115] sm:$0xff] %v1129
            %1136 = vst [vmem:[%s1116] sm:$0xff] %v1132
            %s1137 = smov [#allocation23]
            %s1138 = scalar_lea.vmem %s1137, 8
            %v1139 = vld [vmem:[%s1138] sm:$0xff]
            %s1140 = smov [#allocation24]
            %s1141 = scalar_lea.vmem %s1140, 8
            %v1142 = vld [vmem:[%s1141] sm:$0xff]
            %s1143 = smov %s265
            %s1144 = scalar_lea.vmem %s1143, 8
            %s1145 = smov %s269
            %s1146 = scalar_lea.vmem %s1145, 8
            %s1147 = smov %s273
            %s1148 = scalar_lea.vmem %s1147, 8
            %s1149 = smov %s277
            %s1150 = scalar_lea.vmem %s1149, 8
            %v1151 = vld [vmem:[%s1144] sm:$0x3]
            %v1152 = vld [vmem:[%s1146] sm:$0x3]
            %v1153 = vld [vmem:[%s1148] sm:$0x3]
            %v1154 = vld [vmem:[%s1150] sm:$0x3]
            %v1155 = vmul.f32 %v1139, %v1151
            %v1156 = vmul.f32 %v1142, %v1153
            %v1157 = vsub.f32 %v1155, %v1156
            %v1158 = vmul.f32 %v1139, %v1152
            %v1159 = vmul.f32 %v1142, %v1154
            %v1160 = vsub.f32 %v1158, %v1159
            %v1161 = vmul.f32 %v1142, %v1151
            %v1162 = vmul.f32 %v1139, %v1153
            %v1163 = vadd.f32 %v1161, %v1162
            %v1164 = vmul.f32 %v1142, %v1152
            %v1165 = vmul.f32 %v1139, %v1154
            %v1166 = vadd.f32 %v1164, %v1165
            %1167 = vst [vmem:[%s1144] sm:$0x3] %v1157
            %1168 = vst [vmem:[%s1146] sm:$0x3] %v1160
            %1169 = vst [vmem:[%s1148] sm:$0x3] %v1163
            %1170 = vst [vmem:[%s1150] sm:$0x3] %v1166
            %s1171 = smov %s265
            %s1172 = smov %s273
            %v1173 = vld [vmem:[%s1171] ss:$0 sm:$0xff]
            %s1175 = scalar_lea.vmem %s1171, 4294967295
            %v1176 = vld [vmem:[%s1175] sm:$0xfe]
            %v1177 = vlaneseq
            %v1178 = vshrl.u32 %v1177, 7
            %vm1179 = vcmp.eq.s32.totalorder %v1178, 0
            %v1180 = vsel %vm1179, %v1173, %v1176
            %s1181 = scalar_lea.vmem %s1171, 7
            %v1182 = vld [vmem:[%s1181] ss:$0 sm:$0xff]
            %1183 = vst [vmem:[%s1171] sm:$0xff] %v1180
            %s1184 = scalar_lea.vmem %s1171, 8
            %s1186 = scalar_lea.vmem %s1184, 4294967295
            %v1187 = vld [vmem:[%s1186] sm:$0x2]
            %v1188 = vlaneseq
            %v1189 = vshrl.u32 %v1188, 7
            %vm1190 = vcmp.eq.s32.totalorder %v1189, 0
            %v1191 = vsel %vm1190, %v1182, %v1187
            %s1192 = scalar_lea.vmem %s1184, 1
            %v1193 = vld [vmem:[%s1192] ss:$0 sm:$0xff]
            %1194 = vst [vmem:[%s1184] sm:$0x3] %v1191
            %v1195 = vld [vmem:[%s1172] ss:$0 sm:$0xff]
            %s1196 = scalar_lea.vmem %s1171, 1
            %1197 = vst [vmem:[%s1196] sm:$0x1] %v1195
            %s1198 = scalar_lea.vmem %s1172, 8
            %s1199 = scalar_lea.vmem %s1198, 1
            %v1200 = vld [vmem:[%s1199] sm:$0x1]
            %v1201 = vlaneseq
            %v1202 = vshrl.u32 %v1201, 7
            %vm1203 = vcmp.eq.s32.totalorder %v1202, 1
            %v1204 = vsel %vm1203, %v1193, %v1200
            %v1205 = vld [vmem:[%s1198] ss:$0 sm:$0xff]
            %1206 = vst [vmem:[%s1198] sm:$0x3] %v1204
            %s1207 = scalar_lea.vmem %s1172, 1
            %v1208 = vld [vmem:[%s1207] sm:$0x7f]
            %v1209 = vlaneseq
            %v1210 = vshrl.u32 %v1209, 7
            %vm1211 = vcmp.eq.s32.totalorder %v1210, 7
            %v1212 = vsel %vm1211, %v1205, %v1208
            %v1213 = vld [vmem:[%s1172] ss:$0 sm:$0xff]
            %1214 = vst [vmem:[%s1172] sm:$0xff] %v1212
            %s1215 = smov %s269
            %s1216 = smov %s277
            %v1217 = vld [vmem:[%s1215] ss:$0 sm:$0xff]
            %s1219 = scalar_lea.vmem %s1215, 4294967295
            %v1220 = vld [vmem:[%s1219] sm:$0xfe]
            %v1221 = vlaneseq
            %v1222 = vshrl.u32 %v1221, 7
            %vm1223 = vcmp.eq.s32.totalorder %v1222, 0
            %v1224 = vsel %vm1223, %v1217, %v1220
            %s1225 = scalar_lea.vmem %s1215, 7
            %v1226 = vld [vmem:[%s1225] ss:$0 sm:$0xff]
            %1227 = vst [vmem:[%s1215] sm:$0xff] %v1224
            %s1228 = scalar_lea.vmem %s1215, 8
            %s1230 = scalar_lea.vmem %s1228, 4294967295
            %v1231 = vld [vmem:[%s1230] sm:$0x2]
            %v1232 = vlaneseq
            %v1233 = vshrl.u32 %v1232, 7
            %vm1234 = vcmp.eq.s32.totalorder %v1233, 0
            %v1235 = vsel %vm1234, %v1226, %v1231
            %s1236 = scalar_lea.vmem %s1228, 1
            %v1237 = vld [vmem:[%s1236] ss:$0 sm:$0xff]
            %1238 = vst [vmem:[%s1228] sm:$0x3] %v1235
            %v1239 = vld [vmem:[%s1216] ss:$0 sm:$0xff]
            %s1240 = scalar_lea.vmem %s1215, 1
            %1241 = vst [vmem:[%s1240] sm:$0x1] %v1239
            %s1242 = scalar_lea.vmem %s1216, 8
            %s1243 = scalar_lea.vmem %s1242, 1
            %v1244 = vld [vmem:[%s1243] sm:$0x1]
            %v1245 = vlaneseq
            %v1246 = vshrl.u32 %v1245, 7
            %vm1247 = vcmp.eq.s32.totalorder %v1246, 1
            %v1248 = vsel %vm1247, %v1237, %v1244
            %v1249 = vld [vmem:[%s1242] ss:$0 sm:$0xff]
            %1250 = vst [vmem:[%s1242] sm:$0x3] %v1248
            %s1251 = scalar_lea.vmem %s1216, 1
            %v1252 = vld [vmem:[%s1251] sm:$0x7f]
            %v1253 = vlaneseq
            %v1254 = vshrl.u32 %v1253, 7
            %vm1255 = vcmp.eq.s32.totalorder %v1254, 7
            %v1256 = vsel %vm1255, %v1249, %v1252
            %v1257 = vld [vmem:[%s1216] ss:$0 sm:$0xff]
            %1258 = vst [vmem:[%s1216] sm:$0xff] %v1256
          $region108: #{custom-call.11} parent=100 // loop_footer
            %s495 = sadd.s32 1, %s491
          $region109: #{custom-call.11} parent=100 // loop_footer_branch
            %490 = sbr.rel target = $region105
          $region110: #{custom-call.11} parent=100 // loop_exit
            _
          %s1259 = sadd.s32 %s361, 1
        $region101: #{custom-call.11} parent=95 // loop_footer
          _
        $region102: #{custom-call.11} parent=95 // loop_footer_branch
          %360 = sbr.rel target = $region98
        $region103: #{custom-call.11} parent=95 // loop_exit
          _
        %s1262 = sand.u32 %s22, 7
        %s1263 = scalar_lea.vmem [#allocation4], %s1262
        %s1264 = sand.u32 %s22, 7
        %s1265 = scalar_lea.vmem [#allocation6], %s1264
        %s1266 = smov [#allocation12]
        %s1267 = smov %s1263
        %v1268 = vlaneseq
        %v1269 = vand.u32 %v1268, 127
        %v1270 = vmov %v1269
        %v1271 = vlaneseq
        %v1272 = vshrl.u32 %v1271, 7
        %v1273 = vmov %v1272
        %v1274 = vld [vmem:[%s1266] sm:$0xff]
        %vm1277 = vcmp.eq.s32.totalorder %v1273, %v1270
        %v1278 = vsel %vm1277, %v1274, 0.0
        %s1279 = scalar_lea.vmem %s1266, 8
        %v1280 = vld [vmem:[%s1279] sm:$0x3]
        %v1282 = vadd.s32 %v1273, 8
        %vm1283 = vcmp.eq.s32.totalorder %v1282, %v1270
        %v1284 = vsel %vm1283, %v1280, %v1278
        %v1285 = vrot.slane %v1284, 4
        %v1286 = vadd.f32 %v1284, %v1285
        %v1287 = vrot.slane %v1286, 2
        %v1288 = vadd.f32 %v1286, %v1287
        %v1289 = vrot.slane %v1288, 1
        %v1290 = vadd.f32 %v1288, %v1289
        %1291 = vst [vmem:[%s1267] sm:$0x1] %v1290
        %s1292 = smov [#allocation15]
        %s1293 = smov %s1265
        %v1294 = vlaneseq
        %v1295 = vand.u32 %v1294, 127
        %v1296 = vmov %v1295
        %v1297 = vlaneseq
        %v1298 = vshrl.u32 %v1297, 7
        %v1299 = vmov %v1298
        %v1300 = vld [vmem:[%s1292] sm:$0xff]
        %vm1303 = vcmp.eq.s32.totalorder %v1299, %v1296
        %v1304 = vsel %vm1303, %v1300, 0.0
        %s1305 = scalar_lea.vmem %s1292, 8
        %v1306 = vld [vmem:[%s1305] sm:$0x3]
        %v1308 = vadd.s32 %v1299, 8
        %vm1309 = vcmp.eq.s32.totalorder %v1308, %v1296
        %v1310 = vsel %vm1309, %v1306, %v1304
        %v1311 = vrot.slane %v1310, 4
        %v1312 = vadd.f32 %v1310, %v1311
        %v1313 = vrot.slane %v1312, 2
        %v1314 = vadd.f32 %v1312, %v1313
        %v1315 = vrot.slane %v1314, 1
        %v1316 = vadd.f32 %v1314, %v1315
        %1317 = vst [vmem:[%s1293] sm:$0x1] %v1316
        %s1319 = sshllo.u32 0, 2
        %v1321 = vld [vmem:[#allocation4] sm:%s1319]
        %s1322 = sshllo.u32 0, 2
        %1323 = vst [vmem:[%s255] sm:%s1322] %v1321
        %s1325 = sshllo.u32 0, 2
        %v1327 = vld [vmem:[#allocation6] sm:%s1325]
        %s1328 = sshllo.u32 0, 2
        %1329 = vst [vmem:[%s261] sm:%s1328] %v1327
        %s1330 = sand.u32 %s41, 1
        %s1331 = sand.u32 %s41, 1
        %s1332 = smul.addr %s1331, 2
        %s1333 = scalar_lea.vmem [#allocation5], %s1332
        %s1334 = sand.u32 %s71, 1
        %s1335 = sand.u32 %s71, 1
        %s1336 = smul.addr %s1335, 2
        %s1337 = scalar_lea.vmem [#allocation7], %s1336
        %s1338 = sand.u32 %s17, 1
        %s1339 = sand.u32 %s17, 1
        %s1340 = smul.addr %s1339, 16
        %s1341 = scalar_lea.vmem [#allocation8], %s1340
        %s1342 = sand.u32 %s17, 1
        %s1343 = sand.u32 %s17, 1
        %s1344 = smul.addr %s1343, 16
        %s1345 = scalar_lea.vmem [#allocation9], %s1344
        %s1346 = sand.u32 %s17, 1
        %s1347 = sand.u32 %s17, 1
        %s1348 = smul.addr %s1347, 16
        %s1349 = scalar_lea.vmem [#allocation10], %s1348
        %s1350 = sand.u32 %s17, 1
        %s1351 = sand.u32 %s17, 1
        %s1352 = smul.addr %s1351, 16
        %s1353 = scalar_lea.vmem [#allocation11], %s1352
        // Predicated region
        $region111: #{custom-call.11} parent=95 // pred_check
          %p1354 = pneg %p51
        $region112: #{custom-call.11} parent=95 // pred_check_branch
          %1356 = sbr.rel (%p1354) target = $region114
        $region113: #{custom-call.11} parent=95 // pred_region
          %s1357 = sshrl.u32 %s22, 3
          %s1358 = sadd.s32 %s1357, %s21
          %s1359 = smul.addr %s1358, 2
          %s1360 = scalar_lea.vmem %s4, %s1359
          // Predicated region
          $region115: #{custom-call.11} parent=113 // pred_check
            _
          $region116: #{custom-call.11} parent=113 // pred_check_branch
            %1362 = sbr.rel (0) target = $region118
          $region117: #{custom-call.11} parent=113 // pred_region
            // Predicated region
            $region119: #{custom-call.11} parent=117 // pred_check
              _
            $region120: #{custom-call.11} parent=117 // pred_check_branch
              %1364 = sbr.rel target = $region122
            $region121: #{custom-call.11} parent=117 // pred_region
              // Predicated region
              $region134: #{custom-call.11} parent=121 // pred_check
                _
              $region135: #{custom-call.11} parent=121 // pred_check_branch
                %1379 = sbr.rel (0) target = $region137
              $region136: #{custom-call.11} parent=121 // pred_region
                loop: start=0, step=1, limit=1
                $region138: #{custom-call.11} parent=136 // loop_pre_header
                  _
                $region139: #{custom-call.11} parent=136 // loop_header
                  %s1382 = sphi 0, %s1386
                  %p1383 = scmp.ge.s32.totalorder %s1382, 1
                  %s1387 = sphi %s1333, %s1333
                  %s1388 = sphi %s1360, %s1360
                $region140: #{custom-call.11} parent=136 // loop_header_branch
                  %1385 = sbr.rel (%p1383) target = $region144
                $region141: #{custom-call.11} parent=136 // loop_body
                  %v1389 = vld [vmem:[%s1387] sm:$0x3]
                  %1390 = vst [vmem:[%s1388] sm:$0x3] %v1389
                $region142: #{custom-call.11} parent=136 // loop_footer
                  %s1386 = sadd.s32 1, %s1382
                $region143: #{custom-call.11} parent=136 // loop_footer_branch
                  %1381 = sbr.rel target = $region139
                $region144: #{custom-call.11} parent=136 // loop_exit
                  _
              $region137: #{custom-call.11} parent=121 // pred_fallthru
                _
            $region122: #{custom-call.11} parent=117 // pred_fallthru
              _
            // Predicated region
            $region123: #{custom-call.11} parent=117 // pred_check
              _
            $region124: #{custom-call.11} parent=117 // pred_check_branch
              %1366 = sbr.rel (0) target = $region126
            $region125: #{custom-call.11} parent=117 // pred_region
              loop: start=0, step=1, limit=1
              $region127: #{custom-call.11} parent=125 // loop_pre_header
                _
              $region128: #{custom-call.11} parent=125 // loop_header
                %s1369 = sphi 0, %s1373
                %p1370 = scmp.ge.s32.totalorder %s1369, 1
                %s1374 = sphi %s1333, %s1333
                %s1375 = sphi %s1360, %s1360
              $region129: #{custom-call.11} parent=125 // loop_header_branch
                %1372 = sbr.rel (%p1370) target = $region133
              $region130: #{custom-call.11} parent=125 // loop_body
                %v1376 = vld [vmem:[%s1374] sm:$0x3]
                %1377 = vst [vmem:[%s1375] sm:$0x3] %v1376
              $region131: #{custom-call.11} parent=125 // loop_footer
                %s1373 = sadd.s32 1, %s1369
              $region132: #{custom-call.11} parent=125 // loop_footer_branch
                %1368 = sbr.rel target = $region128
              $region133: #{custom-call.11} parent=125 // loop_exit
                _
            $region126: #{custom-call.11} parent=117 // pred_fallthru
              _
          $region118: #{custom-call.11} parent=113 // pred_fallthru
            _
          %1391 = vnop
        $region114: #{custom-call.11} parent=95 // pred_fallthru
          _
        // Predicated region
        $region145: #{custom-call.11} parent=95 // pred_check
          %p1392 = pneg %p81
        $region146: #{custom-call.11} parent=95 // pred_check_branch
          %1394 = sbr.rel (%p1392) target = $region148
        $region147: #{custom-call.11} parent=95 // pred_region
          %s1395 = sshrl.u32 %s22, 3
          %s1396 = sadd.s32 %s1395, %s21
          %s1397 = smul.addr %s1396, 2
          %s1398 = scalar_lea.vmem %s5, %s1397
          // Predicated region
          $region149: #{custom-call.11} parent=147 // pred_check
            _
          $region150: #{custom-call.11} parent=147 // pred_check_branch
            %1400 = sbr.rel (0) target = $region152
          $region151: #{custom-call.11} parent=147 // pred_region
            // Predicated region
            $region153: #{custom-call.11} parent=151 // pred_check
              _
            $region154: #{custom-call.11} parent=151 // pred_check_branch
              %1402 = sbr.rel target = $region156
            $region155: #{custom-call.11} parent=151 // pred_region
              // Predicated region
              $region168: #{custom-call.11} parent=155 // pred_check
                _
              $region169: #{custom-call.11} parent=155 // pred_check_branch
                %1417 = sbr.rel (0) target = $region171
              $region170: #{custom-call.11} parent=155 // pred_region
                loop: start=0, step=1, limit=1
                $region172: #{custom-call.11} parent=170 // loop_pre_header
                  _
                $region173: #{custom-call.11} parent=170 // loop_header
                  %s1420 = sphi 0, %s1424
                  %p1421 = scmp.ge.s32.totalorder %s1420, 1
                  %s1425 = sphi %s1337, %s1337
                  %s1426 = sphi %s1398, %s1398
                $region174: #{custom-call.11} parent=170 // loop_header_branch
                  %1423 = sbr.rel (%p1421) target = $region178
                $region175: #{custom-call.11} parent=170 // loop_body
                  %v1427 = vld [vmem:[%s1425] sm:$0x3]
                  %1428 = vst [vmem:[%s1426] sm:$0x3] %v1427
                $region176: #{custom-call.11} parent=170 // loop_footer
                  %s1424 = sadd.s32 1, %s1420
                $region177: #{custom-call.11} parent=170 // loop_footer_branch
                  %1419 = sbr.rel target = $region173
                $region178: #{custom-call.11} parent=170 // loop_exit
                  _
              $region171: #{custom-call.11} parent=155 // pred_fallthru
                _
            $region156: #{custom-call.11} parent=151 // pred_fallthru
              _
            // Predicated region
            $region157: #{custom-call.11} parent=151 // pred_check
              _
            $region158: #{custom-call.11} parent=151 // pred_check_branch
              %1404 = sbr.rel (0) target = $region160
            $region159: #{custom-call.11} parent=151 // pred_region
              loop: start=0, step=1, limit=1
              $region161: #{custom-call.11} parent=159 // loop_pre_header
                _
              $region162: #{custom-call.11} parent=159 // loop_header
                %s1407 = sphi 0, %s1411
                %p1408 = scmp.ge.s32.totalorder %s1407, 1
                %s1412 = sphi %s1337, %s1337
                %s1413 = sphi %s1398, %s1398
              $region163: #{custom-call.11} parent=159 // loop_header_branch
                %1410 = sbr.rel (%p1408) target = $region167
              $region164: #{custom-call.11} parent=159 // loop_body
                %v1414 = vld [vmem:[%s1412] sm:$0x3]
                %1415 = vst [vmem:[%s1413] sm:$0x3] %v1414
              $region165: #{custom-call.11} parent=159 // loop_footer
                %s1411 = sadd.s32 1, %s1407
              $region166: #{custom-call.11} parent=159 // loop_footer_branch
                %1406 = sbr.rel target = $region162
              $region167: #{custom-call.11} parent=159 // loop_exit
                _
            $region160: #{custom-call.11} parent=151 // pred_fallthru
              _
          $region152: #{custom-call.11} parent=147 // pred_fallthru
            _
          %1429 = vnop
        $region148: #{custom-call.11} parent=95 // pred_fallthru
          _
        %s1430 = smul.addr %s21, 2
        %s1431 = sadd.s32 %s22, %s1430
        %s1432 = smul.addr %s1431, 16
        %s1433 = scalar_lea.vmem %s6, %s1432
        // Predicated region
        $region179: #{custom-call.11} parent=95 // pred_check
          _
        $region180: #{custom-call.11} parent=95 // pred_check_branch
          %1435 = sbr.rel (0) target = $region182
        $region181: #{custom-call.11} parent=95 // pred_region
          // Predicated region
          $region183: #{custom-call.11} parent=181 // pred_check
            _
          $region184: #{custom-call.11} parent=181 // pred_check_branch
            %1437 = sbr.rel (0) target = $region186
          $region185: #{custom-call.11} parent=181 // pred_region
            loop: start=0, step=1, limit=1
            $region187: #{custom-call.11} parent=185 // loop_pre_header
              _
            $region188: #{custom-call.11} parent=185 // loop_header
              %s1439 = sphi 0, %s1443
              %p1440 = scmp.ge.s32.totalorder %s1439, 1
              %s1444 = sphi %s1341, %s1341
              %s1445 = sphi %s1433, %s1433
            $region189: #{custom-call.11} parent=185 // loop_header_branch
              %1442 = sbr.rel (%p1440) target = $region193
            $region190: #{custom-call.11} parent=185 // loop_body
              %v1446 = vld [vmem:[%s1444] sm:$0xff]
              %1447 = vst [vmem:[%s1445] sm:$0xff] %v1446
              %v1448 = vld [vmem:[%s1444 + $0x8] sm:$0xff]
              %1449 = vst [vmem:[%s1445 + $0x8] sm:$0xff] %v1448
            $region191: #{custom-call.11} parent=185 // loop_footer
              %s1443 = sadd.s32 1, %s1439
            $region192: #{custom-call.11} parent=185 // loop_footer_branch
              %1438 = sbr.rel target = $region188
            $region193: #{custom-call.11} parent=185 // loop_exit
              _
          $region186: #{custom-call.11} parent=181 // pred_fallthru
            _
          // Predicated region
          $region194: #{custom-call.11} parent=181 // pred_check
            _
          $region195: #{custom-call.11} parent=181 // pred_check_branch
            %1451 = sbr.rel target = $region197
          $region196: #{custom-call.11} parent=181 // pred_region
            _
          $region197: #{custom-call.11} parent=181 // pred_fallthru
            _
        $region182: #{custom-call.11} parent=95 // pred_fallthru
          _
        %1452 = vnop
        %s1453 = smul.addr %s21, 2
        %s1454 = sadd.s32 %s22, %s1453
        %s1455 = smul.addr %s1454, 16
        %s1456 = scalar_lea.vmem %s7, %s1455
        // Predicated region
        $region198: #{custom-call.11} parent=95 // pred_check
          _
        $region199: #{custom-call.11} parent=95 // pred_check_branch
          %1458 = sbr.rel (0) target = $region201
        $region200: #{custom-call.11} parent=95 // pred_region
          // Predicated region
          $region202: #{custom-call.11} parent=200 // pred_check
            _
          $region203: #{custom-call.11} parent=200 // pred_check_branch
            %1460 = sbr.rel (0) target = $region205
          $region204: #{custom-call.11} parent=200 // pred_region
            loop: start=0, step=1, limit=1
            $region206: #{custom-call.11} parent=204 // loop_pre_header
              _
            $region207: #{custom-call.11} parent=204 // loop_header
              %s1462 = sphi 0, %s1466
              %p1463 = scmp.ge.s32.totalorder %s1462, 1
              %s1467 = sphi %s1345, %s1345
              %s1468 = sphi %s1456, %s1456
            $region208: #{custom-call.11} parent=204 // loop_header_branch
              %1465 = sbr.rel (%p1463) target = $region212
            $region209: #{custom-call.11} parent=204 // loop_body
              %v1469 = vld [vmem:[%s1467] sm:$0xff]
              %1470 = vst [vmem:[%s1468] sm:$0xff] %v1469
              %v1471 = vld [vmem:[%s1467 + $0x8] sm:$0xff]
              %1472 = vst [vmem:[%s1468 + $0x8] sm:$0xff] %v1471
            $region210: #{custom-call.11} parent=204 // loop_footer
              %s1466 = sadd.s32 1, %s1462
            $region211: #{custom-call.11} parent=204 // loop_footer_branch
              %1461 = sbr.rel target = $region207
            $region212: #{custom-call.11} parent=204 // loop_exit
              _
          $region205: #{custom-call.11} parent=200 // pred_fallthru
            _
          // Predicated region
          $region213: #{custom-call.11} parent=200 // pred_check
            _
          $region214: #{custom-call.11} parent=200 // pred_check_branch
            %1474 = sbr.rel target = $region216
          $region215: #{custom-call.11} parent=200 // pred_region
            _
          $region216: #{custom-call.11} parent=200 // pred_fallthru
            _
        $region201: #{custom-call.11} parent=95 // pred_fallthru
          _
        %1475 = vnop
        %s1476 = smul.addr %s21, 2
        %s1477 = sadd.s32 %s22, %s1476
        %s1478 = smul.addr %s1477, 16
        %s1479 = scalar_lea.vmem %s8, %s1478
        // Predicated region
        $region217: #{custom-call.11} parent=95 // pred_check
          _
        $region218: #{custom-call.11} parent=95 // pred_check_branch
          %1481 = sbr.rel (0) target = $region220
        $region219: #{custom-call.11} parent=95 // pred_region
          // Predicated region
          $region221: #{custom-call.11} parent=219 // pred_check
            _
          $region222: #{custom-call.11} parent=219 // pred_check_branch
            %1483 = sbr.rel (0) target = $region224
          $region223: #{custom-call.11} parent=219 // pred_region
            loop: start=0, step=1, limit=1
            $region225: #{custom-call.11} parent=223 // loop_pre_header
              _
            $region226: #{custom-call.11} parent=223 // loop_header
              %s1485 = sphi 0, %s1489
              %p1486 = scmp.ge.s32.totalorder %s1485, 1
              %s1490 = sphi %s1349, %s1349
              %s1491 = sphi %s1479, %s1479
            $region227: #{custom-call.11} parent=223 // loop_header_branch
              %1488 = sbr.rel (%p1486) target = $region231
            $region228: #{custom-call.11} parent=223 // loop_body
              %v1492 = vld [vmem:[%s1490] sm:$0xff]
              %1493 = vst [vmem:[%s1491] sm:$0xff] %v1492
              %v1494 = vld [vmem:[%s1490 + $0x8] sm:$0xff]
              %1495 = vst [vmem:[%s1491 + $0x8] sm:$0xff] %v1494
            $region229: #{custom-call.11} parent=223 // loop_footer
              %s1489 = sadd.s32 1, %s1485
            $region230: #{custom-call.11} parent=223 // loop_footer_branch
              %1484 = sbr.rel target = $region226
            $region231: #{custom-call.11} parent=223 // loop_exit
              _
          $region224: #{custom-call.11} parent=219 // pred_fallthru
            _
          // Predicated region
          $region232: #{custom-call.11} parent=219 // pred_check
            _
          $region233: #{custom-call.11} parent=219 // pred_check_branch
            %1497 = sbr.rel target = $region235
          $region234: #{custom-call.11} parent=219 // pred_region
            _
          $region235: #{custom-call.11} parent=219 // pred_fallthru
            _
        $region220: #{custom-call.11} parent=95 // pred_fallthru
          _
        %1498 = vnop
        %s1499 = smul.addr %s21, 2
        %s1500 = sadd.s32 %s22, %s1499
        %s1501 = smul.addr %s1500, 16
        %s1502 = scalar_lea.vmem %s9, %s1501
        // Predicated region
        $region236: #{custom-call.11} parent=95 // pred_check
          _
        $region237: #{custom-call.11} parent=95 // pred_check_branch
          %1504 = sbr.rel (0) target = $region239
        $region238: #{custom-call.11} parent=95 // pred_region
          // Predicated region
          $region240: #{custom-call.11} parent=238 // pred_check
            _
          $region241: #{custom-call.11} parent=238 // pred_check_branch
            %1506 = sbr.rel (0) target = $region243
          $region242: #{custom-call.11} parent=238 // pred_region
            loop: start=0, step=1, limit=1
            $region244: #{custom-call.11} parent=242 // loop_pre_header
              _
            $region245: #{custom-call.11} parent=242 // loop_header
              %s1508 = sphi 0, %s1512
              %p1509 = scmp.ge.s32.totalorder %s1508, 1
              %s1513 = sphi %s1353, %s1353
              %s1514 = sphi %s1502, %s1502
            $region246: #{custom-call.11} parent=242 // loop_header_branch
              %1511 = sbr.rel (%p1509) target = $region250
            $region247: #{custom-call.11} parent=242 // loop_body
              %v1515 = vld [vmem:[%s1513] sm:$0xff]
              %1516 = vst [vmem:[%s1514] sm:$0xff] %v1515
              %v1517 = vld [vmem:[%s1513 + $0x8] sm:$0xff]
              %1518 = vst [vmem:[%s1514 + $0x8] sm:$0xff] %v1517
            $region248: #{custom-call.11} parent=242 // loop_footer
              %s1512 = sadd.s32 1, %s1508
            $region249: #{custom-call.11} parent=242 // loop_footer_branch
              %1507 = sbr.rel target = $region245
            $region250: #{custom-call.11} parent=242 // loop_exit
              _
          $region243: #{custom-call.11} parent=238 // pred_fallthru
            _
          // Predicated region
          $region251: #{custom-call.11} parent=238 // pred_check
            _
          $region252: #{custom-call.11} parent=238 // pred_check_branch
            %1520 = sbr.rel target = $region254
          $region253: #{custom-call.11} parent=238 // pred_region
            _
          $region254: #{custom-call.11} parent=238 // pred_fallthru
            _
        $region239: #{custom-call.11} parent=95 // pred_fallthru
          _
        %1521 = vnop
      $region96: #{custom-call.11} parent=5 // pred_fallthru
        _
      %p1522 = scmp.le.s32.totalorder 2, %s12
      // Predicated region
      $region255: #{custom-call.11} parent=5 // pred_check
        %p1523 = pneg %p1522
      $region256: #{custom-call.11} parent=5 // pred_check_branch
        %1525 = sbr.rel (%p1523) target = $region258
      $region257: #{custom-call.11} parent=5 // pred_region
        %s1526 = ssub.s32 %s12, 2
        // Predicated region
        $region259: #{custom-call.11} parent=257 // pred_check
          %p1527 = pneg %p57
        $region260: #{custom-call.11} parent=257 // pred_check_branch
          %1529 = sbr.rel (%p1527) target = $region262
        $region261: #{custom-call.11} parent=257 // pred_region
          %s1530 = sand.u32 %s42, 1
          %s1531 = sand.u32 %s42, 1
          %s1532 = smul.addr %s1531, 2
          %s1533 = scalar_lea.vmem [#allocation5], %s1532
        $region262: #{custom-call.11} parent=257 // pred_fallthru
          _
        // Predicated region
        $region263: #{custom-call.11} parent=257 // pred_check
          %p1534 = pneg %p87
        $region264: #{custom-call.11} parent=257 // pred_check_branch
          %1536 = sbr.rel (%p1534) target = $region266
        $region265: #{custom-call.11} parent=257 // pred_region
          %s1537 = sand.u32 %s72, 1
          %s1538 = sand.u32 %s72, 1
          %s1539 = smul.addr %s1538, 2
          %s1540 = scalar_lea.vmem [#allocation7], %s1539
        $region266: #{custom-call.11} parent=257 // pred_fallthru
          _
        %s1541 = sand.u32 %s18, 1
        %s1542 = sand.u32 %s18, 1
        %s1543 = smul.addr %s1542, 16
        %s1544 = scalar_lea.vmem [#allocation8], %s1543
        %s1545 = sand.u32 %s18, 1
        %s1546 = sand.u32 %s18, 1
        %s1547 = smul.addr %s1546, 16
        %s1548 = scalar_lea.vmem [#allocation9], %s1547
        %s1549 = sand.u32 %s18, 1
        %s1550 = sand.u32 %s18, 1
        %s1551 = smul.addr %s1550, 16
        %s1552 = scalar_lea.vmem [#allocation10], %s1551
        %s1553 = sand.u32 %s18, 1
        %s1554 = sand.u32 %s18, 1
        %s1555 = smul.addr %s1554, 16
        %s1556 = scalar_lea.vmem [#allocation11], %s1555
      $region258: #{custom-call.11} parent=5 // pred_fallthru
        _
    $region6: #{custom-call.11} parent=1 // loop_footer
      %s16 = sadd.s32 1, %s12
    $region7: #{custom-call.11} parent=1 // loop_footer_branch
      %11 = sbr.rel target = $region3
    $region8: #{custom-call.11} parent=1 // loop_exit
      _

// kernel: _matt_forward.1
$region0: #{_matt_forward.1}
  #allocation0 [shape = 'u32[]', space=smem, size = 0x4, offset = 0x4, fixed_abs, tag = 'smem constant byte address 0x4 - core index']
  #allocation1 [shape = 'u32[144,128]{1,0:T(1,128)}', space=vmem, size = 0x12000, scoped, tag = 'internal scratch']
  %s0 = inlined_call_operand.vmem [shape: f32[34,48], index: 0, kind: input, shape index: {}]
  %s1 = inlined_call_operand.vmem [shape: f32[376,256], index: 1, kind: input, shape index: {}]
  %s2 = inlined_call_operand.vmem [shape: f32[60,256], index: 2, kind: output, shape index: {}]
  %s3 = sld [smem:[#allocation0]]
  $region18: #{_matt_forward.1} parent=0
    _
  %s5 = ssub.s32 1, %s3
  %s6 = scalar_select 0, %s5, %s3
  // Predicated region
  $region2: #{_matt_forward.1} parent=0 // pred_check
    _
  $region3: #{_matt_forward.1} parent=0 // pred_check_branch
    %8 = sbr.rel (0) target = $region5
  $region4: #{_matt_forward.1} parent=0 // pred_region
    _
  $region5: #{_matt_forward.1} parent=0 // pred_fallthru
    _
  // Predicated region
  $region6: #{_matt_forward.1} parent=0 // pred_check
    _
  $region7: #{_matt_forward.1} parent=0 // pred_check_branch
    %10 = sbr.rel (0) target = $region9
  $region8: #{_matt_forward.1} parent=0 // pred_region
    _
  $region9: #{_matt_forward.1} parent=0 // pred_fallthru
    _
  %v11 = vld [vmem:[%s1] sm:$0xff]
  %v12 = vld [vmem:[%s1 + $0x10] sm:$0xff]
  %v13 = vld [vmem:[%s1 + $0x20] sm:$0xff]
  %v14 = vld [vmem:[%s1 + $0x30] sm:$0xff]
  %v15 = vld [vmem:[%s1 + $0x40] sm:$0xff]
  %v16 = vld [vmem:[%s1 + $0x50] sm:$0xff]
  %v17 = vld [vmem:[%s1 + $0x60] sm:$0xff]
  %v18 = vld [vmem:[%s1 + $0x70] sm:$0xff]
  %v19 = vld [vmem:[%s1 + $0x80] sm:$0xff]
  %v20 = vld [vmem:[%s1 + $0x90] sm:$0xff]
  %v21 = vld [vmem:[%s1 + $0xa0] sm:$0x3]
  %v22 = vld [vmem:[%s1 + $0xb0] sm:$0xff]
  %v23 = vld [vmem:[%s1 + $0xc0] sm:$0xff]
  %v24 = vld [vmem:[%s1 + $0xd0] sm:$0xff]
  %v25 = vld [vmem:[%s1 + $0xe0] sm:$0xff]
  %v26 = vld [vmem:[%s1 + $0xf0] sm:$0x3]
  %v27 = vld [vmem:[%s1 + $0x100] sm:$0xff]
  %v28 = vld [vmem:[%s1 + $0x110] sm:$0xff]
  %v29 = vld [vmem:[%s1 + $0x120] sm:$0xff]
  %v30 = vld [vmem:[%s1 + $0x130] sm:$0xff]
  %v31 = vld [vmem:[%s1 + $0x140] sm:$0x3]
  %v32 = vld [vmem:[%s1 + $0x150] sm:$0xff]
  %v33 = vld [vmem:[%s1 + $0x160] sm:$0xff]
  %v34 = vld [vmem:[%s1 + $0x170] sm:$0xff]
  %v35 = vld [vmem:[%s1 + $0x180] sm:$0xff]
  %v36 = vld [vmem:[%s1 + $0x190] sm:$0xff]
  %v37 = vld [vmem:[%s1 + $0x1a0] sm:$0xff]
  %v38 = vld [vmem:[%s1 + $0x1b0] sm:$0xff]
  %v39 = vld [vmem:[%s1 + $0x1c0] sm:$0xff]
  %v40 = vld [vmem:[%s1 + $0x1d0] sm:$0xff]
  %v41 = vld [vmem:[%s1 + $0x1e0] sm:$0xff]
  %v42 = vld [vmem:[%s1 + $0x1f0] sm:$0xff]
  %v43 = vld [vmem:[%s1 + $0x200] sm:$0xff]
  %v44 = vld [vmem:[%s1 + $0x210] sm:$0xf]
  %v45 = vld [vmem:[%s1 + $0x220] sm:$0xff]
  %v46 = vld [vmem:[%s1 + $0x230] sm:$0xff]
  %v47 = vld [vmem:[%s1 + $0x240] sm:$0xf]
  %v48 = vld [vmem:[%s1 + $0x250] sm:$0xff]
  %v49 = vld [vmem:[%s1 + $0x258] sm:$0xff]
  %v50 = vld [vmem:[%s1 + $0x260] sm:$0xff]
  %v51 = vld [vmem:[%s1 + $0x268] sm:$0xff]
  %v52 = vld [vmem:[%s1 + $0x270] sm:$0xff]
  %v53 = vld [vmem:[%s1 + $0x278] sm:$0xff]
  %v54 = vld [vmem:[%s1 + $0x280] sm:$0xff]
  %v55 = vld [vmem:[%s1 + $0x288] sm:$0xff]
  %v56 = vld [vmem:[%s1 + $0x290] sm:$0xff]
  %v57 = vld [vmem:[%s1 + $0x298] sm:$0xff]
  %v58 = vld [vmem:[%s1 + $0x2a0] sm:$0xff]
  %v59 = vld [vmem:[%s1 + $0x2a8] sm:$0xff]
  %v60 = vld [vmem:[%s1 + $0x2b0] sm:$0xff]
  %v61 = vld [vmem:[%s1 + $0x2b8] sm:$0xff]
  %v62 = vld [vmem:[%s1 + $0x2c0] sm:$0xff]
  %v63 = vld [vmem:[%s1 + $0x2c8] sm:$0xff]
  %v64 = vld [vmem:[%s1 + $0x2d0] sm:$0xff]
  %v65 = vld [vmem:[%s1 + $0x2d8] sm:$0xff]
  %v66 = vld [vmem:[%s1 + $0x2e0] sm:$0xff]
  %v67 = vld [vmem:[%s1 + $0x2e8] sm:$0xff]
  %v68 = vld [vmem:[%s0] sm:$0xff]
  %v69 = vld [vmem:[%s0 + $0x8] sm:$0xff]
  %v70 = vld [vmem:[%s0 + $0x10] sm:$0xff]
  %v71 = vld [vmem:[%s0 + $0x18] sm:$0xff]
  %v72 = vld [vmem:[%s0 + $0x20] sm:$0x3]
  %vm73 = vcmask 392192
  %v75 = vsel %vm73, %v68, 0
  %v78 = vsel %vm73, %v69, 0
  %v81 = vsel %vm73, %v70, 0
  %v84 = vsel %vm73, %v71, 0
  %v87 = vsel %vm73, %v72, 0
  %89 = vmatprep.subr.mxu0 0.0
  %90 = vmatpush1.msra.mxu0 %v11
  %91 = vmatprep.subr.mxu0 0.0
  %92 = vmatpush1.msra.mxu0 %v12
  %93 = vmatprep.subr.mxu0 0.0
  %94 = vmatpush1.msra.mxu0 %v13
  %95 = vmatprep.subr.mxu0 0.0
  %96 = vmatpush1.msra.mxu0 %v14
  %97 = vmatprep.subr.mxu0 0.0
  %98 = vmatpush1.msra.mxu0 %v15
  %99 = vmatprep.subr.mxu0 0.0
  %100 = vmatpush1.msra.mxu0 %v16
  %101 = vmatprep.subr.mxu0 0.0
  %102 = vmatpush1.msra.mxu0 0.0
  %103 = vmatprep.subr.mxu0 0.0
  %104 = vmatpush1.msra.mxu0 0.0
  %105 = vmatprep.subr.mxu0 0.0
  %106 = vmatpush1.msra.mxu0 0.0
  %107 = vmatprep.subr.mxu0 0.0
  %108 = vmatpush1.msra.mxu0 0.0
  %109 = vmatprep.subr.mxu0 0.0
  %110 = vmatpush1.msra.mxu0 0.0
  %111 = vmatprep.subr.mxu0 0.0
  %112 = vmatpush1.msra.mxu0 0.0
  %113 = vmatprep.subr.mxu0 0.0
  %114 = vmatpush1.msra.mxu0 0.0
  %115 = vmatprep.subr.mxu0 0.0
  %116 = vmatpush1.msra.mxu0 0.0
  %117 = vmatprep.subr.mxu0 0.0
  %118 = vmatpush1.msra.mxu0 0.0
  %119 = vmatprep.subr.mxu0 0.0
  %120 = vmatpush1.msra.mxu0 0.0
  %121 = vmatprep.subr.mxu0 0.0
  %122 = vmatpush1.msra.mxu0 0.0
  %123 = vmatprep.subr.mxu0 0.0
  %124 = vmatpush1.msra.mxu0 0.0
  %125 = vmatprep.subr.mxu0 0.0
  %126 = vmatpush1.msra.mxu0 0.0
  %127 = vmatprep.subr.mxu0 0.0
  %128 = vmatpush1.msra.mxu0 0.0
  %129 = vmatprep.subr.mxu0 0.0
  %130 = vmatpush1.msra.mxu0 0.0
  %131 = vmatprep.subr.mxu0 0.0
  %132 = vmatpush1.msra.mxu0 0.0
  %133 = vmatprep.subr.mxu0 0.0
  %134 = vmatpush1.msra.mxu0 0.0
  %135 = vmatprep.subr.mxu0 0.0
  %136 = vmatpush1.msra.mxu0 0.0
  %137 = vmatprep.subr.mxu0 0.0
  %138 = vmatpush1.msra.mxu0 0.0
  %139 = vmatprep.subr.mxu0 0.0
  %140 = vmatpush1.msra.mxu0 0.0
  %141 = vmatprep.subr.mxu0 0.0
  %142 = vmatpush1.msra.mxu0 0.0
  %143 = vmatprep.subr.mxu0 0.0
  %144 = vmatpush1.msra.mxu0 0.0
  %145 = vmatprep.subr.mxu0 0.0
  %146 = vmatpush1.msra.mxu0 0.0
  %147 = vmatprep.subr.mxu0 0.0
  %148 = vmatpush1.msra.mxu0 0.0
  %149 = vmatprep.subr.mxu0 0.0
  %150 = vmatpush1.msra.mxu0 0.0
  %151 = vmatprep.subr.mxu0 0.0
  %152 = vmatpush1.msra.mxu0 0.0
  %153 = vmatprep.mubr.f32.mxu0 0.0
  %154 = vmatmul.mubr.f32.gmra.mrb[0].mxu0 %v75
  %v155 = vpop.f32.mrb[0].mxu0
  %v156 = vadd.f32 %v17, %v155
  %v157 = vpop.f32.mrb[0].mxu0
  %158 = vmatprep.mubr.f32.mxu0 0.0
  %159 = vmatmul.mubr.f32.gmra.mrb[0].mxu0 %v78
  %v160 = vpop.f32.mrb[0].mxu0
  %v161 = vadd.f32 %v18, %v160
  %v162 = vpop.f32.mrb[0].mxu0
  %163 = vmatprep.mubr.f32.mxu0 0.0
  %164 = vmatmul.mubr.f32.gmra.mrb[0].mxu0 %v81
  %v165 = vpop.f32.mrb[0].mxu0
  %v166 = vadd.f32 %v19, %v165
  %v167 = vpop.f32.mrb[0].mxu0
  %168 = vmatprep.mubr.f32.mxu0 0.0
  %169 = vmatmul.mubr.f32.gmra.mrb[0].mxu0 %v84
  %v170 = vpop.f32.mrb[0].mxu0
  %v171 = vadd.f32 %v20, %v170
  %v172 = vpop.f32.mrb[0].mxu0
  %173 = vmatprep.mubr.f32.mxu0 0.0
  %174 = vmatmul.mubr.f32.gmra.mrb[0].mxu0 %v87
  %v175 = vpop.f32.mrb[0].mxu0
  %v176 = vadd.f32 %v21, %v175
  %v177 = vpop.f32.mrb[0].mxu0
  %178 = vdwg.mxu0
  %vm179 = vcmask 277504
  %v181 = vsel %vm179, %v22, 0
  %v184 = vsel %vm179, %v23, 0
  %v187 = vsel %vm179, %v24, 0
  %v190 = vsel %vm179, %v25, 0
  %v193 = vsel %vm179, %v26, 0
  %vm195 = vcmask 1041408
  %v197 = vsel %vm195, %v176, 0
  %199 = vmatprep.subr.mxu0 0.0
  %200 = vmatpush1.msra.mxu0 %v156
  %201 = vmatprep.subr.mxu0 0.0
  %202 = vmatpush1.msra.mxu0 %v161
  %203 = vmatprep.subr.mxu0 0.0
  %204 = vmatpush1.msra.mxu0 %v166
  %205 = vmatprep.subr.mxu0 0.0
  %206 = vmatpush1.msra.mxu0 %v171
  %207 = vmatprep.subr.mxu0 0.0
  %208 = vmatpush1.msra.mxu0 %v197
  %209 = vmatprep.subr.mxu0 0.0
  %210 = vmatpush1.msra.mxu0 0.0
  %211 = vmatprep.subr.mxu0 0.0
  %212 = vmatpush1.msra.mxu0 0.0
  %213 = vmatprep.subr.mxu0 0.0
  %214 = vmatpush1.msra.mxu0 0.0
  %215 = vmatprep.subr.mxu0 0.0
  %216 = vmatpush1.msra.mxu0 0.0
  %217 = vmatprep.subr.mxu0 0.0
  %218 = vmatpush1.msra.mxu0 0.0
  %219 = vmatprep.subr.mxu0 0.0
  %220 = vmatpush1.msra.mxu0 0.0
  %221 = vmatprep.subr.mxu0 0.0
  %222 = vmatpush1.msra.mxu0 0.0
  %223 = vmatprep.subr.mxu0 0.0
  %224 = vmatpush1.msra.mxu0 0.0
  %225 = vmatprep.subr.mxu0 0.0
  %226 = vmatpush1.msra.mxu0 0.0
  %227 = vmatprep.subr.mxu0 0.0
  %228 = vmatpush1.msra.mxu0 0.0
  %229 = vmatprep.subr.mxu0 0.0
  %230 = vmatpush1.msra.mxu0 0.0
  %231 = vmatprep.subr.mxu0 0.0
  %232 = vmatpush1.msra.mxu0 0.0
  %233 = vmatprep.subr.mxu0 0.0
  %234 = vmatpush1.msra.mxu0 0.0
  %235 = vmatprep.subr.mxu0 0.0
  %236 = vmatpush1.msra.mxu0 0.0
  %237 = vmatprep.subr.mxu0 0.0
  %238 = vmatpush1.msra.mxu0 0.0
  %239 = vmatprep.subr.mxu0 0.0
  %240 = vmatpush1.msra.mxu0 0.0
  %241 = vmatprep.subr.mxu0 0.0
  %242 = vmatpush1.msra.mxu0 0.0
  %243 = vmatprep.subr.mxu0 0.0
  %244 = vmatpush1.msra.mxu0 0.0
  %245 = vmatprep.subr.mxu0 0.0
  %246 = vmatpush1.msra.mxu0 0.0
  %247 = vmatprep.subr.mxu0 0.0
  %248 = vmatpush1.msra.mxu0 0.0
  %249 = vmatprep.subr.mxu0 0.0
  %250 = vmatpush1.msra.mxu0 0.0
  %251 = vmatprep.subr.mxu0 0.0
  %252 = vmatpush1.msra.mxu0 0.0
  %253 = vmatprep.subr.mxu0 0.0
  %254 = vmatpush1.msra.mxu0 0.0
  %255 = vmatprep.subr.mxu0 0.0
  %256 = vmatpush1.msra.mxu0 0.0
  %257 = vmatprep.subr.mxu0 0.0
  %258 = vmatpush1.msra.mxu0 0.0
  %259 = vmatprep.subr.mxu0 0.0
  %260 = vmatpush1.msra.mxu0 0.0
  %261 = vmatprep.subr.mxu0 0.0
  %262 = vmatpush1.msra.mxu0 0.0
  %263 = vmatprep.mubr.f32.mxu0 0.0
  %264 = vmatmul.mubr.f32.gmra.mrb[0].mxu0 %v181
  %v265 = vpop.f32.mrb[0].mxu0
  %v266 = vadd.f32 0.0, %v265
  %v267 = vpop.f32.mrb[0].mxu0
  %268 = vmatprep.mubr.f32.mxu0 0.0
  %269 = vmatmul.mubr.f32.gmra.mrb[0].mxu0 %v184
  %v270 = vpop.f32.mrb[0].mxu0
  %v271 = vadd.f32 0.0, %v270
  %v272 = vpop.f32.mrb[0].mxu0
  %273 = vmatprep.mubr.f32.mxu0 0.0
  %274 = vmatmul.mubr.f32.gmra.mrb[0].mxu0 %v187
  %v275 = vpop.f32.mrb[0].mxu0
  %v276 = vadd.f32 0.0, %v275
  %v277 = vpop.f32.mrb[0].mxu0
  %278 = vmatprep.mubr.f32.mxu0 0.0
  %279 = vmatmul.mubr.f32.gmra.mrb[0].mxu0 %v190
  %v280 = vpop.f32.mrb[0].mxu0
  %v281 = vadd.f32 0.0, %v280
  %v282 = vpop.f32.mrb[0].mxu0
  %283 = vmatprep.mubr.f32.mxu0 0.0
  %284 = vmatmul.mubr.f32.gmra.mrb[0].mxu0 %v193
  %v285 = vpop.f32.mrb[0].mxu0
  %v286 = vadd.f32 0.0, %v285
  %v287 = vpop.f32.mrb[0].mxu0
  %288 = vdwg.mxu0
  %294 = vrot.lane.b32.xlu0 %v266, 20
  %v295 = vpop.permute.xlu0 %294
  %296 = vrot.lane.b32.xlu0 %v271, 20
  %v297 = vpop.permute.xlu0 %296
  %298 = vrot.lane.b32.xlu0 %v276, 20
  %v299 = vpop.permute.xlu0 %298
  %300 = vrot.lane.b32.xlu0 %v281, 20
  %v301 = vpop.permute.xlu0 %300
  %302 = vrot.lane.b32.xlu0 %v286, 20
  %v303 = vpop.permute.xlu0 %302
  %309 = vrot.lane.b32.xlu0 %v266, 40
  %v310 = vpop.permute.xlu0 %309
  %311 = vrot.lane.b32.xlu0 %v271, 40
  %v312 = vpop.permute.xlu0 %311
  %313 = vrot.lane.b32.xlu0 %v276, 40
  %v314 = vpop.permute.xlu0 %313
  %315 = vrot.lane.b32.xlu0 %v281, 40
  %v316 = vpop.permute.xlu0 %315
  %317 = vrot.lane.b32.xlu0 %v286, 40
  %v318 = vpop.permute.xlu0 %317
  %324 = vrot.lane.b32.xlu0 %v266, 60
  %v325 = vpop.permute.xlu0 %324
  %326 = vrot.lane.b32.xlu0 %v271, 60
  %v327 = vpop.permute.xlu0 %326
  %328 = vrot.lane.b32.xlu0 %v276, 60
  %v329 = vpop.permute.xlu0 %328
  %330 = vrot.lane.b32.xlu0 %v281, 60
  %v331 = vpop.permute.xlu0 %330
  %332 = vrot.lane.b32.xlu0 %v286, 60
  %v333 = vpop.permute.xlu0 %332
  %vm339 = vcmask 162816
  %v340 = vsel %vm339, %v266, %v295
  %v341 = vsel %vm339, %v271, %v297
  %v342 = vsel %vm339, %v276, %v299
  %v343 = vsel %vm339, %v281, %v301
  %v344 = vsel %vm339, %v286, %v303
  %vm345 = vcmask 326656
  %v346 = vsel %vm345, %v340, %v310
  %v347 = vsel %vm345, %v341, %v312
  %v348 = vsel %vm345, %v342, %v314
  %v349 = vsel %vm345, %v343, %v316
  %v350 = vsel %vm345, %v344, %v318
  %vm351 = vcmask 490496
  %v352 = vsel %vm351, %v346, %v325
  %v353 = vsel %vm351, %v347, %v327
  %v354 = vsel %vm351, %v348, %v329
  %v355 = vsel %vm351, %v349, %v331
  %v356 = vsel %vm351, %v350, %v333
  %v357 = vmul.f32 %v27, %v352
  %v358 = vmul.f32 %v28, %v353
  %v359 = vmul.f32 %v29, %v354
  %v360 = vmul.f32 %v30, %v355
  %v361 = vmul.f32 %v31, %v356
  %362 = vxpose.xlu0.b32.start [1/16] %v266, 128
  %363 = vxpose.xlu0.b32.cont [2/16] %v271, 128
  %364 = vxpose.xlu0.b32.cont [3/16] %v276, 128
  %365 = vxpose.xlu0.b32.cont [4/16] %v281, 128
  %366 = vxpose.xlu0.b32.cont [5/16] %v286, 128
  %367 = vxpose.xlu0.b32.cont [6/16] 0.0, 128
  %368 = vxpose.xlu0.b32.cont [7/16] 0.0, 128
  %369 = vxpose.xlu0.b32.cont [8/16] 0.0, 128
  %370 = vxpose.xlu0.b32.cont [9/16] 0.0, 128
  %371 = vxpose.xlu0.b32.cont [10/16] 0.0, 128
  %372 = vxpose.xlu0.b32.cont [11/16] 0.0, 128
  %373 = vxpose.xlu0.b32.cont [12/16] 0.0, 128
  %374 = vxpose.xlu0.b32.cont [13/16] 0.0, 128
  %375 = vxpose.xlu0.b32.cont [14/16] 0.0, 128
  %376 = vxpose.xlu0.b32.cont [15/16] 0.0, 128
  %377 = vxpose.xlu0.b32.end [16/16] 0.0, 128
  %v378 = vpop.trf.xlu0
  %v379 = vpop.trf.xlu0
  %v380 = vpop.trf.xlu0
  %v381 = vpop.trf.xlu0
  %v382 = vpop.trf.xlu0
  %v383 = vpop.trf.xlu0
  %v384 = vpop.trf.xlu0
  %v385 = vpop.trf.xlu0
  %v386 = vpop.trf.xlu0
  %v387 = vpop.trf.xlu0
  %v388 = vpop.trf.xlu0
  %v389 = vpop.trf.xlu0
  %v390 = vpop.trf.xlu0
  %v391 = vpop.trf.xlu0
  %v392 = vpop.trf.xlu0
  %v393 = vpop.trf.xlu0
  %v395 = vsel %vm179, %v378, 0
  %v398 = vsel %vm179, %v379, 0
  %v401 = vsel %vm179, %v380, 0
  %v404 = vsel %vm195, %v361, 0
  %406 = vmatprep.subr.mxu0 0.0
  %407 = vmatpush1.msra.mxu0 %v357
  %408 = vmatprep.subr.mxu0 0.0
  %409 = vmatpush1.msra.mxu0 %v358
  %410 = vmatprep.subr.mxu0 0.0
  %411 = vmatpush1.msra.mxu0 %v359
  %412 = vmatprep.subr.mxu0 0.0
  %413 = vmatpush1.msra.mxu0 %v360
  %414 = vmatprep.subr.mxu0 0.0
  %415 = vmatpush1.msra.mxu0 %v404
  %416 = vmatprep.subr.mxu0 0.0
  %417 = vmatpush1.msra.mxu0 0.0
  %418 = vmatprep.subr.mxu0 0.0
  %419 = vmatpush1.msra.mxu0 0.0
  %420 = vmatprep.subr.mxu0 0.0
  %421 = vmatpush1.msra.mxu0 0.0
  %422 = vmatprep.subr.mxu0 0.0
  %423 = vmatpush1.msra.mxu0 0.0
  %424 = vmatprep.subr.mxu0 0.0
  %425 = vmatpush1.msra.mxu0 0.0
  %426 = vmatprep.subr.mxu0 0.0
  %427 = vmatpush1.msra.mxu0 0.0
  %428 = vmatprep.subr.mxu0 0.0
  %429 = vmatpush1.msra.mxu0 0.0
  %430 = vmatprep.subr.mxu0 0.0
  %431 = vmatpush1.msra.mxu0 0.0
  %432 = vmatprep.subr.mxu0 0.0
  %433 = vmatpush1.msra.mxu0 0.0
  %434 = vmatprep.subr.mxu0 0.0
  %435 = vmatpush1.msra.mxu0 0.0
  %436 = vmatprep.subr.mxu0 0.0
  %437 = vmatpush1.msra.mxu0 0.0
  %438 = vmatprep.subr.mxu0 0.0
  %439 = vmatpush1.msra.mxu0 0.0
  %440 = vmatprep.subr.mxu0 0.0
  %441 = vmatpush1.msra.mxu0 0.0
  %442 = vmatprep.subr.mxu0 0.0
  %443 = vmatpush1.msra.mxu0 0.0
  %444 = vmatprep.subr.mxu0 0.0
  %445 = vmatpush1.msra.mxu0 0.0
  %446 = vmatprep.subr.mxu0 0.0
  %447 = vmatpush1.msra.mxu0 0.0
  %448 = vmatprep.subr.mxu0 0.0
  %449 = vmatpush1.msra.mxu0 0.0
  %450 = vmatprep.subr.mxu0 0.0
  %451 = vmatpush1.msra.mxu0 0.0
  %452 = vmatprep.subr.mxu0 0.0
  %453 = vmatpush1.msra.mxu0 0.0
  %454 = vmatprep.subr.mxu0 0.0
  %455 = vmatpush1.msra.mxu0 0.0
  %456 = vmatprep.subr.mxu0 0.0
  %457 = vmatpush1.msra.mxu0 0.0
  %458 = vmatprep.subr.mxu0 0.0
  %459 = vmatpush1.msra.mxu0 0.0
  %460 = vmatprep.subr.mxu0 0.0
  %461 = vmatpush1.msra.mxu0 0.0
  %462 = vmatprep.subr.mxu0 0.0
  %463 = vmatpush1.msra.mxu0 0.0
  %464 = vmatprep.subr.mxu0 0.0
  %465 = vmatpush1.msra.mxu0 0.0
  %466 = vmatprep.subr.mxu0 0.0
  %467 = vmatpush1.msra.mxu0 0.0
  %468 = vmatprep.subr.mxu0 0.0
  %469 = vmatpush1.msra.mxu0 0.0
  %470 = vmatprep.mubr.f32.mxu0 0.0
  %471 = vmatmul.mubr.f32.gmra.mrb[0].mxu0 %v395
  %v472 = vpop.f32.mrb[0].mxu0
  %v473 = vadd.f32 0.0, %v472
  %v474 = vpop.f32.mrb[0].mxu0
  %475 = vmatprep.mubr.f32.mxu0 0.0
  %476 = vmatmul.mubr.f32.gmra.mrb[0].mxu0 %v398
  %v477 = vpop.f32.mrb[0].mxu0
  %v478 = vadd.f32 0.0, %v477
  %v479 = vpop.f32.mrb[0].mxu0
  %480 = vmatprep.mubr.f32.mxu0 0.0
  %481 = vmatmul.mubr.f32.gmra.mrb[0].mxu0 %v401
  %v482 = vpop.f32.mrb[0].mxu0
  %v483 = vadd.f32 0.0, %v482
  %v484 = vpop.f32.mrb[0].mxu0
  %485 = vdwg.mxu0
  %v486 = vmul.f32 %v357, %v357
  %v487 = vmul.f32 %v358, %v358
  %v488 = vmul.f32 %v359, %v359
  %v489 = vmul.f32 %v360, %v360
  %v490 = vmul.f32 %v361, %v361
  %vm491 = vcmask 654336
  %v492 = vsel %vm491, %v486, 0.0
  %v493 = vsel %vm491, %v487, 0.0
  %v494 = vadd.f32 %v492, %v493
  %v495 = vsel %vm491, %v488, 0.0
  %v496 = vadd.f32 %v494, %v495
  %v497 = vsel %vm491, %v489, 0.0
  %v498 = vadd.f32 %v496, %v497
  %vm499 = vcmask 648192
  %v500 = vsel %vm499, %v490, 0.0
  %v501 = vadd.f32 %v498, %v500
  %v502 = vrot.slane %v501, 4
  %v503 = vadd.f32 %v501, %v502
  %v504 = vrot.slane %v503, 2
  %v505 = vadd.f32 %v503, %v504
  %v506 = vrot.slane %v505, 1
  %v507 = vadd.f32 %v505, %v506
  %v509 = vsel %vm491, %v507, 0
  %511 = vmatprep.subr.mxu0 0.0
  %512 = vmatpush1.msra.mxu0 %v32
  %513 = vmatprep.subr.mxu0 0.0
  %514 = vmatpush1.msra.mxu0 %v33
  %515 = vmatprep.subr.mxu0 0.0
  %516 = vmatpush1.msra.mxu0 %v34
  %517 = vmatprep.subr.mxu0 0.0
  %518 = vmatpush1.msra.mxu0 %v35
  %519 = vmatprep.subr.mxu0 0.0
  %520 = vmatpush1.msra.mxu0 %v36
  %521 = vmatprep.subr.mxu0 0.0
  %522 = vmatpush1.msra.mxu0 %v37
  %523 = vmatprep.subr.mxu0 0.0
  %524 = vmatpush1.msra.mxu0 %v38
  %525 = vmatprep.subr.mxu0 0.0
  %526 = vmatpush1.msra.mxu0 %v39
  %527 = vmatprep.subr.mxu0 0.0
  %528 = vmatpush1.msra.mxu0 %v40
  %529 = vmatprep.subr.mxu0 0.0
  %530 = vmatpush1.msra.mxu0 %v41
  %531 = vmatprep.subr.mxu0 0.0
  %532 = vmatpush1.msra.mxu0 0.0
  %533 = vmatprep.subr.mxu0 0.0
  %534 = vmatpush1.msra.mxu0 0.0
  %535 = vmatprep.subr.mxu0 0.0
  %536 = vmatpush1.msra.mxu0 0.0
  %537 = vmatprep.subr.mxu0 0.0
  %538 = vmatpush1.msra.mxu0 0.0
  %539 = vmatprep.subr.mxu0 0.0
  %540 = vmatpush1.msra.mxu0 0.0
  %541 = vmatprep.subr.mxu0 0.0
  %542 = vmatpush1.msra.mxu0 0.0
  %543 = vmatprep.subr.mxu0 0.0
  %544 = vmatpush1.msra.mxu0 0.0
  %545 = vmatprep.subr.mxu0 0.0
  %546 = vmatpush1.msra.mxu0 0.0
  %547 = vmatprep.subr.mxu0 0.0
  %548 = vmatpush1.msra.mxu0 0.0
  %549 = vmatprep.subr.mxu0 0.0
  %550 = vmatpush1.msra.mxu0 0.0
  %551 = vmatprep.subr.mxu0 0.0
  %552 = vmatpush1.msra.mxu0 0.0
  %553 = vmatprep.subr.mxu0 0.0
  %554 = vmatpush1.msra.mxu0 0.0
  %555 = vmatprep.subr.mxu0 0.0
  %556 = vmatpush1.msra.mxu0 0.0
  %557 = vmatprep.subr.mxu0 0.0
  %558 = vmatpush1.msra.mxu0 0.0
  %559 = vmatprep.subr.mxu0 0.0
  %560 = vmatpush1.msra.mxu0 0.0
  %561 = vmatprep.subr.mxu0 0.0
  %562 = vmatpush1.msra.mxu0 0.0
  %563 = vmatprep.subr.mxu0 0.0
  %564 = vmatpush1.msra.mxu0 0.0
  %565 = vmatprep.subr.mxu0 0.0
  %566 = vmatpush1.msra.mxu0 0.0
  %567 = vmatprep.subr.mxu0 0.0
  %568 = vmatpush1.msra.mxu0 0.0
  %569 = vmatprep.subr.mxu0 0.0
  %570 = vmatpush1.msra.mxu0 0.0
  %571 = vmatprep.subr.mxu0 0.0
  %572 = vmatpush1.msra.mxu0 0.0
  %573 = vmatprep.subr.mxu0 0.0
  %574 = vmatpush1.msra.mxu0 0.0
  %575 = vmatprep.mubr.f32.mxu0 0.0
  %576 = vmatmul.mubr.f32.gmra.mrb[0].mxu0 %v509
  %v577 = vpop.f32.mrb[0].mxu0
  %v578 = vadd.f32 0.0, %v577
  %v579 = vpop.f32.mrb[0].mxu0
  %580 = vdwg.mxu0
  %v581 = vlaneseq
  %v582 = vshrl.u32 %v581, 7
  %v583 = vsub.s32 0, %v582
  %v584 = vrot.slane %v578, %v583
  %v585 = vrcp.pop %v584
  %v586 = vmul.f32 %v473, %v585
  %v587 = vmul.f32 %v478, %v585
  %v588 = vmul.f32 %v483, %v585
  %v589 = vmul.f32 %v42, 1e-05
  %v590 = vmul.f32 %v43, 1e-05
  %v591 = vmul.f32 %v44, 1e-05
  %v592 = vadd.f32 %v586, %v589
  %v593 = vadd.f32 %v587, %v590
  %v594 = vadd.f32 %v588, %v591
  %595 = vxpose.xlu0.b32.start [1/16] %v45, 128
  %596 = vxpose.xlu0.b32.cont [2/16] %v46, 128
  %597 = vxpose.xlu0.b32.cont [3/16] %v47, 128
  %598 = vxpose.xlu0.b32.cont [4/16] 0.0, 128
  %599 = vxpose.xlu0.b32.cont [5/16] 0.0, 128
  %600 = vxpose.xlu0.b32.cont [6/16] 0.0, 128
  %601 = vxpose.xlu0.b32.cont [7/16] 0.0, 128
  %602 = vxpose.xlu0.b32.cont [8/16] 0.0, 128
  %603 = vxpose.xlu0.b32.cont [9/16] 0.0, 128
  %604 = vxpose.xlu0.b32.cont [10/16] 0.0, 128
  %605 = vxpose.xlu0.b32.cont [11/16] 0.0, 128
  %606 = vxpose.xlu0.b32.cont [12/16] 0.0, 128
  %607 = vxpose.xlu0.b32.cont [13/16] 0.0, 128
  %608 = vxpose.xlu0.b32.cont [14/16] 0.0, 128
  %609 = vxpose.xlu0.b32.cont [15/16] 0.0, 128
  %610 = vxpose.xlu0.b32.end [16/16] 0.0, 128
  %v611 = vpop.trf.xlu0
  %v612 = vpop.trf.xlu0
  %v613 = vpop.trf.xlu0
  %v614 = vpop.trf.xlu0
  %v615 = vpop.trf.xlu0
  %v616 = vpop.trf.xlu0
  %v617 = vpop.trf.xlu0
  %v618 = vpop.trf.xlu0
  %v619 = vpop.trf.xlu0
  %v620 = vpop.trf.xlu0
  %v621 = vpop.trf.xlu0
  %v622 = vpop.trf.xlu0
  %v623 = vpop.trf.xlu0
  %v624 = vpop.trf.xlu0
  %v625 = vpop.trf.xlu0
  %v626 = vpop.trf.xlu0
  %v628 = vsel %vm339, %v611, 0
  %v631 = vsel %vm339, %v612, 0
  %v634 = vsel %vm339, %v613, 0
  %v637 = vsel %vm339, %v614, 0
  %v640 = vsel %vm339, %v615, 0
  %v643 = vsel %vm339, %v616, 0
  %v646 = vsel %vm339, %v617, 0
  %v649 = vsel %vm339, %v618, 0
  %vm651 = vcmask 1043456
  %v653 = vsel %vm651, %v594, 0
  %655 = vmatprep.subr.mxu0 0.0
  %656 = vmatpush1.msra.mxu0 %v592
  %657 = vmatprep.subr.mxu0 0.0
  %658 = vmatpush1.msra.mxu0 %v593
  %659 = vmatprep.subr.mxu0 0.0
  %660 = vmatpush1.msra.mxu0 %v653
  %661 = vmatprep.subr.mxu0 0.0
  %662 = vmatpush1.msra.mxu0 0.0
  %663 = vmatprep.subr.mxu0 0.0
  %664 = vmatpush1.msra.mxu0 0.0
  %665 = vmatprep.subr.mxu0 0.0
  %666 = vmatpush1.msra.mxu0 0.0
  %667 = vmatprep.subr.mxu0 0.0
  %668 = vmatpush1.msra.mxu0 0.0
  %669 = vmatprep.subr.mxu0 0.0
  %670 = vmatpush1.msra.mxu0 0.0
  %671 = vmatprep.subr.mxu0 0.0
  %672 = vmatpush1.msra.mxu0 0.0
  %673 = vmatprep.subr.mxu0 0.0
  %674 = vmatpush1.msra.mxu0 0.0
  %675 = vmatprep.subr.mxu0 0.0
  %676 = vmatpush1.msra.mxu0 0.0
  %677 = vmatprep.subr.mxu0 0.0
  %678 = vmatpush1.msra.mxu0 0.0
  %679 = vmatprep.subr.mxu0 0.0
  %680 = vmatpush1.msra.mxu0 0.0
  %681 = vmatprep.subr.mxu0 0.0
  %682 = vmatpush1.msra.mxu0 0.0
  %683 = vmatprep.subr.mxu0 0.0
  %684 = vmatpush1.msra.mxu0 0.0
  %685 = vmatprep.subr.mxu0 0.0
  %686 = vmatpush1.msra.mxu0 0.0
  %687 = vmatprep.subr.mxu0 0.0
  %688 = vmatpush1.msra.mxu0 0.0
  %689 = vmatprep.subr.mxu0 0.0
  %690 = vmatpush1.msra.mxu0 0.0
  %691 = vmatprep.subr.mxu0 0.0
  %692 = vmatpush1.msra.mxu0 0.0
  %693 = vmatprep.subr.mxu0 0.0
  %694 = vmatpush1.msra.mxu0 0.0
  %695 = vmatprep.subr.mxu0 0.0
  %696 = vmatpush1.msra.mxu0 0.0
  %697 = vmatprep.subr.mxu0 0.0
  %698 = vmatpush1.msra.mxu0 0.0
  %699 = vmatprep.subr.mxu0 0.0
  %700 = vmatpush1.msra.mxu0 0.0
  %701 = vmatprep.subr.mxu0 0.0
  %702 = vmatpush1.msra.mxu0 0.0
  %703 = vmatprep.subr.mxu0 0.0
  %704 = vmatpush1.msra.mxu0 0.0
  %705 = vmatprep.subr.mxu0 0.0
  %706 = vmatpush1.msra.mxu0 0.0
  %707 = vmatprep.subr.mxu0 0.0
  %708 = vmatpush1.msra.mxu0 0.0
  %709 = vmatprep.subr.mxu0 0.0
  %710 = vmatpush1.msra.mxu0 0.0
  %711 = vmatprep.subr.mxu0 0.0
  %712 = vmatpush1.msra.mxu0 0.0
  %713 = vmatprep.subr.mxu0 0.0
  %714 = vmatpush1.msra.mxu0 0.0
  %715 = vmatprep.subr.mxu0 0.0
  %716 = vmatpush1.msra.mxu0 0.0
  %717 = vmatprep.subr.mxu0 0.0
  %718 = vmatpush1.msra.mxu0 0.0
  %719 = vmatprep.mubr.f32.mxu0 0.0
  %720 = vmatmul.mubr.f32.gmra.mrb[0].mxu0 %v628
  %v721 = vpop.f32.mrb[0].mxu0
  %v722 = vadd.f32 0.0, %v721
  %v723 = vpop.f32.mrb[0].mxu0
  %724 = vmatprep.mubr.f32.mxu0 0.0
  %725 = vmatmul.mubr.f32.gmra.mrb[0].mxu0 %v631
  %v726 = vpop.f32.mrb[0].mxu0
  %v727 = vadd.f32 0.0, %v726
  %v728 = vpop.f32.mrb[0].mxu0
  %729 = vmatprep.mubr.f32.mxu0 0.0
  %730 = vmatmul.mubr.f32.gmra.mrb[0].mxu0 %v634
  %v731 = vpop.f32.mrb[0].mxu0
  %v732 = vadd.f32 0.0, %v731
  %v733 = vpop.f32.mrb[0].mxu0
  %734 = vmatprep.mubr.f32.mxu0 0.0
  %735 = vmatmul.mubr.f32.gmra.mrb[0].mxu0 %v637
  %v736 = vpop.f32.mrb[0].mxu0
  %v737 = vadd.f32 0.0, %v736
  %v738 = vpop.f32.mrb[0].mxu0
  %739 = vmatprep.mubr.f32.mxu0 0.0
  %740 = vmatmul.mubr.f32.gmra.mrb[0].mxu0 %v640
  %v741 = vpop.f32.mrb[0].mxu0
  %v742 = vadd.f32 0.0, %v741
  %v743 = vpop.f32.mrb[0].mxu0
  %744 = vmatprep.mubr.f32.mxu0 0.0
  %745 = vmatmul.mubr.f32.gmra.mrb[0].mxu0 %v643
  %v746 = vpop.f32.mrb[0].mxu0
  %v747 = vadd.f32 0.0, %v746
  %v748 = vpop.f32.mrb[0].mxu0
  %749 = vmatprep.mubr.f32.mxu0 0.0
  %750 = vmatmul.mubr.f32.gmra.mrb[0].mxu0 %v646
  %v751 = vpop.f32.mrb[0].mxu0
  %v752 = vadd.f32 0.0, %v751
  %v753 = vpop.f32.mrb[0].mxu0
  %754 = vmatprep.mubr.f32.mxu0 0.0
  %755 = vmatmul.mubr.f32.gmra.mrb[0].mxu0 %v649
  %v756 = vpop.f32.mrb[0].mxu0
  %v757 = vadd.f32 0.0, %v756
  %v758 = vpop.f32.mrb[0].mxu0
  %759 = vdwg.mxu0
  %v761 = vsel %vm491, %v722, 0
  %v764 = vsel %vm491, %v727, 0
  %v767 = vsel %vm491, %v732, 0
  %v770 = vsel %vm491, %v737, 0
  %v773 = vsel %vm491, %v742, 0
  %v776 = vsel %vm491, %v747, 0
  %v779 = vsel %vm491, %v752, 0
  %v782 = vsel %vm491, %v757, 0
  %784 = vmatprep.subr.mxu0 %v49
  %785 = vmatpush1.msra.mxu0 %v48
  %786 = vmatprep.subr.mxu0 %v51
  %787 = vmatpush1.msra.mxu0 %v50
  %788 = vmatprep.subr.mxu0 %v53
  %789 = vmatpush1.msra.mxu0 %v52
  %790 = vmatprep.subr.mxu0 %v55
  %791 = vmatpush1.msra.mxu0 %v54
  %792 = vmatprep.subr.mxu0 %v57
  %793 = vmatpush1.msra.mxu0 %v56
  %794 = vmatprep.subr.mxu0 %v59
  %795 = vmatpush1.msra.mxu0 %v58
  %796 = vmatprep.subr.mxu0 %v61
  %797 = vmatpush1.msra.mxu0 %v60
  %798 = vmatprep.subr.mxu0 %v63
  %799 = vmatpush1.msra.mxu0 %v62
  %800 = vmatprep.subr.mxu0 %v65
  %801 = vmatpush1.msra.mxu0 %v64
  %802 = vmatprep.subr.mxu0 %v67
  %803 = vmatpush1.msra.mxu0 %v66
  %804 = vmatprep.subr.mxu0 0.0
  %805 = vmatpush1.msra.mxu0 0.0
  %806 = vmatprep.subr.mxu0 0.0
  %807 = vmatpush1.msra.mxu0 0.0
  %808 = vmatprep.subr.mxu0 0.0
  %809 = vmatpush1.msra.mxu0 0.0
  %810 = vmatprep.subr.mxu0 0.0
  %811 = vmatpush1.msra.mxu0 0.0
  %812 = vmatprep.subr.mxu0 0.0
  %813 = vmatpush1.msra.mxu0 0.0
  %814 = vmatprep.subr.mxu0 0.0
  %815 = vmatpush1.msra.mxu0 0.0
  %816 = vmatprep.subr.mxu0 0.0
  %817 = vmatpush1.msra.mxu0 0.0
  %818 = vmatprep.subr.mxu0 0.0
  %819 = vmatpush1.msra.mxu0 0.0
  %820 = vmatprep.subr.mxu0 0.0
  %821 = vmatpush1.msra.mxu0 0.0
  %822 = vmatprep.subr.mxu0 0.0
  %823 = vmatpush1.msra.mxu0 0.0
  %824 = vmatprep.subr.mxu0 0.0
  %825 = vmatpush1.msra.mxu0 0.0
  %826 = vmatprep.subr.mxu0 0.0
  %827 = vmatpush1.msra.mxu0 0.0
  %828 = vmatprep.subr.mxu0 0.0
  %829 = vmatpush1.msra.mxu0 0.0
  %830 = vmatprep.subr.mxu0 0.0
  %831 = vmatpush1.msra.mxu0 0.0
  %832 = vmatprep.subr.mxu0 0.0
  %833 = vmatpush1.msra.mxu0 0.0
  %834 = vmatprep.subr.mxu0 0.0
  %835 = vmatpush1.msra.mxu0 0.0
  %836 = vmatprep.subr.mxu0 0.0
  %837 = vmatpush1.msra.mxu0 0.0
  %838 = vmatprep.subr.mxu0 0.0
  %839 = vmatpush1.msra.mxu0 0.0
  %840 = vmatprep.subr.mxu0 0.0
  %841 = vmatpush1.msra.mxu0 0.0
  %842 = vmatprep.subr.mxu0 0.0
  %843 = vmatpush1.msra.mxu0 0.0
  %844 = vmatprep.subr.mxu0 0.0
  %845 = vmatpush1.msra.mxu0 0.0
  %846 = vmatprep.subr.mxu0 0.0
  %847 = vmatpush1.msra.mxu0 0.0
  %848 = vmatprep.mubr.f32.mxu0 0.0
  %849 = vmatmul.mubr.f32.gmra.mrb[0].mxu0 %v761
  %v850 = vpop.f32.mrb[0].mxu0
  %v851 = vadd.f32 0.0, %v850
  %v852 = vpop.f32.mrb[0].mxu0
  %v853 = vadd.f32 0.0, %v852
  %854 = vmatprep.mubr.f32.mxu0 0.0
  %855 = vmatmul.mubr.f32.gmra.mrb[0].mxu0 %v764
  %v856 = vpop.f32.mrb[0].mxu0
  %v857 = vadd.f32 0.0, %v856
  %v858 = vpop.f32.mrb[0].mxu0
  %v859 = vadd.f32 0.0, %v858
  %860 = vmatprep.mubr.f32.mxu0 0.0
  %861 = vmatmul.mubr.f32.gmra.mrb[0].mxu0 %v767
  %v862 = vpop.f32.mrb[0].mxu0
  %v863 = vadd.f32 0.0, %v862
  %v864 = vpop.f32.mrb[0].mxu0
  %v865 = vadd.f32 0.0, %v864
  %866 = vmatprep.mubr.f32.mxu0 0.0
  %867 = vmatmul.mubr.f32.gmra.mrb[0].mxu0 %v770
  %v868 = vpop.f32.mrb[0].mxu0
  %v869 = vadd.f32 0.0, %v868
  %v870 = vpop.f32.mrb[0].mxu0
  %v871 = vadd.f32 0.0, %v870
  %872 = vmatprep.mubr.f32.mxu0 0.0
  %873 = vmatmul.mubr.f32.gmra.mrb[0].mxu0 %v773
  %v874 = vpop.f32.mrb[0].mxu0
  %v875 = vadd.f32 0.0, %v874
  %v876 = vpop.f32.mrb[0].mxu0
  %v877 = vadd.f32 0.0, %v876
  %878 = vmatprep.mubr.f32.mxu0 0.0
  %879 = vmatmul.mubr.f32.gmra.mrb[0].mxu0 %v776
  %v880 = vpop.f32.mrb[0].mxu0
  %v881 = vadd.f32 0.0, %v880
  %v882 = vpop.f32.mrb[0].mxu0
  %v883 = vadd.f32 0.0, %v882
  %884 = vmatprep.mubr.f32.mxu0 0.0
  %885 = vmatmul.mubr.f32.gmra.mrb[0].mxu0 %v779
  %v886 = vpop.f32.mrb[0].mxu0
  %v887 = vadd.f32 0.0, %v886
  %v888 = vpop.f32.mrb[0].mxu0
  %v889 = vadd.f32 0.0, %v888
  %890 = vmatprep.mubr.f32.mxu0 0.0
  %891 = vmatmul.mubr.f32.gmra.mrb[0].mxu0 %v782
  %v892 = vpop.f32.mrb[0].mxu0
  %v893 = vadd.f32 0.0, %v892
  %v894 = vpop.f32.mrb[0].mxu0
  %v895 = vadd.f32 0.0, %v894
  %896 = vdwg.mxu0
  %897 = vst [vmem:[%s2] sm:$0xff] %v851
  %898 = vst [vmem:[%s2 + $0x8] sm:$0xff] %v853
  %899 = vst [vmem:[%s2 + $0x10] sm:$0xff] %v857
  %900 = vst [vmem:[%s2 + $0x18] sm:$0xff] %v859
  %901 = vst [vmem:[%s2 + $0x20] sm:$0xff] %v863
  %902 = vst [vmem:[%s2 + $0x28] sm:$0xff] %v865
  %903 = vst [vmem:[%s2 + $0x30] sm:$0xff] %v869
  %904 = vst [vmem:[%s2 + $0x38] sm:$0xff] %v871
  %905 = vst [vmem:[%s2 + $0x40] sm:$0xff] %v875
  %906 = vst [vmem:[%s2 + $0x48] sm:$0xff] %v877
  %907 = vst [vmem:[%s2 + $0x50] sm:$0xff] %v881
  %908 = vst [vmem:[%s2 + $0x58] sm:$0xff] %v883
  %909 = vst [vmem:[%s2 + $0x60] sm:$0xff] %v887
  %910 = vst [vmem:[%s2 + $0x68] sm:$0xff] %v889
  %911 = vst [vmem:[%s2 + $0x70] sm:$0xf] %v893
  %912 = vst [vmem:[%s2 + $0x78] sm:$0xf] %v895
  // Predicated region
  $region10: #{_matt_forward.1} parent=0 // pred_check
    _
  $region11: #{_matt_forward.1} parent=0 // pred_check_branch
    %914 = sbr.rel (0) target = $region13
  $region12: #{_matt_forward.1} parent=0 // pred_region
    _
  $region13: #{_matt_forward.1} parent=0 // pred_fallthru
    _
  // Predicated region
  $region14: #{_matt_forward.1} parent=0 // pred_check
    _
  $region15: #{_matt_forward.1} parent=0 // pred_check_branch
    %916 = sbr.rel (0) target = $region17
  $region16: #{_matt_forward.1} parent=0 // pred_region
    _
  $region17: #{_matt_forward.1} parent=0 // pred_fallthru
    _

// kernel: sub.12
$region0: #{sub.12}
  %s0 = inlined_call_operand.vmem [shape: f32[2,2,20,20], index: 0, kind: input, shape index: {}]
  %s1 = inlined_call_operand.vmem [shape: f32[2,2,400], index: 1, kind: output, shape index: {}]
  $region1: #{sub.12} parent=0
    #allocation0 [shape = 'u8[32768]{0}', space=vmem, size = 0x8000, scoped, tag = 'scoped mem for output reshape']
    %v2 = vld [vmem:[%s0] ss:$24 sm:$0xf]
    %vm3 = vcmask 162816
    %4 = vst.msk [vmem:[#allocation0] sm:$0x3] %vm3, %v2
    %s5 = scalar_lea.vmem [#allocation0], 30
    %6 = vst.msk [vmem:[%s5] sm:$0xc] %vm3, %v2
    %s7 = scalar_lea.vmem %s0, 19
    %v8 = vld [vmem:[%s7] ss:$24 sm:$0xf]
    %s9 = scalar_lea.vmem %s0, 19
    %v10 = vld [vmem:[%s9] ss:$24 sm:$0xf]
    %vm11 = vcmask 31744
    %v12 = vsel %vm11, %v10, %v8
    %13 = vrot.lane.b32.xlu0 %v12, 124
    %v14 = vpop.permute.xlu0 %13
    %vm15 = vcmask 130048
    %s16 = scalar_lea.vmem [#allocation0], 24
    %17 = vst.msk [vmem:[%s16] sm:$0x3] %vm15, %v14
    %s18 = scalar_lea.vmem [#allocation0], 54
    %19 = vst.msk [vmem:[%s18] sm:$0xc] %vm15, %v14
    %vm20 = vcmask 1048544
    %s21 = scalar_lea.vmem [#allocation0], 16
    %22 = vst.msk [vmem:[%s21] sm:$0x3] %vm20, %v14
    %s23 = scalar_lea.vmem [#allocation0], 46
    %24 = vst.msk [vmem:[%s23] sm:$0xc] %vm20, %v14
    %s25 = scalar_lea.vmem %s0, 6
    %v26 = vld [vmem:[%s25] ss:$24 sm:$0xf]
    %s27 = scalar_lea.vmem %s0, 6
    %v28 = vld [vmem:[%s27] ss:$24 sm:$0xf]
    %vm29 = vcmask 64512
    %v30 = vsel %vm29, %v28, %v26
    %31 = vrot.lane.b32.xlu0 %v30, 120
    %v32 = vpop.permute.xlu0 %31
    %vm33 = vcmask 97280
    %s34 = scalar_lea.vmem [#allocation0], 8
    %35 = vst.msk [vmem:[%s34] sm:$0x3] %vm33, %v32
    %s36 = scalar_lea.vmem [#allocation0], 38
    %37 = vst.msk [vmem:[%s36] sm:$0xc] %vm33, %v32
    %vm38 = vcmask 1048512
    %39 = vst.msk [vmem:[#allocation0] sm:$0x3] %vm38, %v32
    %s40 = scalar_lea.vmem [#allocation0], 30
    %41 = vst.msk [vmem:[%s40] sm:$0xc] %vm38, %v32
    %s42 = scalar_lea.vmem %s0, 12
    %v43 = vld [vmem:[%s42] ss:$24 sm:$0xf]
    %s44 = scalar_lea.vmem %s0, 12
    %v45 = vld [vmem:[%s44] ss:$24 sm:$0xf]
    %vm46 = vcmask 130048
    %v47 = vsel %vm46, %v45, %v43
    %48 = vrot.lane.b32.xlu0 %v47, 112
    %v49 = vpop.permute.xlu0 %48
    %vm50 = vcmask 31744
    %s51 = scalar_lea.vmem [#allocation0], 16
    %52 = vst.msk [vmem:[%s51] sm:$0x3] %vm50, %v49
    %s53 = scalar_lea.vmem [#allocation0], 46
    %54 = vst.msk [vmem:[%s53] sm:$0xc] %vm50, %v49
    %vm55 = vcmask 1048448
    %s56 = scalar_lea.vmem [#allocation0], 8
    %57 = vst.msk [vmem:[%s56] sm:$0x3] %vm55, %v49
    %s58 = scalar_lea.vmem [#allocation0], 38
    %59 = vst.msk [vmem:[%s58] sm:$0xc] %vm55, %v49
    %s60 = scalar_lea.vmem %s0, 18
    %v61 = vld [vmem:[%s60] ss:$24 sm:$0xf]
    %62 = vrot.lane.b32.xlu0 %v61, 104
    %v63 = vpop.permute.xlu0 %62
    %vm64 = vcmask 1015616
    %s65 = scalar_lea.vmem [#allocation0], 16
    %66 = vst.msk [vmem:[%s65] sm:$0x3] %vm64, %v63
    %s67 = scalar_lea.vmem [#allocation0], 46
    %68 = vst.msk [vmem:[%s67] sm:$0xc] %vm64, %v63
    %s69 = scalar_lea.vmem %s0, 5
    %v70 = vld [vmem:[%s69] ss:$24 sm:$0xf]
    %71 = vrot.lane.b32.xlu0 %v70, 100
    %v72 = vpop.permute.xlu0 %71
    %vm73 = vcmask 982816
    %74 = vst.msk [vmem:[#allocation0] sm:$0x3] %vm73, %v72
    %s75 = scalar_lea.vmem [#allocation0], 30
    %76 = vst.msk [vmem:[%s75] sm:$0xc] %vm73, %v72
    %s77 = scalar_lea.vmem %s0, 11
    %v78 = vld [vmem:[%s77] ss:$24 sm:$0xf]
    %79 = vrot.lane.b32.xlu0 %v78, 92
    %v80 = vpop.permute.xlu0 %79
    %vm81 = vcmask 917216
    %s82 = scalar_lea.vmem [#allocation0], 8
    %83 = vst.msk [vmem:[%s82] sm:$0x3] %vm81, %v80
    %s84 = scalar_lea.vmem [#allocation0], 38
    %85 = vst.msk [vmem:[%s84] sm:$0xc] %vm81, %v80
    %s86 = scalar_lea.vmem %s0, 17
    %v87 = vld [vmem:[%s86] ss:$24 sm:$0xf]
    %88 = vrot.lane.b32.xlu0 %v87, 84
    %v89 = vpop.permute.xlu0 %88
    %vm90 = vcmask 851616
    %s91 = scalar_lea.vmem [#allocation0], 16
    %92 = vst.msk [vmem:[%s91] sm:$0x3] %vm90, %v89
    %s93 = scalar_lea.vmem [#allocation0], 46
    %94 = vst.msk [vmem:[%s93] sm:$0xc] %vm90, %v89
    %s95 = scalar_lea.vmem %s0, 4
    %v96 = vld [vmem:[%s95] ss:$24 sm:$0xf]
    %97 = vrot.lane.b32.xlu0 %v96, 80
    %v98 = vpop.permute.xlu0 %97
    %vm99 = vcmask 818816
    %100 = vst.msk [vmem:[#allocation0] sm:$0x3] %vm99, %v98
    %s101 = scalar_lea.vmem [#allocation0], 30
    %102 = vst.msk [vmem:[%s101] sm:$0xc] %vm99, %v98
    %s103 = scalar_lea.vmem %s0, 10
    %v104 = vld [vmem:[%s103] ss:$24 sm:$0xf]
    %105 = vrot.lane.b32.xlu0 %v104, 72
    %v106 = vpop.permute.xlu0 %105
    %vm107 = vcmask 753216
    %s108 = scalar_lea.vmem [#allocation0], 8
    %109 = vst.msk [vmem:[%s108] sm:$0x3] %vm107, %v106
    %s110 = scalar_lea.vmem [#allocation0], 38
    %111 = vst.msk [vmem:[%s110] sm:$0xc] %vm107, %v106
    %s112 = scalar_lea.vmem %s0, 16
    %v113 = vld [vmem:[%s112] ss:$24 sm:$0xf]
    %114 = vrot.lane.b32.xlu0 %v113, 64
    %v115 = vpop.permute.xlu0 %114
    %vm116 = vcmask 687616
    %s117 = scalar_lea.vmem [#allocation0], 16
    %118 = vst.msk [vmem:[%s117] sm:$0x3] %vm116, %v115
    %s119 = scalar_lea.vmem [#allocation0], 46
    %120 = vst.msk [vmem:[%s119] sm:$0xc] %vm116, %v115
    %s121 = scalar_lea.vmem %s0, 3
    %v122 = vld [vmem:[%s121] ss:$24 sm:$0xf]
    %123 = vrot.lane.b32.xlu0 %v122, 60
    %v124 = vpop.permute.xlu0 %123
    %vm125 = vcmask 654816
    %126 = vst.msk [vmem:[#allocation0] sm:$0x3] %vm125, %v124
    %s127 = scalar_lea.vmem [#allocation0], 30
    %128 = vst.msk [vmem:[%s127] sm:$0xc] %vm125, %v124
    %s129 = scalar_lea.vmem %s0, 9
    %v130 = vld [vmem:[%s129] ss:$24 sm:$0xf]
    %131 = vrot.lane.b32.xlu0 %v130, 52
    %v132 = vpop.permute.xlu0 %131
    %vm133 = vcmask 589216
    %s134 = scalar_lea.vmem [#allocation0], 8
    %135 = vst.msk [vmem:[%s134] sm:$0x3] %vm133, %v132
    %s136 = scalar_lea.vmem [#allocation0], 38
    %137 = vst.msk [vmem:[%s136] sm:$0xc] %vm133, %v132
    %s138 = scalar_lea.vmem %s0, 15
    %v139 = vld [vmem:[%s138] ss:$24 sm:$0xf]
    %140 = vrot.lane.b32.xlu0 %v139, 44
    %v141 = vpop.permute.xlu0 %140
    %vm142 = vcmask 523616
    %s143 = scalar_lea.vmem [#allocation0], 16
    %144 = vst.msk [vmem:[%s143] sm:$0x3] %vm142, %v141
    %s145 = scalar_lea.vmem [#allocation0], 46
    %146 = vst.msk [vmem:[%s145] sm:$0xc] %vm142, %v141
    %s147 = scalar_lea.vmem %s0, 2
    %v148 = vld [vmem:[%s147] ss:$24 sm:$0xf]
    %149 = vrot.lane.b32.xlu0 %v148, 40
    %v150 = vpop.permute.xlu0 %149
    %vm151 = vcmask 490816
    %152 = vst.msk [vmem:[#allocation0] sm:$0x3] %vm151, %v150
    %s153 = scalar_lea.vmem [#allocation0], 30
    %154 = vst.msk [vmem:[%s153] sm:$0xc] %vm151, %v150
    %s155 = scalar_lea.vmem %s0, 8
    %v156 = vld [vmem:[%s155] ss:$24 sm:$0xf]
    %157 = vrot.lane.b32.xlu0 %v156, 32
    %v158 = vpop.permute.xlu0 %157
    %vm159 = vcmask 425216
    %s160 = scalar_lea.vmem [#allocation0], 8
    %161 = vst.msk [vmem:[%s160] sm:$0x3] %vm159, %v158
    %s162 = scalar_lea.vmem [#allocation0], 38
    %163 = vst.msk [vmem:[%s162] sm:$0xc] %vm159, %v158
    %s164 = scalar_lea.vmem %s0, 14
    %v165 = vld [vmem:[%s164] ss:$24 sm:$0xf]
    %166 = vrot.lane.b32.xlu0 %v165, 24
    %v167 = vpop.permute.xlu0 %166
    %vm168 = vcmask 359616
    %s169 = scalar_lea.vmem [#allocation0], 16
    %170 = vst.msk [vmem:[%s169] sm:$0x3] %vm168, %v167
    %s171 = scalar_lea.vmem [#allocation0], 46
    %172 = vst.msk [vmem:[%s171] sm:$0xc] %vm168, %v167
    %s173 = scalar_lea.vmem %s0, 1
    %v174 = vld [vmem:[%s173] ss:$24 sm:$0xf]
    %175 = vrot.lane.b32.xlu0 %v174, 20
    %v176 = vpop.permute.xlu0 %175
    %vm177 = vcmask 326816
    %178 = vst.msk [vmem:[#allocation0] sm:$0x3] %vm177, %v176
    %s179 = scalar_lea.vmem [#allocation0], 30
    %180 = vst.msk [vmem:[%s179] sm:$0xc] %vm177, %v176
    %s181 = scalar_lea.vmem %s0, 7
    %v182 = vld [vmem:[%s181] ss:$24 sm:$0xf]
    %183 = vrot.lane.b32.xlu0 %v182, 12
    %v184 = vpop.permute.xlu0 %183
    %vm185 = vcmask 261216
    %s186 = scalar_lea.vmem [#allocation0], 8
    %187 = vst.msk [vmem:[%s186] sm:$0x3] %vm185, %v184
    %s188 = scalar_lea.vmem [#allocation0], 38
    %189 = vst.msk [vmem:[%s188] sm:$0xc] %vm185, %v184
    %s190 = scalar_lea.vmem %s0, 13
    %v191 = vld [vmem:[%s190] ss:$24 sm:$0xf]
    %192 = vrot.lane.b32.xlu0 %v191, 4
    %v193 = vpop.permute.xlu0 %192
    %vm194 = vcmask 195616
    %s195 = scalar_lea.vmem [#allocation0], 16
    %196 = vst.msk [vmem:[%s195] sm:$0x3] %vm194, %v193
    %s197 = scalar_lea.vmem [#allocation0], 46
    %198 = vst.msk [vmem:[%s197] sm:$0xc] %vm194, %v193
    %s200 = sshllo.u32 0, 2
    %v202 = vld [vmem:[#allocation0] sm:%s200]
    %s203 = sshllo.u32 0, 2
    %204 = vst [vmem:[%s1] sm:%s203] %v202
    %s205 = scalar_lea.vmem [#allocation0], 8
    %v206 = vld [vmem:[%s205] sm:%s200]
    %s207 = sshllo.u32 0, 2
    %s208 = scalar_lea.vmem %s1, 2
    %209 = vst [vmem:[%s208] sm:%s207] %v206
    %s210 = scalar_lea.vmem [#allocation0], 16
    %v211 = vld [vmem:[%s210] sm:%s200]
    %s212 = sshllo.u32 0, 2
    %s213 = smul.addr 2, 2
    %s214 = scalar_lea.vmem %s1, %s213
    %215 = vst [vmem:[%s214] sm:%s212] %v211
    %s216 = scalar_lea.vmem [#allocation0], 24
    %v217 = vld [vmem:[%s216] sm:%s200]
    %s218 = sshllo.u32 0, 2
    %s219 = smul.addr 2, 3
    %s220 = scalar_lea.vmem %s1, %s219
    %221 = vst [vmem:[%s220] sm:%s218] %v217
    %s222 = scalar_lea.vmem [#allocation0], 32
    %v223 = vld [vmem:[%s222] sm:%s200]
    %s224 = sshllo.u32 0, 2
    %s225 = smul.addr 2, 4
    %s226 = scalar_lea.vmem %s1, %s225
    %227 = vst [vmem:[%s226] sm:%s224] %v223
    %s228 = scalar_lea.vmem [#allocation0], 40
    %v229 = vld [vmem:[%s228] sm:%s200]
    %s230 = sshllo.u32 0, 2
    %s231 = smul.addr 2, 5
    %s232 = scalar_lea.vmem %s1, %s231
    %233 = vst [vmem:[%s232] sm:%s230] %v229
    %s234 = scalar_lea.vmem [#allocation0], 48
    %v235 = vld [vmem:[%s234] sm:%s200]
    %s236 = sshllo.u32 0, 2
    %s237 = smul.addr 2, 6
    %s238 = scalar_lea.vmem %s1, %s237
    %239 = vst [vmem:[%s238] sm:%s236] %v235
    %s240 = scalar_lea.vmem [#allocation0], 56
    %v241 = vld [vmem:[%s240] sm:%s200]
    %s242 = sshllo.u32 0, 2
    %s243 = smul.addr 2, 7
    %s244 = scalar_lea.vmem %s1, %s243
    %245 = vst [vmem:[%s244] sm:%s242] %v241

// kernel: custom-call.14
$region0: #{custom-call.14}
  %s0 = inlined_call_operand.vmem [shape: f32[4,10,10], index: 0, kind: input, shape index: {}]
  %s1 = inlined_call_operand.vmem [shape: f32[4,10,10], index: 1, kind: input, shape index: {}]
  %s2 = inlined_call_operand.vmem [shape: f32[4,10,10], index: 2, kind: input, shape index: {}]
  %s3 = inlined_call_operand.vmem [shape: f32[4,10,10], index: 3, kind: input, shape index: {}]
  %s4 = inlined_call_operand.vmem [shape: f32[4,10], index: 4, kind: output, shape index: {0}]
  %s5 = inlined_call_operand.vmem [shape: f32[4,10], index: 5, kind: output, shape index: {1}]
  %s6 = inlined_call_operand.vmem [shape: f32[4,10,10], index: 6, kind: output, shape index: {2}]
  %s7 = inlined_call_operand.vmem [shape: f32[4,10,10], index: 7, kind: output, shape index: {3}]
  %s8 = inlined_call_operand.vmem [shape: f32[4,10,10], index: 8, kind: output, shape index: {4}]
  %s9 = inlined_call_operand.vmem [shape: f32[4,10,10], index: 9, kind: output, shape index: {5}]
  %10 = xla_tuple %s4, %s5, %s6, %s7, %s8, %s9
  $region1: #{custom-call.14} parent=0
    #allocation0 [shape = 'u8[16384]{0}', space=vmem, size = 0x4000, scoped, tag = 'operand span for operand 0']
    #allocation1 [shape = 'u8[16384]{0}', space=vmem, size = 0x4000, scoped, tag = 'operand span for operand 1']
    #allocation2 [shape = 'u8[16384]{0}', space=vmem, size = 0x4000, scoped, tag = 'operand span for operand 2']
    #allocation3 [shape = 'u8[16384]{0}', space=vmem, size = 0x4000, scoped, tag = 'operand span for operand 3']
    #allocation4 [shape = 'u8[4096]{0}', space=vmem, size = 0x1000, scoped, tag = 'operand span for operand 4']
    #allocation5 [shape = 'u8[4096]{0}', space=vmem, size = 0x1000, scoped, tag = 'packed  for operand 4']
    #allocation6 [shape = 'u8[4096]{0}', space=vmem, size = 0x1000, scoped, tag = 'operand span for operand 5']
    #allocation7 [shape = 'u8[4096]{0}', space=vmem, size = 0x1000, scoped, tag = 'packed  for operand 5']
    #allocation8 [shape = 'u8[16384]{0}', space=vmem, size = 0x4000, scoped, tag = 'operand span for operand 6']
    #allocation9 [shape = 'u8[16384]{0}', space=vmem, size = 0x4000, scoped, tag = 'operand span for operand 7']
    #allocation10 [shape = 'u8[16384]{0}', space=vmem, size = 0x4000, scoped, tag = 'operand span for operand 8']
    #allocation11 [shape = 'u8[16384]{0}', space=vmem, size = 0x4000, scoped, tag = 'operand span for operand 9']
    loop: start=0, step=1, limit=6
    $region2: #{custom-call.14} parent=1 // loop_pre_header
      _
    $region3: #{custom-call.14} parent=1 // loop_header
      %s12 = sphi 0, %s16
      %p13 = scmp.ge.s32.totalorder %s12, 6
      %s24 = sphi 0, %s26
      %s27 = sphi 0, %s24
      %s28 = sphi 0, %s27
      %s44 = sphi 0, %s28
      %s52 = sphi 0, %s54
      %s55 = sphi 0, %s52
      %s56 = sphi 0, %s55
      %s72 = sphi 0, %s56
    $region4: #{custom-call.14} parent=1 // loop_header_branch
      %15 = sbr.rel (%p13) target = $region8
    $region5: #{custom-call.14} parent=1 // loop_body
      %s17 = ssub.s32 %s12, 1
      %s18 = ssub.s32 %s12, 2
      %s19 = sadd.s32 %s12, 1
      %s20 = sshrl.u32 %s12, 3
      %s21 = sshrl.u32 %s19, 3
      %s22 = ssub.s32 %s20, %s21
      %p23 = scmp.eq.s32.totalorder %s22, 0
      %s25 = sadd.s32 %s24, 1
      %s26 = scalar_select %p23, %s24, %s25
      %p29 = pneg %p23
      %p30 = scmp.eq.s32.totalorder %s12, 3
      %p31 = por %p29, %p30
      %p32 = scmp.ne.s32.totalorder %s24, %s27
      %p33 = scmp.eq.s32.totalorder %s12, 0
      %p34 = por %p32, %p33
      %p35 = scmp.ne.s32.totalorder %s24, %s27
      %p36 = scmp.eq.s32.totalorder %s17, 3
      %p37 = por %p35, %p36
      %p38 = scmp.ne.s32.totalorder %s27, %s28
      %p39 = scmp.eq.s32.totalorder %s17, 0
      %p40 = por %p38, %p39
      %p41 = scmp.ne.s32.totalorder %s27, %s28
      %p42 = scmp.eq.s32.totalorder %s18, 3
      %p43 = por %p41, %p42
      %p45 = scmp.ne.s32.totalorder %s28, %s44
      %p46 = scmp.eq.s32.totalorder %s18, 0
      %p47 = por %p45, %p46
      %s48 = sshrl.u32 %s12, 3
      %s49 = sshrl.u32 %s19, 3
      %s50 = ssub.s32 %s48, %s49
      %p51 = scmp.eq.s32.totalorder %s50, 0
      %s53 = sadd.s32 %s52, 1
      %s54 = scalar_select %p51, %s52, %s53
      %p57 = pneg %p51
      %p58 = scmp.eq.s32.totalorder %s12, 3
      %p59 = por %p57, %p58
      %p60 = scmp.ne.s32.totalorder %s52, %s55
      %p61 = scmp.eq.s32.totalorder %s12, 0
      %p62 = por %p60, %p61
      %p63 = scmp.ne.s32.totalorder %s52, %s55
      %p64 = scmp.eq.s32.totalorder %s17, 3
      %p65 = por %p63, %p64
      %p66 = scmp.ne.s32.totalorder %s55, %s56
      %p67 = scmp.eq.s32.totalorder %s17, 0
      %p68 = por %p66, %p67
      %p69 = scmp.ne.s32.totalorder %s55, %s56
      %p70 = scmp.eq.s32.totalorder %s18, 3
      %p71 = por %p69, %p70
      %p73 = scmp.ne.s32.totalorder %s56, %s72
      %p74 = scmp.eq.s32.totalorder %s18, 0
      %p75 = por %p73, %p74
      %p76 = scmp.le.s32.totalorder 1, %s12
      %p77 = scmp.lt.s32.totalorder %s12, 5
      %p78 = pnand %p76, %p77
      %p79 = pneg %p78
      // Predicated region
      $region9: #{custom-call.14} parent=5 // pred_check
        _
      $region10: #{custom-call.14} parent=5 // pred_check_branch
        %81 = sbr.rel (%p78) target = $region12
      $region11: #{custom-call.14} parent=5 // pred_region
        %s82 = ssub.s32 %s12, 1
      $region12: #{custom-call.14} parent=5 // pred_fallthru
        _
      %p83 = scmp.lt.s32.totalorder %s12, 4
      // Predicated region
      $region13: #{custom-call.14} parent=5 // pred_check
        %p84 = pneg %p83
      $region14: #{custom-call.14} parent=5 // pred_check_branch
        %86 = sbr.rel (%p84) target = $region16
      $region15: #{custom-call.14} parent=5 // pred_region
        %s87 = sand.u32 %s12, 1
        %s88 = sand.u32 %s12, 1
        %s89 = smul.addr %s88, 16
        %s90 = scalar_lea.vmem [#allocation0], %s89
        %s91 = smul.addr %s12, 16
        %s92 = scalar_lea.vmem %s0, %s91
        // Predicated region
        $region17: #{custom-call.14} parent=15 // pred_check
          _
        $region18: #{custom-call.14} parent=15 // pred_check_branch
          %94 = sbr.rel (0) target = $region20
        $region19: #{custom-call.14} parent=15 // pred_region
          // Predicated region
          $region21: #{custom-call.14} parent=19 // pred_check
            _
          $region22: #{custom-call.14} parent=19 // pred_check_branch
            %96 = sbr.rel (0) target = $region24
          $region23: #{custom-call.14} parent=19 // pred_region
            loop: start=0, step=1, limit=1
            $region25: #{custom-call.14} parent=23 // loop_pre_header
              _
            $region26: #{custom-call.14} parent=23 // loop_header
              %s98 = sphi 0, %s102
              %p99 = scmp.ge.s32.totalorder %s98, 1
              %s103 = sphi %s92, %s92
              %s104 = sphi %s90, %s90
            $region27: #{custom-call.14} parent=23 // loop_header_branch
              %101 = sbr.rel (%p99) target = $region31
            $region28: #{custom-call.14} parent=23 // loop_body
              %v105 = vld [vmem:[%s103] sm:$0xff]
              %106 = vst [vmem:[%s104] sm:$0xff] %v105
              %v107 = vld [vmem:[%s103 + $0x8] sm:$0xff]
              %108 = vst [vmem:[%s104 + $0x8] sm:$0xff] %v107
            $region29: #{custom-call.14} parent=23 // loop_footer
              %s102 = sadd.s32 1, %s98
            $region30: #{custom-call.14} parent=23 // loop_footer_branch
              %97 = sbr.rel target = $region26
            $region31: #{custom-call.14} parent=23 // loop_exit
              _
          $region24: #{custom-call.14} parent=19 // pred_fallthru
            _
          // Predicated region
          $region32: #{custom-call.14} parent=19 // pred_check
            _
          $region33: #{custom-call.14} parent=19 // pred_check_branch
            %110 = sbr.rel target = $region35
          $region34: #{custom-call.14} parent=19 // pred_region
            _
          $region35: #{custom-call.14} parent=19 // pred_fallthru
            _
        $region20: #{custom-call.14} parent=15 // pred_fallthru
          _
        %111 = vnop
        %s112 = sand.u32 %s12, 1
        %s113 = sand.u32 %s12, 1
        %s114 = smul.addr %s113, 16
        %s115 = scalar_lea.vmem [#allocation1], %s114
        %s116 = smul.addr %s12, 16
        %s117 = scalar_lea.vmem %s1, %s116
        // Predicated region
        $region36: #{custom-call.14} parent=15 // pred_check
          _
        $region37: #{custom-call.14} parent=15 // pred_check_branch
          %119 = sbr.rel (0) target = $region39
        $region38: #{custom-call.14} parent=15 // pred_region
          // Predicated region
          $region40: #{custom-call.14} parent=38 // pred_check
            _
          $region41: #{custom-call.14} parent=38 // pred_check_branch
            %121 = sbr.rel (0) target = $region43
          $region42: #{custom-call.14} parent=38 // pred_region
            loop: start=0, step=1, limit=1
            $region44: #{custom-call.14} parent=42 // loop_pre_header
              _
            $region45: #{custom-call.14} parent=42 // loop_header
              %s123 = sphi 0, %s127
              %p124 = scmp.ge.s32.totalorder %s123, 1
              %s128 = sphi %s117, %s117
              %s129 = sphi %s115, %s115
            $region46: #{custom-call.14} parent=42 // loop_header_branch
              %126 = sbr.rel (%p124) target = $region50
            $region47: #{custom-call.14} parent=42 // loop_body
              %v130 = vld [vmem:[%s128] sm:$0xff]
              %131 = vst [vmem:[%s129] sm:$0xff] %v130
              %v132 = vld [vmem:[%s128 + $0x8] sm:$0xff]
              %133 = vst [vmem:[%s129 + $0x8] sm:$0xff] %v132
            $region48: #{custom-call.14} parent=42 // loop_footer
              %s127 = sadd.s32 1, %s123
            $region49: #{custom-call.14} parent=42 // loop_footer_branch
              %122 = sbr.rel target = $region45
            $region50: #{custom-call.14} parent=42 // loop_exit
              _
          $region43: #{custom-call.14} parent=38 // pred_fallthru
            _
          // Predicated region
          $region51: #{custom-call.14} parent=38 // pred_check
            _
          $region52: #{custom-call.14} parent=38 // pred_check_branch
            %135 = sbr.rel target = $region54
          $region53: #{custom-call.14} parent=38 // pred_region
            _
          $region54: #{custom-call.14} parent=38 // pred_fallthru
            _
        $region39: #{custom-call.14} parent=15 // pred_fallthru
          _
        %136 = vnop
        %s137 = sand.u32 %s12, 1
        %s138 = sand.u32 %s12, 1
        %s139 = smul.addr %s138, 16
        %s140 = scalar_lea.vmem [#allocation2], %s139
        %s141 = smul.addr %s12, 16
        %s142 = scalar_lea.vmem %s2, %s141
        // Predicated region
        $region55: #{custom-call.14} parent=15 // pred_check
          _
        $region56: #{custom-call.14} parent=15 // pred_check_branch
          %144 = sbr.rel (0) target = $region58
        $region57: #{custom-call.14} parent=15 // pred_region
          // Predicated region
          $region59: #{custom-call.14} parent=57 // pred_check
            _
          $region60: #{custom-call.14} parent=57 // pred_check_branch
            %146 = sbr.rel (0) target = $region62
          $region61: #{custom-call.14} parent=57 // pred_region
            loop: start=0, step=1, limit=1
            $region63: #{custom-call.14} parent=61 // loop_pre_header
              _
            $region64: #{custom-call.14} parent=61 // loop_header
              %s148 = sphi 0, %s152
              %p149 = scmp.ge.s32.totalorder %s148, 1
              %s153 = sphi %s142, %s142
              %s154 = sphi %s140, %s140
            $region65: #{custom-call.14} parent=61 // loop_header_branch
              %151 = sbr.rel (%p149) target = $region69
            $region66: #{custom-call.14} parent=61 // loop_body
              %v155 = vld [vmem:[%s153] sm:$0xff]
              %156 = vst [vmem:[%s154] sm:$0xff] %v155
              %v157 = vld [vmem:[%s153 + $0x8] sm:$0xff]
              %158 = vst [vmem:[%s154 + $0x8] sm:$0xff] %v157
            $region67: #{custom-call.14} parent=61 // loop_footer
              %s152 = sadd.s32 1, %s148
            $region68: #{custom-call.14} parent=61 // loop_footer_branch
              %147 = sbr.rel target = $region64
            $region69: #{custom-call.14} parent=61 // loop_exit
              _
          $region62: #{custom-call.14} parent=57 // pred_fallthru
            _
          // Predicated region
          $region70: #{custom-call.14} parent=57 // pred_check
            _
          $region71: #{custom-call.14} parent=57 // pred_check_branch
            %160 = sbr.rel target = $region73
          $region72: #{custom-call.14} parent=57 // pred_region
            _
          $region73: #{custom-call.14} parent=57 // pred_fallthru
            _
        $region58: #{custom-call.14} parent=15 // pred_fallthru
          _
        %161 = vnop
        %s162 = sand.u32 %s12, 1
        %s163 = sand.u32 %s12, 1
        %s164 = smul.addr %s163, 16
        %s165 = scalar_lea.vmem [#allocation3], %s164
        %s166 = smul.addr %s12, 16
        %s167 = scalar_lea.vmem %s3, %s166
        // Predicated region
        $region74: #{custom-call.14} parent=15 // pred_check
          _
        $region75: #{custom-call.14} parent=15 // pred_check_branch
          %169 = sbr.rel (0) target = $region77
        $region76: #{custom-call.14} parent=15 // pred_region
          // Predicated region
          $region78: #{custom-call.14} parent=76 // pred_check
            _
          $region79: #{custom-call.14} parent=76 // pred_check_branch
            %171 = sbr.rel (0) target = $region81
          $region80: #{custom-call.14} parent=76 // pred_region
            loop: start=0, step=1, limit=1
            $region82: #{custom-call.14} parent=80 // loop_pre_header
              _
            $region83: #{custom-call.14} parent=80 // loop_header
              %s173 = sphi 0, %s177
              %p174 = scmp.ge.s32.totalorder %s173, 1
              %s178 = sphi %s167, %s167
              %s179 = sphi %s165, %s165
            $region84: #{custom-call.14} parent=80 // loop_header_branch
              %176 = sbr.rel (%p174) target = $region88
            $region85: #{custom-call.14} parent=80 // loop_body
              %v180 = vld [vmem:[%s178] sm:$0xff]
              %181 = vst [vmem:[%s179] sm:$0xff] %v180
              %v182 = vld [vmem:[%s178 + $0x8] sm:$0xff]
              %183 = vst [vmem:[%s179 + $0x8] sm:$0xff] %v182
            $region86: #{custom-call.14} parent=80 // loop_footer
              %s177 = sadd.s32 1, %s173
            $region87: #{custom-call.14} parent=80 // loop_footer_branch
              %172 = sbr.rel target = $region83
            $region88: #{custom-call.14} parent=80 // loop_exit
              _
          $region81: #{custom-call.14} parent=76 // pred_fallthru
            _
          // Predicated region
          $region89: #{custom-call.14} parent=76 // pred_check
            _
          $region90: #{custom-call.14} parent=76 // pred_check_branch
            %185 = sbr.rel target = $region92
          $region91: #{custom-call.14} parent=76 // pred_region
            _
          $region92: #{custom-call.14} parent=76 // pred_fallthru
            _
        $region77: #{custom-call.14} parent=15 // pred_fallthru
          _
        %186 = vnop
      $region16: #{custom-call.14} parent=5 // pred_fallthru
        _
      %p187 = scmp.le.s32.totalorder 1, %s12
      %p188 = scmp.lt.s32.totalorder %s12, 5
      %p189 = pnand %p187, %p188
      %p190 = pneg %p189
      // Predicated region
      $region93: #{custom-call.14} parent=5 // pred_check
        _
      $region94: #{custom-call.14} parent=5 // pred_check_branch
        %192 = sbr.rel (%p189) target = $region96
      $region95: #{custom-call.14} parent=5 // pred_region
        #allocation12 [shape = 'f32[10,10]{1,0}', space=vmem, size = 0x2000, scoped, tag = 'a top-left matrix']
        #allocation13 [shape = 'f32[10,10]{1,0}', space=vmem, size = 0x2000, scoped, tag = 'a top-right matrix']
        #allocation14 [shape = 'f32[10,10]{1,0}', space=vmem, size = 0x2000, scoped, tag = 'a bottom-left matrix']
        #allocation15 [shape = 'f32[10,10]{1,0}', space=vmem, size = 0x2000, scoped, tag = 'a bottom-right matrix']
        %s193 = ssub.s32 %s12, 1
        %s194 = sand.u32 %s17, 1
        %s195 = sand.u32 %s17, 1
        %s196 = smul.addr %s195, 16
        %s197 = scalar_lea.vmem [#allocation0], %s196
        %s198 = sand.u32 %s17, 1
        %s199 = sand.u32 %s17, 1
        %s200 = smul.addr %s199, 16
        %s201 = scalar_lea.vmem [#allocation1], %s200
        %s202 = sand.u32 %s17, 1
        %s203 = sand.u32 %s17, 1
        %s204 = smul.addr %s203, 16
        %s205 = scalar_lea.vmem [#allocation2], %s204
        %s206 = sand.u32 %s17, 1
        %s207 = sand.u32 %s17, 1
        %s208 = smul.addr %s207, 16
        %s209 = scalar_lea.vmem [#allocation3], %s208
        %s210 = sand.u32 %s17, 1
        %s211 = sand.u32 %s17, 1
        %s212 = smul.addr %s211, 16
        %s213 = scalar_lea.vmem [#allocation0], %s212
        %s214 = sand.u32 %s17, 1
        %s215 = sand.u32 %s17, 1
        %s216 = smul.addr %s215, 16
        %s217 = scalar_lea.vmem [#allocation1], %s216
        %s218 = sand.u32 %s17, 1
        %s219 = sand.u32 %s17, 1
        %s220 = smul.addr %s219, 16
        %s221 = scalar_lea.vmem [#allocation2], %s220
        %s222 = sand.u32 %s17, 1
        %s223 = sand.u32 %s17, 1
        %s224 = smul.addr %s223, 16
        %s225 = scalar_lea.vmem [#allocation3], %s224
        %p226 = pneg %p40
        %p227 = pneg %p37
        %s228 = sand.u32 %s27, 1
        %s229 = sand.u32 %s27, 1
        %s230 = smul.addr %s229, 4
        %s231 = scalar_lea.vmem [#allocation5], %s230
        %p232 = pneg %p68
        %p233 = pneg %p65
        %s234 = sand.u32 %s55, 1
        %s235 = sand.u32 %s55, 1
        %s236 = smul.addr %s235, 4
        %s237 = scalar_lea.vmem [#allocation7], %s236
        %s238 = sand.u32 %s17, 1
        %s239 = sand.u32 %s17, 1
        %s240 = smul.addr %s239, 16
        %s241 = scalar_lea.vmem [#allocation8], %s240
        %s242 = sand.u32 %s17, 1
        %s243 = sand.u32 %s17, 1
        %s244 = smul.addr %s243, 16
        %s245 = scalar_lea.vmem [#allocation9], %s244
        %s246 = sand.u32 %s17, 1
        %s247 = sand.u32 %s17, 1
        %s248 = smul.addr %s247, 16
        %s249 = scalar_lea.vmem [#allocation10], %s248
        %s250 = sand.u32 %s17, 1
        %s251 = sand.u32 %s17, 1
        %s252 = smul.addr %s251, 16
        %s253 = scalar_lea.vmem [#allocation11], %s252
        %s254 = sshrl.u32 %s17, 3
        %s255 = sshrl.u32 %s17, 3
        %s256 = smov [#allocation12]
        %v257 = vld [vmem:[%s197] sm:$0xff]
        %258 = vst [vmem:[%s256] sm:$0xff] %v257
        %s259 = scalar_lea.vmem %s256, 8
        %s260 = scalar_lea.vmem %s197, 8 [#allocation0]
        %v261 = vld [vmem:[%s260] sm:$0xff]
        %262 = vst [vmem:[%s259] sm:$0xff] %v261
        %s263 = smov [#allocation13]
        %v264 = vld [vmem:[%s201] sm:$0xff]
        %265 = vst [vmem:[%s263] sm:$0xff] %v264
        %s266 = scalar_lea.vmem %s263, 8
        %s267 = scalar_lea.vmem %s201, 8 [#allocation1]
        %v268 = vld [vmem:[%s267] sm:$0xff]
        %269 = vst [vmem:[%s266] sm:$0xff] %v268
        %s270 = smov [#allocation14]
        %v271 = vld [vmem:[%s205] sm:$0xff]
        %272 = vst [vmem:[%s270] sm:$0xff] %v271
        %s273 = scalar_lea.vmem %s270, 8
        %s274 = scalar_lea.vmem %s205, 8 [#allocation2]
        %v275 = vld [vmem:[%s274] sm:$0xff]
        %276 = vst [vmem:[%s273] sm:$0xff] %v275
        %s277 = smov [#allocation15]
        %v278 = vld [vmem:[%s209] sm:$0xff]
        %279 = vst [vmem:[%s277] sm:$0xff] %v278
        %s280 = scalar_lea.vmem %s277, 8
        %s281 = scalar_lea.vmem %s209, 8 [#allocation3]
        %v282 = vld [vmem:[%s281] sm:$0xff]
        %283 = vst [vmem:[%s280] sm:$0xff] %v282
        %284 = vst [vmem:[%s241] sm:$0xff] 0.0
        %s285 = scalar_lea.vmem %s241, 8 [#allocation8]
        %286 = vst [vmem:[%s285] sm:$0xff] 0.0
        %287 = vst [vmem:[%s245] sm:$0xff] 0.0
        %s288 = scalar_lea.vmem %s245, 8 [#allocation9]
        %289 = vst [vmem:[%s288] sm:$0xff] 0.0
        %290 = vst [vmem:[%s249] sm:$0xff] 0.0
        %s291 = scalar_lea.vmem %s249, 8 [#allocation10]
        %292 = vst [vmem:[%s291] sm:$0xff] 0.0
        %293 = vst [vmem:[%s253] sm:$0xff] 0.0
        %s294 = scalar_lea.vmem %s253, 8 [#allocation11]
        %295 = vst [vmem:[%s294] sm:$0xff] 0.0
        %s296 = smov %s241
        %v297 = vlaneseq
        %v298 = vand.u32 %v297, 127
        %v299 = vmov %v298
        %v300 = vlaneseq
        %v301 = vshrl.u32 %v300, 7
        %v302 = vmov %v301
        %v303 = vld [vmem:[%s296] sm:$0xff]
        %vm306 = vcmp.eq.s32.totalorder %v302, %v299
        %v307 = vsel %vm306, 1.0, %v303
        %308 = vst [vmem:[%s296] sm:$0xff] %v307
        %s309 = scalar_lea.vmem %s296, 8
        %v310 = vld [vmem:[%s309] sm:$0x3]
        %v312 = vadd.s32 %v302, 8
        %vm313 = vcmp.eq.s32.totalorder %v312, %v299
        %v314 = vsel %vm313, 1.0, %v310
        %315 = vst [vmem:[%s309] sm:$0x3] %v314
        %s316 = smov %s253
        %v317 = vlaneseq
        %v318 = vand.u32 %v317, 127
        %v319 = vmov %v318
        %v320 = vlaneseq
        %v321 = vshrl.u32 %v320, 7
        %v322 = vmov %v321
        %v323 = vld [vmem:[%s316] sm:$0xff]
        %vm326 = vcmp.eq.s32.totalorder %v322, %v319
        %v327 = vsel %vm326, 1.0, %v323
        %328 = vst [vmem:[%s316] sm:$0xff] %v327
        %s329 = scalar_lea.vmem %s316, 8
        %v330 = vld [vmem:[%s329] sm:$0x3]
        %v332 = vadd.s32 %v322, 8
        %vm333 = vcmp.eq.s32.totalorder %v332, %v319
        %v334 = vsel %vm333, 1.0, %v330
        %335 = vst [vmem:[%s329] sm:$0x3] %v334
        // While loop
        $region97: #{custom-call.14} parent=95 // loop_pre_header
          _
        $region98: #{custom-call.14} parent=95 // loop_header
          %s337 = sphi 0, %s1235
          %v338 = vlaneseq
          %v339 = vand.u32 %v338, 127
          %v340 = vmov %v339
          %v341 = vlaneseq
          %v342 = vshrl.u32 %v341, 7
          %v343 = vmov %v342
          %s344 = smov [#allocation12]
          %v345 = vlaneseq
          %v346 = vand.u32 %v345, 127
          %vm347 = vcmp.ge.s32.totalorder %v346, 0
          %vm348 = vcmp.lt.s32.totalorder %v346, 10
          %vm349 = vmand %vm347, %vm348
          %v350 = vld [vmem:[%s344] sm:$0xff]
          %v351 = vsel %vm349, %v350, 0.0
          %v352 = vmul.f32 %v351, %v351
          %vm355 = vcmp.eq.s32.totalorder %v343, %v340
          %v356 = vsel %vm355, 0.0, %v352
          %s357 = scalar_lea.vmem %s344, 8
          %v358 = vld [vmem:[%s357] sm:$0x3]
          %v359 = vsel %vm349, %v358, 0.0
          %v360 = vmul.f32 %v359, %v359
          %v362 = vadd.s32 %v343, 8
          %vm363 = vcmp.eq.s32.totalorder %v362, %v340
          %v364 = vsel %vm363, 0.0, %v360
          %v365 = vadd.f32 %v356, %v364
          %v366 = vadd.f32 %v352, %v360
          %v367 = vlaneseq
          %v368 = vand.u32 %v367, 127
          %v369 = vmov %v368
          %v370 = vlaneseq
          %v371 = vshrl.u32 %v370, 7
          %v372 = vmov %v371
          %s373 = smov [#allocation13]
          %v374 = vlaneseq
          %v375 = vand.u32 %v374, 127
          %vm376 = vcmp.ge.s32.totalorder %v375, 0
          %vm377 = vcmp.lt.s32.totalorder %v375, 10
          %vm378 = vmand %vm376, %vm377
          %v379 = vld [vmem:[%s373] sm:$0xff]
          %v380 = vsel %vm378, %v379, 0.0
          %v381 = vmul.f32 %v380, %v380
          %v382 = vadd.f32 %v365, %v381
          %v383 = vadd.f32 %v366, %v381
          %s384 = scalar_lea.vmem %s373, 8
          %v385 = vld [vmem:[%s384] sm:$0x3]
          %v386 = vsel %vm378, %v385, 0.0
          %v387 = vmul.f32 %v386, %v386
          %v388 = vadd.f32 %v382, %v387
          %v389 = vadd.f32 %v383, %v387
          %v390 = vlaneseq
          %v391 = vand.u32 %v390, 127
          %v392 = vmov %v391
          %v393 = vlaneseq
          %v394 = vshrl.u32 %v393, 7
          %v395 = vmov %v394
          %s396 = smov [#allocation14]
          %v397 = vlaneseq
          %v398 = vand.u32 %v397, 127
          %vm399 = vcmp.ge.s32.totalorder %v398, 0
          %vm400 = vcmp.lt.s32.totalorder %v398, 10
          %vm401 = vmand %vm399, %vm400
          %v402 = vld [vmem:[%s396] sm:$0xff]
          %v403 = vsel %vm401, %v402, 0.0
          %v404 = vmul.f32 %v403, %v403
          %v405 = vadd.f32 %v388, %v404
          %v406 = vadd.f32 %v389, %v404
          %s407 = scalar_lea.vmem %s396, 8
          %v408 = vld [vmem:[%s407] sm:$0x3]
          %v409 = vsel %vm401, %v408, 0.0
          %v410 = vmul.f32 %v409, %v409
          %v411 = vadd.f32 %v405, %v410
          %v412 = vadd.f32 %v406, %v410
          %v413 = vlaneseq
          %v414 = vand.u32 %v413, 127
          %v415 = vmov %v414
          %v416 = vlaneseq
          %v417 = vshrl.u32 %v416, 7
          %v418 = vmov %v417
          %s419 = smov [#allocation15]
          %v420 = vlaneseq
          %v421 = vand.u32 %v420, 127
          %vm422 = vcmp.ge.s32.totalorder %v421, 0
          %vm423 = vcmp.lt.s32.totalorder %v421, 10
          %vm424 = vmand %vm422, %vm423
          %v425 = vld [vmem:[%s419] sm:$0xff]
          %v426 = vsel %vm424, %v425, 0.0
          %v427 = vmul.f32 %v426, %v426
          %vm430 = vcmp.eq.s32.totalorder %v418, %v415
          %v431 = vsel %vm430, 0.0, %v427
          %v432 = vadd.f32 %v411, %v431
          %v433 = vadd.f32 %v412, %v427
          %s434 = scalar_lea.vmem %s419, 8
          %v435 = vld [vmem:[%s434] sm:$0x3]
          %v436 = vsel %vm424, %v435, 0.0
          %v437 = vmul.f32 %v436, %v436
          %v439 = vadd.s32 %v418, 8
          %vm440 = vcmp.eq.s32.totalorder %v439, %v415
          %v441 = vsel %vm440, 0.0, %v437
          %v442 = vadd.f32 %v432, %v441
          %v443 = vadd.f32 %v433, %v437
          %444 = vadd.xlane.f32.xlu0 %v443
          %v445 = vpop.xlane.xlu0 %444
          %v446 = vrot.slane %v445, 4
          %v447 = vadd.f32 %v445, %v446
          %v448 = vrot.slane %v447, 2
          %v449 = vadd.f32 %v447, %v448
          %v450 = vrot.slane %v449, 1
          %v451 = vadd.f32 %v449, %v450
          %452 = vadd.xlane.f32.xlu0 %v442
          %v453 = vpop.xlane.xlu0 %452
          %v454 = vrot.slane %v453, 4
          %v455 = vadd.f32 %v453, %v454
          %v456 = vrot.slane %v455, 2
          %v457 = vadd.f32 %v455, %v456
          %v458 = vrot.slane %v457, 1
          %v459 = vadd.f32 %v457, %v458
          %s460 = vtos %v459
          %s461 = vtos %v451
          %s462 = smul.f32 1e-10, %s461
          %p463 = scmp.le.f32.partialorder %s460, %s462
          %p464 = scmp.ge.s32.totalorder %s337, 15
          %p465 = por %p463, %p464
        $region99: #{custom-call.14} parent=95 // loop_header_branch
          %1237 = sbr.rel (%p465) target = $region103
        $region100: #{custom-call.14} parent=95 // loop_body
          loop: start=0, step=1, limit=19
          $region104: #{custom-call.14} parent=100 // loop_pre_header
            _
          $region105: #{custom-call.14} parent=100 // loop_header
            %s467 = sphi 0, %s471
            %p468 = scmp.ge.s32.totalorder %s467, 19
          $region106: #{custom-call.14} parent=100 // loop_header_branch
            %470 = sbr.rel (%p468) target = $region110
          $region107: #{custom-call.14} parent=100 // loop_body
            #allocation16 [shape = 'f32[1024]{0}', space=vmem, size = 0x1000, scoped, tag = 'a_tl_diag vmem']
            #allocation17 [shape = 'f32[1024]{0}', space=vmem, size = 0x1000, scoped, tag = 'a_tr_diag vmem']
            #allocation18 [shape = 'f32[1024]{0}', space=vmem, size = 0x1000, scoped, tag = 'a_br_diag vmem']
            #allocation19 [shape = 'f32[1024]{0}', space=vmem, size = 0x1000, scoped, tag = 'rt1 vmem']
            #allocation20 [shape = 'f32[1024]{0}', space=vmem, size = 0x1000, scoped, tag = 'rt2 vmem']
            #allocation21 [shape = 'f32[1024]{0}', space=vmem, size = 0x1000, scoped, tag = 'c vmem']
            #allocation22 [shape = 'f32[1024]{0}', space=vmem, size = 0x1000, scoped, tag = 's vmem']
            #allocation23 [shape = 'f32[8192]{0}', space=vmem, size = 0x8000, scoped, tag = 'c broadcast']
            #allocation24 [shape = 'f32[8192]{0}', space=vmem, size = 0x8000, scoped, tag = 's broadcast']
            %s472 = smov [#allocation12]
            %s473 = smov [#allocation16]
            %v474 = vlaneseq
            %v475 = vand.u32 %v474, 127
            %v476 = vmov %v475
            %v477 = vlaneseq
            %v478 = vshrl.u32 %v477, 7
            %v479 = vmov %v478
            %v480 = vld [vmem:[%s472] sm:$0xff]
            %vm483 = vcmp.eq.s32.totalorder %v479, %v476
            %v484 = vsel %vm483, %v480, 0.0
            %s485 = scalar_lea.vmem %s472, 8
            %v486 = vld [vmem:[%s485] sm:$0x3]
            %v488 = vadd.s32 %v479, 8
            %vm489 = vcmp.eq.s32.totalorder %v488, %v476
            %v490 = vsel %vm489, %v486, %v484
            %v491 = vrot.slane %v490, 4
            %v492 = vadd.f32 %v490, %v491
            %v493 = vrot.slane %v492, 2
            %v494 = vadd.f32 %v492, %v493
            %v495 = vrot.slane %v494, 1
            %v496 = vadd.f32 %v494, %v495
            %497 = vst [vmem:[%s473] sm:$0x1] %v496
            %s498 = smov [#allocation13]
            %s499 = smov [#allocation17]
            %v500 = vlaneseq
            %v501 = vand.u32 %v500, 127
            %v502 = vmov %v501
            %v503 = vlaneseq
            %v504 = vshrl.u32 %v503, 7
            %v505 = vmov %v504
            %v506 = vld [vmem:[%s498] sm:$0xff]
            %vm509 = vcmp.eq.s32.totalorder %v505, %v502
            %v510 = vsel %vm509, %v506, 0.0
            %s511 = scalar_lea.vmem %s498, 8
            %v512 = vld [vmem:[%s511] sm:$0x3]
            %v514 = vadd.s32 %v505, 8
            %vm515 = vcmp.eq.s32.totalorder %v514, %v502
            %v516 = vsel %vm515, %v512, %v510
            %v517 = vrot.slane %v516, 4
            %v518 = vadd.f32 %v516, %v517
            %v519 = vrot.slane %v518, 2
            %v520 = vadd.f32 %v518, %v519
            %v521 = vrot.slane %v520, 1
            %v522 = vadd.f32 %v520, %v521
            %523 = vst [vmem:[%s499] sm:$0x1] %v522
            %s524 = smov [#allocation15]
            %s525 = smov [#allocation18]
            %v526 = vlaneseq
            %v527 = vand.u32 %v526, 127
            %v528 = vmov %v527
            %v529 = vlaneseq
            %v530 = vshrl.u32 %v529, 7
            %v531 = vmov %v530
            %v532 = vld [vmem:[%s524] sm:$0xff]
            %vm535 = vcmp.eq.s32.totalorder %v531, %v528
            %v536 = vsel %vm535, %v532, 0.0
            %s537 = scalar_lea.vmem %s524, 8
            %v538 = vld [vmem:[%s537] sm:$0x3]
            %v540 = vadd.s32 %v531, 8
            %vm541 = vcmp.eq.s32.totalorder %v540, %v528
            %v542 = vsel %vm541, %v538, %v536
            %v543 = vrot.slane %v542, 4
            %v544 = vadd.f32 %v542, %v543
            %v545 = vrot.slane %v544, 2
            %v546 = vadd.f32 %v544, %v545
            %v547 = vrot.slane %v546, 1
            %v548 = vadd.f32 %v546, %v547
            %549 = vst [vmem:[%s525] sm:$0x1] %v548
            %s550 = smov [#allocation21]
            %s551 = smov [#allocation22]
            %s552 = smov [#allocation16]
            %v553 = vld [vmem:[%s552] sm:$0xff]
            %s554 = smov [#allocation17]
            %v555 = vld [vmem:[%s554] sm:$0xff]
            %s556 = smov [#allocation18]
            %v557 = vld [vmem:[%s556] sm:$0xff]
            %v558 = vsub.f32 %v557, %v553
            %v559 = vmul.f32 2.0, %v555
            %v560 = vrcp.pop %v559
            %v561 = vmul.f32 %v558, %v560
            %vm562 = vcmp.ge.f32.partialorder %v561, 0.0
            %v563 = vmul.f32 %v561, %v561
            %v564 = vadd.f32 1.0, %v563
            %v565 = vrsqrt.pop %v564
            %v566 = vmul.f32 %v564, %v565
            %vm567 = vcmp.eq.f32.partialorder %v564, inf
            %v568 = vsel %vm567, %v564, %v566
            %vm569 = vcmp.eq.f32.partialorder %v564, 0.0
            %v570 = vand.u32 %v564, 2147483648
            %v571 = vsel %vm569, %v570, %v568
            %v572 = vxor.u32 %v571, 2147483648
            %v573 = vsel %vm562, %v571, %v572
            %v574 = vadd.f32 %v561, %v573
            %v575 = vrcp.pop %v574
            %v576 = vand.u32 2147483647, %v553
            %v577 = vand.u32 2147483647, %v555
            %v578 = vand.u32 2147483647, %v557
            %v579 = vmin.f32 %v576, %v578
            %v580 = vmul.f32 1.1920929e-08, %v579
            %vm581 = vcmp.le.f32.partialorder %v577, %v580
            %v582 = vsel %vm581, 0.0, %v575
            %v583 = vmul.f32 %v582, %v582
            %v584 = vadd.f32 1.0, %v583
            %v585 = vrsqrt.pop %v584
            %v586 = vmul.f32 %v582, %v585
            %v587 = vmul.f32 %v582, %v555
            %v588 = vsub.f32 %v553, %v587
            %v589 = vmul.f32 %v582, %v555
            %v590 = vadd.f32 %v557, %v589
            %s591 = smov [#allocation19]
            %592 = vst [vmem:[%s591] sm:$0xff] %v588
            %s593 = smov [#allocation20]
            %594 = vst [vmem:[%s593] sm:$0xff] %v590
            %s595 = smov %s550
            %596 = vst [vmem:[%s595] sm:$0xff] %v585
            %s597 = smov %s551
            %598 = vst [vmem:[%s597] sm:$0xff] %v586
            %s599 = smov [#allocation21]
            %v600 = vld [vmem:[%s599] ss:$0 sm:$0xff]
            %v601 = vlaneseq
            %v602 = vand.u32 %v601, 127
            %v603 = vmov %v602
            %v604 = vlaneseq
            %v605 = vshrl.u32 %v604, 7
            %v606 = vmov %v605
            %vm608 = vcmp.eq.s32.totalorder %v606, %v603
            %v609 = vsel %vm608, %v600, 0.0
            %610 = vadd.xlane.f32.xlu0 %v609
            %v611 = vpop.xlane.xlu0 %610
            %s612 = smov [#allocation23]
            %613 = vst [vmem:[%s612] sm:$0xff] %v611
            %s614 = smov [#allocation21]
            %v615 = vld [vmem:[%s614] ss:$0 sm:$0xff]
            %v616 = vlaneseq
            %v617 = vand.u32 %v616, 127
            %v618 = vmov %v617
            %v619 = vlaneseq
            %v620 = vshrl.u32 %v619, 7
            %v621 = vmov %v620
            %v622 = vadd.s32 %v621, 8
            %vm623 = vcmp.eq.s32.totalorder %v622, %v618
            %v624 = vsel %vm623, %v615, 0.0
            %625 = vadd.xlane.f32.xlu0 %v624
            %v626 = vpop.xlane.xlu0 %625
            %s627 = smov [#allocation23]
            %s628 = scalar_lea.vmem %s627, 8
            %629 = vst [vmem:[%s628] sm:$0xff] %v626
            %s630 = smov [#allocation22]
            %v631 = vld [vmem:[%s630] ss:$0 sm:$0xff]
            %v632 = vlaneseq
            %v633 = vand.u32 %v632, 127
            %v634 = vmov %v633
            %v635 = vlaneseq
            %v636 = vshrl.u32 %v635, 7
            %v637 = vmov %v636
            %vm639 = vcmp.eq.s32.totalorder %v637, %v634
            %v640 = vsel %vm639, %v631, 0.0
            %641 = vadd.xlane.f32.xlu0 %v640
            %v642 = vpop.xlane.xlu0 %641
            %s643 = smov [#allocation24]
            %644 = vst [vmem:[%s643] sm:$0xff] %v642
            %s645 = smov [#allocation22]
            %v646 = vld [vmem:[%s645] ss:$0 sm:$0xff]
            %v647 = vlaneseq
            %v648 = vand.u32 %v647, 127
            %v649 = vmov %v648
            %v650 = vlaneseq
            %v651 = vshrl.u32 %v650, 7
            %v652 = vmov %v651
            %v653 = vadd.s32 %v652, 8
            %vm654 = vcmp.eq.s32.totalorder %v653, %v649
            %v655 = vsel %vm654, %v646, 0.0
            %656 = vadd.xlane.f32.xlu0 %v655
            %v657 = vpop.xlane.xlu0 %656
            %s658 = smov [#allocation24]
            %s659 = scalar_lea.vmem %s658, 8
            %660 = vst [vmem:[%s659] sm:$0xff] %v657
            %s661 = smov [#allocation23]
            %v662 = vld [vmem:[%s661] sm:$0xff]
            %s663 = smov [#allocation24]
            %v664 = vld [vmem:[%s663] sm:$0xff]
            %s665 = smov [#allocation12]
            %s666 = smov [#allocation13]
            %s667 = smov [#allocation14]
            %s668 = smov [#allocation15]
            %v669 = vld [vmem:[%s665] sm:$0xff]
            %v670 = vld [vmem:[%s666] sm:$0xff]
            %v671 = vld [vmem:[%s667] sm:$0xff]
            %v672 = vld [vmem:[%s668] sm:$0xff]
            %v673 = vmul.f32 %v662, %v669
            %v674 = vmul.f32 %v664, %v671
            %v675 = vsub.f32 %v673, %v674
            %v676 = vmul.f32 %v662, %v670
            %v677 = vmul.f32 %v664, %v672
            %v678 = vsub.f32 %v676, %v677
            %v679 = vmul.f32 %v664, %v669
            %v680 = vmul.f32 %v662, %v671
            %v681 = vadd.f32 %v679, %v680
            %v682 = vmul.f32 %v664, %v670
            %v683 = vmul.f32 %v662, %v672
            %v684 = vadd.f32 %v682, %v683
            %685 = vst [vmem:[%s665] sm:$0xff] %v675
            %686 = vst [vmem:[%s666] sm:$0xff] %v678
            %687 = vst [vmem:[%s667] sm:$0xff] %v681
            %688 = vst [vmem:[%s668] sm:$0xff] %v684
            %s689 = smov [#allocation23]
            %s690 = scalar_lea.vmem %s689, 8
            %v691 = vld [vmem:[%s690] sm:$0xff]
            %s692 = smov [#allocation24]
            %s693 = scalar_lea.vmem %s692, 8
            %v694 = vld [vmem:[%s693] sm:$0xff]
            %s695 = smov [#allocation12]
            %s696 = scalar_lea.vmem %s695, 8
            %s697 = smov [#allocation13]
            %s698 = scalar_lea.vmem %s697, 8
            %s699 = smov [#allocation14]
            %s700 = scalar_lea.vmem %s699, 8
            %s701 = smov [#allocation15]
            %s702 = scalar_lea.vmem %s701, 8
            %v703 = vld [vmem:[%s696] sm:$0x3]
            %v704 = vld [vmem:[%s698] sm:$0x3]
            %v705 = vld [vmem:[%s700] sm:$0x3]
            %v706 = vld [vmem:[%s702] sm:$0x3]
            %v707 = vmul.f32 %v691, %v703
            %v708 = vmul.f32 %v694, %v705
            %v709 = vsub.f32 %v707, %v708
            %v710 = vmul.f32 %v691, %v704
            %v711 = vmul.f32 %v694, %v706
            %v712 = vsub.f32 %v710, %v711
            %v713 = vmul.f32 %v694, %v703
            %v714 = vmul.f32 %v691, %v705
            %v715 = vadd.f32 %v713, %v714
            %v716 = vmul.f32 %v694, %v704
            %v717 = vmul.f32 %v691, %v706
            %v718 = vadd.f32 %v716, %v717
            %719 = vst [vmem:[%s696] sm:$0x3] %v709
            %720 = vst [vmem:[%s698] sm:$0x3] %v712
            %721 = vst [vmem:[%s700] sm:$0x3] %v715
            %722 = vst [vmem:[%s702] sm:$0x3] %v718
            %s723 = smov [#allocation21]
            %v724 = vld [vmem:[%s723] ss:$0 sm:$0xff]
            %s725 = smov [#allocation22]
            %v726 = vld [vmem:[%s725] ss:$0 sm:$0xff]
            %s727 = smov [#allocation12]
            %s728 = smov [#allocation13]
            %s729 = smov [#allocation14]
            %s730 = smov [#allocation15]
            %v731 = vld [vmem:[%s727] sm:$0xff]
            %v732 = vld [vmem:[%s728] sm:$0xff]
            %v733 = vld [vmem:[%s729] sm:$0xff]
            %v734 = vld [vmem:[%s730] sm:$0xff]
            %v735 = vmul.f32 %v724, %v731
            %v736 = vmul.f32 %v726, %v732
            %v737 = vsub.f32 %v735, %v736
            %v738 = vmul.f32 %v726, %v731
            %v739 = vmul.f32 %v724, %v732
            %v740 = vadd.f32 %v738, %v739
            %v741 = vmul.f32 %v724, %v733
            %v742 = vmul.f32 %v726, %v734
            %v743 = vsub.f32 %v741, %v742
            %v744 = vmul.f32 %v726, %v733
            %v745 = vmul.f32 %v724, %v734
            %v746 = vadd.f32 %v744, %v745
            %747 = vst [vmem:[%s727] sm:$0xff] %v737
            %748 = vst [vmem:[%s728] sm:$0xff] %v740
            %749 = vst [vmem:[%s729] sm:$0xff] %v743
            %750 = vst [vmem:[%s730] sm:$0xff] %v746
            %s751 = smov [#allocation12]
            %s752 = scalar_lea.vmem %s751, 8
            %s753 = smov [#allocation13]
            %s754 = scalar_lea.vmem %s753, 8
            %s755 = smov [#allocation14]
            %s756 = scalar_lea.vmem %s755, 8
            %s757 = smov [#allocation15]
            %s758 = scalar_lea.vmem %s757, 8
            %v759 = vld [vmem:[%s752] sm:$0x3]
            %v760 = vld [vmem:[%s754] sm:$0x3]
            %v761 = vld [vmem:[%s756] sm:$0x3]
            %v762 = vld [vmem:[%s758] sm:$0x3]
            %v763 = vmul.f32 %v724, %v759
            %v764 = vmul.f32 %v726, %v760
            %v765 = vsub.f32 %v763, %v764
            %v766 = vmul.f32 %v726, %v759
            %v767 = vmul.f32 %v724, %v760
            %v768 = vadd.f32 %v766, %v767
            %v769 = vmul.f32 %v724, %v761
            %v770 = vmul.f32 %v726, %v762
            %v771 = vsub.f32 %v769, %v770
            %v772 = vmul.f32 %v726, %v761
            %v773 = vmul.f32 %v724, %v762
            %v774 = vadd.f32 %v772, %v773
            %775 = vst [vmem:[%s752] sm:$0x3] %v765
            %776 = vst [vmem:[%s754] sm:$0x3] %v768
            %777 = vst [vmem:[%s756] sm:$0x3] %v771
            %778 = vst [vmem:[%s758] sm:$0x3] %v774
            %s779 = smov [#allocation12]
            %s780 = smov [#allocation19]
            %v781 = vlaneseq
            %v782 = vand.u32 %v781, 127
            %v783 = vmov %v782
            %v784 = vlaneseq
            %v785 = vshrl.u32 %v784, 7
            %v786 = vmov %v785
            %v787 = vld [vmem:[%s780] ss:$0 sm:$0xff]
            %v788 = vld [vmem:[%s779] sm:$0xff]
            %vm791 = vcmp.eq.s32.totalorder %v786, %v783
            %v792 = vsel %vm791, %v787, %v788
            %793 = vst [vmem:[%s779] sm:$0xff] %v792
            %v794 = vld [vmem:[%s780] ss:$0 sm:$0xff]
            %s795 = scalar_lea.vmem %s779, 8
            %v796 = vld [vmem:[%s795] sm:$0x3]
            %v798 = vadd.s32 %v786, 8
            %vm799 = vcmp.eq.s32.totalorder %v798, %v783
            %v800 = vsel %vm799, %v794, %v796
            %801 = vst [vmem:[%s795] sm:$0x3] %v800
            %s802 = smov [#allocation13]
            %v803 = vlaneseq
            %v804 = vand.u32 %v803, 127
            %v805 = vmov %v804
            %v806 = vlaneseq
            %v807 = vshrl.u32 %v806, 7
            %v808 = vmov %v807
            %v809 = vld [vmem:[%s802] sm:$0xff]
            %vm812 = vcmp.eq.s32.totalorder %v808, %v805
            %v813 = vsel %vm812, 0.0, %v809
            %814 = vst [vmem:[%s802] sm:$0xff] %v813
            %s815 = scalar_lea.vmem %s802, 8
            %v816 = vld [vmem:[%s815] sm:$0x3]
            %v818 = vadd.s32 %v808, 8
            %vm819 = vcmp.eq.s32.totalorder %v818, %v805
            %v820 = vsel %vm819, 0.0, %v816
            %821 = vst [vmem:[%s815] sm:$0x3] %v820
            %s822 = smov [#allocation14]
            %v823 = vlaneseq
            %v824 = vand.u32 %v823, 127
            %v825 = vmov %v824
            %v826 = vlaneseq
            %v827 = vshrl.u32 %v826, 7
            %v828 = vmov %v827
            %v829 = vld [vmem:[%s822] sm:$0xff]
            %vm832 = vcmp.eq.s32.totalorder %v828, %v825
            %v833 = vsel %vm832, 0.0, %v829
            %834 = vst [vmem:[%s822] sm:$0xff] %v833
            %s835 = scalar_lea.vmem %s822, 8
            %v836 = vld [vmem:[%s835] sm:$0x3]
            %v838 = vadd.s32 %v828, 8
            %vm839 = vcmp.eq.s32.totalorder %v838, %v825
            %v840 = vsel %vm839, 0.0, %v836
            %841 = vst [vmem:[%s835] sm:$0x3] %v840
            %s842 = smov [#allocation15]
            %s843 = smov [#allocation20]
            %v844 = vlaneseq
            %v845 = vand.u32 %v844, 127
            %v846 = vmov %v845
            %v847 = vlaneseq
            %v848 = vshrl.u32 %v847, 7
            %v849 = vmov %v848
            %v850 = vld [vmem:[%s843] ss:$0 sm:$0xff]
            %v851 = vld [vmem:[%s842] sm:$0xff]
            %vm854 = vcmp.eq.s32.totalorder %v849, %v846
            %v855 = vsel %vm854, %v850, %v851
            %856 = vst [vmem:[%s842] sm:$0xff] %v855
            %v857 = vld [vmem:[%s843] ss:$0 sm:$0xff]
            %s858 = scalar_lea.vmem %s842, 8
            %v859 = vld [vmem:[%s858] sm:$0x3]
            %v861 = vadd.s32 %v849, 8
            %vm862 = vcmp.eq.s32.totalorder %v861, %v846
            %v863 = vsel %vm862, %v857, %v859
            %864 = vst [vmem:[%s858] sm:$0x3] %v863
            %s865 = smov [#allocation12]
            %s866 = smov [#allocation13]
            %v867 = vld [vmem:[%s866] sm:$0xff]
            %868 = vrot.lane.b32.xlu0 %v867, 1
            %v869 = vpop.permute.xlu0 %868
            %v870 = vld [vmem:[%s865] sm:$0xff]
            %v871 = vld [vmem:[%s865] sm:$0xff]
            %872 = vrot.lane.b32.xlu0 %v871, 1
            %v873 = vpop.permute.xlu0 %872
            %v874 = vlaneseq
            %v875 = vand.u32 %v874, 127
            %vm876 = vcmp.eq.s32.totalorder %v875, 0
            %v877 = vsel %vm876, %v871, %v873
            %v878 = vlaneseq
            %v879 = vand.u32 %v878, 127
            %vm880 = vcmp.eq.s32.totalorder %v879, 1
            %v881 = vsel %vm880, %v869, %v877
            %v882 = vlaneseq
            %v883 = vand.u32 %v882, 127
            %vm884 = vcmp.ge.s32.totalorder %v883, 0
            %vm885 = vcmp.lt.s32.totalorder %v883, 10
            %vm886 = vmand %vm884, %vm885
            %v887 = vsel %vm886, %v881, 0.0
            %v888 = vld [vmem:[%s866] sm:$0xff]
            %889 = vrot.lane.b32.xlu0 %v888, 127
            %v890 = vpop.permute.xlu0 %889
            %v891 = vlaneseq
            %v892 = vand.u32 %v891, 127
            %vm893 = vcmp.eq.s32.totalorder %v892, 9
            %v894 = vsel %vm893, %v870, %v890
            %s895 = smov [#allocation12]
            %s896 = scalar_lea.vmem %s895, 8
            %s897 = smov [#allocation13]
            %s898 = scalar_lea.vmem %s897, 8
            %v899 = vld [vmem:[%s898] sm:$0x3]
            %900 = vrot.lane.b32.xlu0 %v899, 1
            %v901 = vpop.permute.xlu0 %900
            %v902 = vld [vmem:[%s896] sm:$0x3]
            %v903 = vld [vmem:[%s896] sm:$0x3]
            %904 = vrot.lane.b32.xlu0 %v903, 1
            %v905 = vpop.permute.xlu0 %904
            %v906 = vlaneseq
            %v907 = vand.u32 %v906, 127
            %vm908 = vcmp.eq.s32.totalorder %v907, 0
            %v909 = vsel %vm908, %v903, %v905
            %v910 = vlaneseq
            %v911 = vand.u32 %v910, 127
            %vm912 = vcmp.eq.s32.totalorder %v911, 1
            %v913 = vsel %vm912, %v901, %v909
            %v914 = vlaneseq
            %v915 = vand.u32 %v914, 127
            %vm916 = vcmp.ge.s32.totalorder %v915, 0
            %vm917 = vcmp.lt.s32.totalorder %v915, 10
            %vm918 = vmand %vm916, %vm917
            %v919 = vsel %vm918, %v913, 0.0
            %v920 = vld [vmem:[%s898] sm:$0x3]
            %921 = vrot.lane.b32.xlu0 %v920, 127
            %v922 = vpop.permute.xlu0 %921
            %v923 = vlaneseq
            %v924 = vand.u32 %v923, 127
            %vm925 = vcmp.eq.s32.totalorder %v924, 9
            %v926 = vsel %vm925, %v902, %v922
            %927 = vst [vmem:[%s865] sm:$0xff] %v887
            %928 = vst [vmem:[%s866] sm:$0xff] %v894
            %929 = vst [vmem:[%s896] sm:$0x3] %v919
            %930 = vst [vmem:[%s898] sm:$0x3] %v926
            %s931 = smov [#allocation14]
            %s932 = smov [#allocation15]
            %v933 = vld [vmem:[%s932] sm:$0xff]
            %934 = vrot.lane.b32.xlu0 %v933, 1
            %v935 = vpop.permute.xlu0 %934
            %v936 = vld [vmem:[%s931] sm:$0xff]
            %v937 = vld [vmem:[%s931] sm:$0xff]
            %938 = vrot.lane.b32.xlu0 %v937, 1
            %v939 = vpop.permute.xlu0 %938
            %v940 = vlaneseq
            %v941 = vand.u32 %v940, 127
            %vm942 = vcmp.eq.s32.totalorder %v941, 0
            %v943 = vsel %vm942, %v937, %v939
            %v944 = vlaneseq
            %v945 = vand.u32 %v944, 127
            %vm946 = vcmp.eq.s32.totalorder %v945, 1
            %v947 = vsel %vm946, %v935, %v943
            %v948 = vlaneseq
            %v949 = vand.u32 %v948, 127
            %vm950 = vcmp.ge.s32.totalorder %v949, 0
            %vm951 = vcmp.lt.s32.totalorder %v949, 10
            %vm952 = vmand %vm950, %vm951
            %v953 = vsel %vm952, %v947, 0.0
            %v954 = vld [vmem:[%s932] sm:$0xff]
            %955 = vrot.lane.b32.xlu0 %v954, 127
            %v956 = vpop.permute.xlu0 %955
            %v957 = vlaneseq
            %v958 = vand.u32 %v957, 127
            %vm959 = vcmp.eq.s32.totalorder %v958, 9
            %v960 = vsel %vm959, %v936, %v956
            %s961 = smov [#allocation14]
            %s962 = scalar_lea.vmem %s961, 8
            %s963 = smov [#allocation15]
            %s964 = scalar_lea.vmem %s963, 8
            %v965 = vld [vmem:[%s964] sm:$0x3]
            %966 = vrot.lane.b32.xlu0 %v965, 1
            %v967 = vpop.permute.xlu0 %966
            %v968 = vld [vmem:[%s962] sm:$0x3]
            %v969 = vld [vmem:[%s962] sm:$0x3]
            %970 = vrot.lane.b32.xlu0 %v969, 1
            %v971 = vpop.permute.xlu0 %970
            %v972 = vlaneseq
            %v973 = vand.u32 %v972, 127
            %vm974 = vcmp.eq.s32.totalorder %v973, 0
            %v975 = vsel %vm974, %v969, %v971
            %v976 = vlaneseq
            %v977 = vand.u32 %v976, 127
            %vm978 = vcmp.eq.s32.totalorder %v977, 1
            %v979 = vsel %vm978, %v967, %v975
            %v980 = vlaneseq
            %v981 = vand.u32 %v980, 127
            %vm982 = vcmp.ge.s32.totalorder %v981, 0
            %vm983 = vcmp.lt.s32.totalorder %v981, 10
            %vm984 = vmand %vm982, %vm983
            %v985 = vsel %vm984, %v979, 0.0
            %v986 = vld [vmem:[%s964] sm:$0x3]
            %987 = vrot.lane.b32.xlu0 %v986, 127
            %v988 = vpop.permute.xlu0 %987
            %v989 = vlaneseq
            %v990 = vand.u32 %v989, 127
            %vm991 = vcmp.eq.s32.totalorder %v990, 9
            %v992 = vsel %vm991, %v968, %v988
            %993 = vst [vmem:[%s931] sm:$0xff] %v953
            %994 = vst [vmem:[%s932] sm:$0xff] %v960
            %995 = vst [vmem:[%s962] sm:$0x3] %v985
            %996 = vst [vmem:[%s964] sm:$0x3] %v992
            %s997 = smov [#allocation12]
            %s998 = smov [#allocation14]
            %v999 = vld [vmem:[%s997] ss:$0 sm:$0xff]
            %s1001 = scalar_lea.vmem %s997, 4294967295
            %v1002 = vld [vmem:[%s1001] sm:$0xfe]
            %v1003 = vlaneseq
            %v1004 = vshrl.u32 %v1003, 7
            %vm1005 = vcmp.eq.s32.totalorder %v1004, 0
            %v1006 = vsel %vm1005, %v999, %v1002
            %s1007 = scalar_lea.vmem %s997, 7
            %v1008 = vld [vmem:[%s1007] ss:$0 sm:$0xff]
            %1009 = vst [vmem:[%s997] sm:$0xff] %v1006
            %s1010 = scalar_lea.vmem %s997, 8
            %s1012 = scalar_lea.vmem %s1010, 4294967295
            %v1013 = vld [vmem:[%s1012] sm:$0x2]
            %v1014 = vlaneseq
            %v1015 = vshrl.u32 %v1014, 7
            %vm1016 = vcmp.eq.s32.totalorder %v1015, 0
            %v1017 = vsel %vm1016, %v1008, %v1013
            %s1018 = scalar_lea.vmem %s1010, 1
            %v1019 = vld [vmem:[%s1018] ss:$0 sm:$0xff]
            %1020 = vst [vmem:[%s1010] sm:$0x3] %v1017
            %v1021 = vld [vmem:[%s998] ss:$0 sm:$0xff]
            %s1022 = scalar_lea.vmem %s997, 1
            %1023 = vst [vmem:[%s1022] sm:$0x1] %v1021
            %s1024 = scalar_lea.vmem %s998, 8
            %s1025 = scalar_lea.vmem %s1024, 1
            %v1026 = vld [vmem:[%s1025] sm:$0x1]
            %v1027 = vlaneseq
            %v1028 = vshrl.u32 %v1027, 7
            %vm1029 = vcmp.eq.s32.totalorder %v1028, 1
            %v1030 = vsel %vm1029, %v1019, %v1026
            %v1031 = vld [vmem:[%s1024] ss:$0 sm:$0xff]
            %1032 = vst [vmem:[%s1024] sm:$0x3] %v1030
            %s1033 = scalar_lea.vmem %s998, 1
            %v1034 = vld [vmem:[%s1033] sm:$0x7f]
            %v1035 = vlaneseq
            %v1036 = vshrl.u32 %v1035, 7
            %vm1037 = vcmp.eq.s32.totalorder %v1036, 7
            %v1038 = vsel %vm1037, %v1031, %v1034
            %v1039 = vld [vmem:[%s998] ss:$0 sm:$0xff]
            %1040 = vst [vmem:[%s998] sm:$0xff] %v1038
            %s1041 = smov [#allocation13]
            %s1042 = smov [#allocation15]
            %v1043 = vld [vmem:[%s1041] ss:$0 sm:$0xff]
            %s1045 = scalar_lea.vmem %s1041, 4294967295
            %v1046 = vld [vmem:[%s1045] sm:$0xfe]
            %v1047 = vlaneseq
            %v1048 = vshrl.u32 %v1047, 7
            %vm1049 = vcmp.eq.s32.totalorder %v1048, 0
            %v1050 = vsel %vm1049, %v1043, %v1046
            %s1051 = scalar_lea.vmem %s1041, 7
            %v1052 = vld [vmem:[%s1051] ss:$0 sm:$0xff]
            %1053 = vst [vmem:[%s1041] sm:$0xff] %v1050
            %s1054 = scalar_lea.vmem %s1041, 8
            %s1056 = scalar_lea.vmem %s1054, 4294967295
            %v1057 = vld [vmem:[%s1056] sm:$0x2]
            %v1058 = vlaneseq
            %v1059 = vshrl.u32 %v1058, 7
            %vm1060 = vcmp.eq.s32.totalorder %v1059, 0
            %v1061 = vsel %vm1060, %v1052, %v1057
            %s1062 = scalar_lea.vmem %s1054, 1
            %v1063 = vld [vmem:[%s1062] ss:$0 sm:$0xff]
            %1064 = vst [vmem:[%s1054] sm:$0x3] %v1061
            %v1065 = vld [vmem:[%s1042] ss:$0 sm:$0xff]
            %s1066 = scalar_lea.vmem %s1041, 1
            %1067 = vst [vmem:[%s1066] sm:$0x1] %v1065
            %s1068 = scalar_lea.vmem %s1042, 8
            %s1069 = scalar_lea.vmem %s1068, 1
            %v1070 = vld [vmem:[%s1069] sm:$0x1]
            %v1071 = vlaneseq
            %v1072 = vshrl.u32 %v1071, 7
            %vm1073 = vcmp.eq.s32.totalorder %v1072, 1
            %v1074 = vsel %vm1073, %v1063, %v1070
            %v1075 = vld [vmem:[%s1068] ss:$0 sm:$0xff]
            %1076 = vst [vmem:[%s1068] sm:$0x3] %v1074
            %s1077 = scalar_lea.vmem %s1042, 1
            %v1078 = vld [vmem:[%s1077] sm:$0x7f]
            %v1079 = vlaneseq
            %v1080 = vshrl.u32 %v1079, 7
            %vm1081 = vcmp.eq.s32.totalorder %v1080, 7
            %v1082 = vsel %vm1081, %v1075, %v1078
            %v1083 = vld [vmem:[%s1042] ss:$0 sm:$0xff]
            %1084 = vst [vmem:[%s1042] sm:$0xff] %v1082
            %s1085 = smov [#allocation23]
            %v1086 = vld [vmem:[%s1085] sm:$0xff]
            %s1087 = smov [#allocation24]
            %v1088 = vld [vmem:[%s1087] sm:$0xff]
            %s1089 = smov %s241
            %s1090 = smov %s245
            %s1091 = smov %s249
            %s1092 = smov %s253
            %v1093 = vld [vmem:[%s1089] sm:$0xff]
            %v1094 = vld [vmem:[%s1090] sm:$0xff]
            %v1095 = vld [vmem:[%s1091] sm:$0xff]
            %v1096 = vld [vmem:[%s1092] sm:$0xff]
            %v1097 = vmul.f32 %v1086, %v1093
            %v1098 = vmul.f32 %v1088, %v1095
            %v1099 = vsub.f32 %v1097, %v1098
            %v1100 = vmul.f32 %v1086, %v1094
            %v1101 = vmul.f32 %v1088, %v1096
            %v1102 = vsub.f32 %v1100, %v1101
            %v1103 = vmul.f32 %v1088, %v1093
            %v1104 = vmul.f32 %v1086, %v1095
            %v1105 = vadd.f32 %v1103, %v1104
            %v1106 = vmul.f32 %v1088, %v1094
            %v1107 = vmul.f32 %v1086, %v1096
            %v1108 = vadd.f32 %v1106, %v1107
            %1109 = vst [vmem:[%s1089] sm:$0xff] %v1099
            %1110 = vst [vmem:[%s1090] sm:$0xff] %v1102
            %1111 = vst [vmem:[%s1091] sm:$0xff] %v1105
            %1112 = vst [vmem:[%s1092] sm:$0xff] %v1108
            %s1113 = smov [#allocation23]
            %s1114 = scalar_lea.vmem %s1113, 8
            %v1115 = vld [vmem:[%s1114] sm:$0xff]
            %s1116 = smov [#allocation24]
            %s1117 = scalar_lea.vmem %s1116, 8
            %v1118 = vld [vmem:[%s1117] sm:$0xff]
            %s1119 = smov %s241
            %s1120 = scalar_lea.vmem %s1119, 8
            %s1121 = smov %s245
            %s1122 = scalar_lea.vmem %s1121, 8
            %s1123 = smov %s249
            %s1124 = scalar_lea.vmem %s1123, 8
            %s1125 = smov %s253
            %s1126 = scalar_lea.vmem %s1125, 8
            %v1127 = vld [vmem:[%s1120] sm:$0x3]
            %v1128 = vld [vmem:[%s1122] sm:$0x3]
            %v1129 = vld [vmem:[%s1124] sm:$0x3]
            %v1130 = vld [vmem:[%s1126] sm:$0x3]
            %v1131 = vmul.f32 %v1115, %v1127
            %v1132 = vmul.f32 %v1118, %v1129
            %v1133 = vsub.f32 %v1131, %v1132
            %v1134 = vmul.f32 %v1115, %v1128
            %v1135 = vmul.f32 %v1118, %v1130
            %v1136 = vsub.f32 %v1134, %v1135
            %v1137 = vmul.f32 %v1118, %v1127
            %v1138 = vmul.f32 %v1115, %v1129
            %v1139 = vadd.f32 %v1137, %v1138
            %v1140 = vmul.f32 %v1118, %v1128
            %v1141 = vmul.f32 %v1115, %v1130
            %v1142 = vadd.f32 %v1140, %v1141
            %1143 = vst [vmem:[%s1120] sm:$0x3] %v1133
            %1144 = vst [vmem:[%s1122] sm:$0x3] %v1136
            %1145 = vst [vmem:[%s1124] sm:$0x3] %v1139
            %1146 = vst [vmem:[%s1126] sm:$0x3] %v1142
            %s1147 = smov %s241
            %s1148 = smov %s249
            %v1149 = vld [vmem:[%s1147] ss:$0 sm:$0xff]
            %s1151 = scalar_lea.vmem %s1147, 4294967295
            %v1152 = vld [vmem:[%s1151] sm:$0xfe]
            %v1153 = vlaneseq
            %v1154 = vshrl.u32 %v1153, 7
            %vm1155 = vcmp.eq.s32.totalorder %v1154, 0
            %v1156 = vsel %vm1155, %v1149, %v1152
            %s1157 = scalar_lea.vmem %s1147, 7
            %v1158 = vld [vmem:[%s1157] ss:$0 sm:$0xff]
            %1159 = vst [vmem:[%s1147] sm:$0xff] %v1156
            %s1160 = scalar_lea.vmem %s1147, 8
            %s1162 = scalar_lea.vmem %s1160, 4294967295
            %v1163 = vld [vmem:[%s1162] sm:$0x2]
            %v1164 = vlaneseq
            %v1165 = vshrl.u32 %v1164, 7
            %vm1166 = vcmp.eq.s32.totalorder %v1165, 0
            %v1167 = vsel %vm1166, %v1158, %v1163
            %s1168 = scalar_lea.vmem %s1160, 1
            %v1169 = vld [vmem:[%s1168] ss:$0 sm:$0xff]
            %1170 = vst [vmem:[%s1160] sm:$0x3] %v1167
            %v1171 = vld [vmem:[%s1148] ss:$0 sm:$0xff]
            %s1172 = scalar_lea.vmem %s1147, 1
            %1173 = vst [vmem:[%s1172] sm:$0x1] %v1171
            %s1174 = scalar_lea.vmem %s1148, 8
            %s1175 = scalar_lea.vmem %s1174, 1
            %v1176 = vld [vmem:[%s1175] sm:$0x1]
            %v1177 = vlaneseq
            %v1178 = vshrl.u32 %v1177, 7
            %vm1179 = vcmp.eq.s32.totalorder %v1178, 1
            %v1180 = vsel %vm1179, %v1169, %v1176
            %v1181 = vld [vmem:[%s1174] ss:$0 sm:$0xff]
            %1182 = vst [vmem:[%s1174] sm:$0x3] %v1180
            %s1183 = scalar_lea.vmem %s1148, 1
            %v1184 = vld [vmem:[%s1183] sm:$0x7f]
            %v1185 = vlaneseq
            %v1186 = vshrl.u32 %v1185, 7
            %vm1187 = vcmp.eq.s32.totalorder %v1186, 7
            %v1188 = vsel %vm1187, %v1181, %v1184
            %v1189 = vld [vmem:[%s1148] ss:$0 sm:$0xff]
            %1190 = vst [vmem:[%s1148] sm:$0xff] %v1188
            %s1191 = smov %s245
            %s1192 = smov %s253
            %v1193 = vld [vmem:[%s1191] ss:$0 sm:$0xff]
            %s1195 = scalar_lea.vmem %s1191, 4294967295
            %v1196 = vld [vmem:[%s1195] sm:$0xfe]
            %v1197 = vlaneseq
            %v1198 = vshrl.u32 %v1197, 7
            %vm1199 = vcmp.eq.s32.totalorder %v1198, 0
            %v1200 = vsel %vm1199, %v1193, %v1196
            %s1201 = scalar_lea.vmem %s1191, 7
            %v1202 = vld [vmem:[%s1201] ss:$0 sm:$0xff]
            %1203 = vst [vmem:[%s1191] sm:$0xff] %v1200
            %s1204 = scalar_lea.vmem %s1191, 8
            %s1206 = scalar_lea.vmem %s1204, 4294967295
            %v1207 = vld [vmem:[%s1206] sm:$0x2]
            %v1208 = vlaneseq
            %v1209 = vshrl.u32 %v1208, 7
            %vm1210 = vcmp.eq.s32.totalorder %v1209, 0
            %v1211 = vsel %vm1210, %v1202, %v1207
            %s1212 = scalar_lea.vmem %s1204, 1
            %v1213 = vld [vmem:[%s1212] ss:$0 sm:$0xff]
            %1214 = vst [vmem:[%s1204] sm:$0x3] %v1211
            %v1215 = vld [vmem:[%s1192] ss:$0 sm:$0xff]
            %s1216 = scalar_lea.vmem %s1191, 1
            %1217 = vst [vmem:[%s1216] sm:$0x1] %v1215
            %s1218 = scalar_lea.vmem %s1192, 8
            %s1219 = scalar_lea.vmem %s1218, 1
            %v1220 = vld [vmem:[%s1219] sm:$0x1]
            %v1221 = vlaneseq
            %v1222 = vshrl.u32 %v1221, 7
            %vm1223 = vcmp.eq.s32.totalorder %v1222, 1
            %v1224 = vsel %vm1223, %v1213, %v1220
            %v1225 = vld [vmem:[%s1218] ss:$0 sm:$0xff]
            %1226 = vst [vmem:[%s1218] sm:$0x3] %v1224
            %s1227 = scalar_lea.vmem %s1192, 1
            %v1228 = vld [vmem:[%s1227] sm:$0x7f]
            %v1229 = vlaneseq
            %v1230 = vshrl.u32 %v1229, 7
            %vm1231 = vcmp.eq.s32.totalorder %v1230, 7
            %v1232 = vsel %vm1231, %v1225, %v1228
            %v1233 = vld [vmem:[%s1192] ss:$0 sm:$0xff]
            %1234 = vst [vmem:[%s1192] sm:$0xff] %v1232
          $region108: #{custom-call.14} parent=100 // loop_footer
            %s471 = sadd.s32 1, %s467
          $region109: #{custom-call.14} parent=100 // loop_footer_branch
            %466 = sbr.rel target = $region105
          $region110: #{custom-call.14} parent=100 // loop_exit
            _
          %s1235 = sadd.s32 %s337, 1
        $region101: #{custom-call.14} parent=95 // loop_footer
          _
        $region102: #{custom-call.14} parent=95 // loop_footer_branch
          %336 = sbr.rel target = $region98
        $region103: #{custom-call.14} parent=95 // loop_exit
          _
        %s1238 = sand.u32 %s17, 7
        %s1239 = scalar_lea.vmem [#allocation4], %s1238
        %s1240 = sand.u32 %s17, 7
        %s1241 = scalar_lea.vmem [#allocation6], %s1240
        %s1242 = smov [#allocation12]
        %s1243 = smov %s1239
        %v1244 = vlaneseq
        %v1245 = vand.u32 %v1244, 127
        %v1246 = vmov %v1245
        %v1247 = vlaneseq
        %v1248 = vshrl.u32 %v1247, 7
        %v1249 = vmov %v1248
        %v1250 = vld [vmem:[%s1242] sm:$0xff]
        %vm1253 = vcmp.eq.s32.totalorder %v1249, %v1246
        %v1254 = vsel %vm1253, %v1250, 0.0
        %s1255 = scalar_lea.vmem %s1242, 8
        %v1256 = vld [vmem:[%s1255] sm:$0x3]
        %v1258 = vadd.s32 %v1249, 8
        %vm1259 = vcmp.eq.s32.totalorder %v1258, %v1246
        %v1260 = vsel %vm1259, %v1256, %v1254
        %v1261 = vrot.slane %v1260, 4
        %v1262 = vadd.f32 %v1260, %v1261
        %v1263 = vrot.slane %v1262, 2
        %v1264 = vadd.f32 %v1262, %v1263
        %v1265 = vrot.slane %v1264, 1
        %v1266 = vadd.f32 %v1264, %v1265
        %1267 = vst [vmem:[%s1243] sm:$0x1] %v1266
        %s1268 = smov [#allocation15]
        %s1269 = smov %s1241
        %v1270 = vlaneseq
        %v1271 = vand.u32 %v1270, 127
        %v1272 = vmov %v1271
        %v1273 = vlaneseq
        %v1274 = vshrl.u32 %v1273, 7
        %v1275 = vmov %v1274
        %v1276 = vld [vmem:[%s1268] sm:$0xff]
        %vm1279 = vcmp.eq.s32.totalorder %v1275, %v1272
        %v1280 = vsel %vm1279, %v1276, 0.0
        %s1281 = scalar_lea.vmem %s1268, 8
        %v1282 = vld [vmem:[%s1281] sm:$0x3]
        %v1284 = vadd.s32 %v1275, 8
        %vm1285 = vcmp.eq.s32.totalorder %v1284, %v1272
        %v1286 = vsel %vm1285, %v1282, %v1280
        %v1287 = vrot.slane %v1286, 4
        %v1288 = vadd.f32 %v1286, %v1287
        %v1289 = vrot.slane %v1288, 2
        %v1290 = vadd.f32 %v1288, %v1289
        %v1291 = vrot.slane %v1290, 1
        %v1292 = vadd.f32 %v1290, %v1291
        %1293 = vst [vmem:[%s1269] sm:$0x1] %v1292
        %s1295 = sshllo.u32 0, 4
        %v1297 = vld [vmem:[#allocation4] sm:%s1295]
        %s1298 = sshllo.u32 0, 4
        %1299 = vst [vmem:[%s231] sm:%s1298] %v1297
        %s1301 = sshllo.u32 0, 4
        %v1303 = vld [vmem:[#allocation6] sm:%s1301]
        %s1304 = sshllo.u32 0, 4
        %1305 = vst [vmem:[%s237] sm:%s1304] %v1303
        %s1306 = sand.u32 %s27, 1
        %s1307 = sand.u32 %s27, 1
        %s1308 = smul.addr %s1307, 4
        %s1309 = scalar_lea.vmem [#allocation5], %s1308
        %s1310 = sand.u32 %s55, 1
        %s1311 = sand.u32 %s55, 1
        %s1312 = smul.addr %s1311, 4
        %s1313 = scalar_lea.vmem [#allocation7], %s1312
        %s1314 = sand.u32 %s17, 1
        %s1315 = sand.u32 %s17, 1
        %s1316 = smul.addr %s1315, 16
        %s1317 = scalar_lea.vmem [#allocation8], %s1316
        %s1318 = sand.u32 %s17, 1
        %s1319 = sand.u32 %s17, 1
        %s1320 = smul.addr %s1319, 16
        %s1321 = scalar_lea.vmem [#allocation9], %s1320
        %s1322 = sand.u32 %s17, 1
        %s1323 = sand.u32 %s17, 1
        %s1324 = smul.addr %s1323, 16
        %s1325 = scalar_lea.vmem [#allocation10], %s1324
        %s1326 = sand.u32 %s17, 1
        %s1327 = sand.u32 %s17, 1
        %s1328 = smul.addr %s1327, 16
        %s1329 = scalar_lea.vmem [#allocation11], %s1328
        // Predicated region
        $region111: #{custom-call.14} parent=95 // pred_check
          %p1330 = pneg %p37
        $region112: #{custom-call.14} parent=95 // pred_check_branch
          %1332 = sbr.rel (%p1330) target = $region114
        $region113: #{custom-call.14} parent=95 // pred_region
          %s1333 = sshrl.u32 %s17, 3
          %s1334 = smul.addr %s1333, 4
          %s1335 = scalar_lea.vmem %s4, %s1334
          // Predicated region
          $region115: #{custom-call.14} parent=113 // pred_check
            _
          $region116: #{custom-call.14} parent=113 // pred_check_branch
            %1337 = sbr.rel (0) target = $region118
          $region117: #{custom-call.14} parent=113 // pred_region
            // Predicated region
            $region119: #{custom-call.14} parent=117 // pred_check
              _
            $region120: #{custom-call.14} parent=117 // pred_check_branch
              %1339 = sbr.rel target = $region122
            $region121: #{custom-call.14} parent=117 // pred_region
              // Predicated region
              $region134: #{custom-call.14} parent=121 // pred_check
                _
              $region135: #{custom-call.14} parent=121 // pred_check_branch
                %1354 = sbr.rel (0) target = $region137
              $region136: #{custom-call.14} parent=121 // pred_region
                loop: start=0, step=1, limit=1
                $region138: #{custom-call.14} parent=136 // loop_pre_header
                  _
                $region139: #{custom-call.14} parent=136 // loop_header
                  %s1357 = sphi 0, %s1361
                  %p1358 = scmp.ge.s32.totalorder %s1357, 1
                  %s1362 = sphi %s1309, %s1309
                  %s1363 = sphi %s1335, %s1335
                $region140: #{custom-call.14} parent=136 // loop_header_branch
                  %1360 = sbr.rel (%p1358) target = $region144
                $region141: #{custom-call.14} parent=136 // loop_body
                  %v1364 = vld [vmem:[%s1362] sm:$0xf]
                  %1365 = vst [vmem:[%s1363] sm:$0xf] %v1364
                $region142: #{custom-call.14} parent=136 // loop_footer
                  %s1361 = sadd.s32 1, %s1357
                $region143: #{custom-call.14} parent=136 // loop_footer_branch
                  %1356 = sbr.rel target = $region139
                $region144: #{custom-call.14} parent=136 // loop_exit
                  _
              $region137: #{custom-call.14} parent=121 // pred_fallthru
                _
            $region122: #{custom-call.14} parent=117 // pred_fallthru
              _
            // Predicated region
            $region123: #{custom-call.14} parent=117 // pred_check
              _
            $region124: #{custom-call.14} parent=117 // pred_check_branch
              %1341 = sbr.rel (0) target = $region126
            $region125: #{custom-call.14} parent=117 // pred_region
              loop: start=0, step=1, limit=1
              $region127: #{custom-call.14} parent=125 // loop_pre_header
                _
              $region128: #{custom-call.14} parent=125 // loop_header
                %s1344 = sphi 0, %s1348
                %p1345 = scmp.ge.s32.totalorder %s1344, 1
                %s1349 = sphi %s1309, %s1309
                %s1350 = sphi %s1335, %s1335
              $region129: #{custom-call.14} parent=125 // loop_header_branch
                %1347 = sbr.rel (%p1345) target = $region133
              $region130: #{custom-call.14} parent=125 // loop_body
                %v1351 = vld [vmem:[%s1349] sm:$0xf]
                %1352 = vst [vmem:[%s1350] sm:$0xf] %v1351
              $region131: #{custom-call.14} parent=125 // loop_footer
                %s1348 = sadd.s32 1, %s1344
              $region132: #{custom-call.14} parent=125 // loop_footer_branch
                %1343 = sbr.rel target = $region128
              $region133: #{custom-call.14} parent=125 // loop_exit
                _
            $region126: #{custom-call.14} parent=117 // pred_fallthru
              _
          $region118: #{custom-call.14} parent=113 // pred_fallthru
            _
          %1366 = vnop
        $region114: #{custom-call.14} parent=95 // pred_fallthru
          _
        // Predicated region
        $region145: #{custom-call.14} parent=95 // pred_check
          %p1367 = pneg %p65
        $region146: #{custom-call.14} parent=95 // pred_check_branch
          %1369 = sbr.rel (%p1367) target = $region148
        $region147: #{custom-call.14} parent=95 // pred_region
          %s1370 = sshrl.u32 %s17, 3
          %s1371 = smul.addr %s1370, 4
          %s1372 = scalar_lea.vmem %s5, %s1371
          // Predicated region
          $region149: #{custom-call.14} parent=147 // pred_check
            _
          $region150: #{custom-call.14} parent=147 // pred_check_branch
            %1374 = sbr.rel (0) target = $region152
          $region151: #{custom-call.14} parent=147 // pred_region
            // Predicated region
            $region153: #{custom-call.14} parent=151 // pred_check
              _
            $region154: #{custom-call.14} parent=151 // pred_check_branch
              %1376 = sbr.rel target = $region156
            $region155: #{custom-call.14} parent=151 // pred_region
              // Predicated region
              $region168: #{custom-call.14} parent=155 // pred_check
                _
              $region169: #{custom-call.14} parent=155 // pred_check_branch
                %1391 = sbr.rel (0) target = $region171
              $region170: #{custom-call.14} parent=155 // pred_region
                loop: start=0, step=1, limit=1
                $region172: #{custom-call.14} parent=170 // loop_pre_header
                  _
                $region173: #{custom-call.14} parent=170 // loop_header
                  %s1394 = sphi 0, %s1398
                  %p1395 = scmp.ge.s32.totalorder %s1394, 1
                  %s1399 = sphi %s1313, %s1313
                  %s1400 = sphi %s1372, %s1372
                $region174: #{custom-call.14} parent=170 // loop_header_branch
                  %1397 = sbr.rel (%p1395) target = $region178
                $region175: #{custom-call.14} parent=170 // loop_body
                  %v1401 = vld [vmem:[%s1399] sm:$0xf]
                  %1402 = vst [vmem:[%s1400] sm:$0xf] %v1401
                $region176: #{custom-call.14} parent=170 // loop_footer
                  %s1398 = sadd.s32 1, %s1394
                $region177: #{custom-call.14} parent=170 // loop_footer_branch
                  %1393 = sbr.rel target = $region173
                $region178: #{custom-call.14} parent=170 // loop_exit
                  _
              $region171: #{custom-call.14} parent=155 // pred_fallthru
                _
            $region156: #{custom-call.14} parent=151 // pred_fallthru
              _
            // Predicated region
            $region157: #{custom-call.14} parent=151 // pred_check
              _
            $region158: #{custom-call.14} parent=151 // pred_check_branch
              %1378 = sbr.rel (0) target = $region160
            $region159: #{custom-call.14} parent=151 // pred_region
              loop: start=0, step=1, limit=1
              $region161: #{custom-call.14} parent=159 // loop_pre_header
                _
              $region162: #{custom-call.14} parent=159 // loop_header
                %s1381 = sphi 0, %s1385
                %p1382 = scmp.ge.s32.totalorder %s1381, 1
                %s1386 = sphi %s1313, %s1313
                %s1387 = sphi %s1372, %s1372
              $region163: #{custom-call.14} parent=159 // loop_header_branch
                %1384 = sbr.rel (%p1382) target = $region167
              $region164: #{custom-call.14} parent=159 // loop_body
                %v1388 = vld [vmem:[%s1386] sm:$0xf]
                %1389 = vst [vmem:[%s1387] sm:$0xf] %v1388
              $region165: #{custom-call.14} parent=159 // loop_footer
                %s1385 = sadd.s32 1, %s1381
              $region166: #{custom-call.14} parent=159 // loop_footer_branch
                %1380 = sbr.rel target = $region162
              $region167: #{custom-call.14} parent=159 // loop_exit
                _
            $region160: #{custom-call.14} parent=151 // pred_fallthru
              _
          $region152: #{custom-call.14} parent=147 // pred_fallthru
            _
          %1403 = vnop
        $region148: #{custom-call.14} parent=95 // pred_fallthru
          _
        %s1404 = smul.addr %s17, 16
        %s1405 = scalar_lea.vmem %s6, %s1404
        // Predicated region
        $region179: #{custom-call.14} parent=95 // pred_check
          _
        $region180: #{custom-call.14} parent=95 // pred_check_branch
          %1407 = sbr.rel (0) target = $region182
        $region181: #{custom-call.14} parent=95 // pred_region
          // Predicated region
          $region183: #{custom-call.14} parent=181 // pred_check
            _
          $region184: #{custom-call.14} parent=181 // pred_check_branch
            %1409 = sbr.rel (0) target = $region186
          $region185: #{custom-call.14} parent=181 // pred_region
            loop: start=0, step=1, limit=1
            $region187: #{custom-call.14} parent=185 // loop_pre_header
              _
            $region188: #{custom-call.14} parent=185 // loop_header
              %s1411 = sphi 0, %s1415
              %p1412 = scmp.ge.s32.totalorder %s1411, 1
              %s1416 = sphi %s1317, %s1317
              %s1417 = sphi %s1405, %s1405
            $region189: #{custom-call.14} parent=185 // loop_header_branch
              %1414 = sbr.rel (%p1412) target = $region193
            $region190: #{custom-call.14} parent=185 // loop_body
              %v1418 = vld [vmem:[%s1416] sm:$0xff]
              %1419 = vst [vmem:[%s1417] sm:$0xff] %v1418
              %v1420 = vld [vmem:[%s1416 + $0x8] sm:$0xff]
              %1421 = vst [vmem:[%s1417 + $0x8] sm:$0xff] %v1420
            $region191: #{custom-call.14} parent=185 // loop_footer
              %s1415 = sadd.s32 1, %s1411
            $region192: #{custom-call.14} parent=185 // loop_footer_branch
              %1410 = sbr.rel target = $region188
            $region193: #{custom-call.14} parent=185 // loop_exit
              _
          $region186: #{custom-call.14} parent=181 // pred_fallthru
            _
          // Predicated region
          $region194: #{custom-call.14} parent=181 // pred_check
            _
          $region195: #{custom-call.14} parent=181 // pred_check_branch
            %1423 = sbr.rel target = $region197
          $region196: #{custom-call.14} parent=181 // pred_region
            _
          $region197: #{custom-call.14} parent=181 // pred_fallthru
            _
        $region182: #{custom-call.14} parent=95 // pred_fallthru
          _
        %1424 = vnop
        %s1425 = smul.addr %s17, 16
        %s1426 = scalar_lea.vmem %s7, %s1425
        // Predicated region
        $region198: #{custom-call.14} parent=95 // pred_check
          _
        $region199: #{custom-call.14} parent=95 // pred_check_branch
          %1428 = sbr.rel (0) target = $region201
        $region200: #{custom-call.14} parent=95 // pred_region
          // Predicated region
          $region202: #{custom-call.14} parent=200 // pred_check
            _
          $region203: #{custom-call.14} parent=200 // pred_check_branch
            %1430 = sbr.rel (0) target = $region205
          $region204: #{custom-call.14} parent=200 // pred_region
            loop: start=0, step=1, limit=1
            $region206: #{custom-call.14} parent=204 // loop_pre_header
              _
            $region207: #{custom-call.14} parent=204 // loop_header
              %s1432 = sphi 0, %s1436
              %p1433 = scmp.ge.s32.totalorder %s1432, 1
              %s1437 = sphi %s1321, %s1321
              %s1438 = sphi %s1426, %s1426
            $region208: #{custom-call.14} parent=204 // loop_header_branch
              %1435 = sbr.rel (%p1433) target = $region212
            $region209: #{custom-call.14} parent=204 // loop_body
              %v1439 = vld [vmem:[%s1437] sm:$0xff]
              %1440 = vst [vmem:[%s1438] sm:$0xff] %v1439
              %v1441 = vld [vmem:[%s1437 + $0x8] sm:$0xff]
              %1442 = vst [vmem:[%s1438 + $0x8] sm:$0xff] %v1441
            $region210: #{custom-call.14} parent=204 // loop_footer
              %s1436 = sadd.s32 1, %s1432
            $region211: #{custom-call.14} parent=204 // loop_footer_branch
              %1431 = sbr.rel target = $region207
            $region212: #{custom-call.14} parent=204 // loop_exit
              _
          $region205: #{custom-call.14} parent=200 // pred_fallthru
            _
          // Predicated region
          $region213: #{custom-call.14} parent=200 // pred_check
            _
          $region214: #{custom-call.14} parent=200 // pred_check_branch
            %1444 = sbr.rel target = $region216
          $region215: #{custom-call.14} parent=200 // pred_region
            _
          $region216: #{custom-call.14} parent=200 // pred_fallthru
            _
        $region201: #{custom-call.14} parent=95 // pred_fallthru
          _
        %1445 = vnop
        %s1446 = smul.addr %s17, 16
        %s1447 = scalar_lea.vmem %s8, %s1446
        // Predicated region
        $region217: #{custom-call.14} parent=95 // pred_check
          _
        $region218: #{custom-call.14} parent=95 // pred_check_branch
          %1449 = sbr.rel (0) target = $region220
        $region219: #{custom-call.14} parent=95 // pred_region
          // Predicated region
          $region221: #{custom-call.14} parent=219 // pred_check
            _
          $region222: #{custom-call.14} parent=219 // pred_check_branch
            %1451 = sbr.rel (0) target = $region224
          $region223: #{custom-call.14} parent=219 // pred_region
            loop: start=0, step=1, limit=1
            $region225: #{custom-call.14} parent=223 // loop_pre_header
              _
            $region226: #{custom-call.14} parent=223 // loop_header
              %s1453 = sphi 0, %s1457
              %p1454 = scmp.ge.s32.totalorder %s1453, 1
              %s1458 = sphi %s1325, %s1325
              %s1459 = sphi %s1447, %s1447
            $region227: #{custom-call.14} parent=223 // loop_header_branch
              %1456 = sbr.rel (%p1454) target = $region231
            $region228: #{custom-call.14} parent=223 // loop_body
              %v1460 = vld [vmem:[%s1458] sm:$0xff]
              %1461 = vst [vmem:[%s1459] sm:$0xff] %v1460
              %v1462 = vld [vmem:[%s1458 + $0x8] sm:$0xff]
              %1463 = vst [vmem:[%s1459 + $0x8] sm:$0xff] %v1462
            $region229: #{custom-call.14} parent=223 // loop_footer
              %s1457 = sadd.s32 1, %s1453
            $region230: #{custom-call.14} parent=223 // loop_footer_branch
              %1452 = sbr.rel target = $region226
            $region231: #{custom-call.14} parent=223 // loop_exit
              _
          $region224: #{custom-call.14} parent=219 // pred_fallthru
            _
          // Predicated region
          $region232: #{custom-call.14} parent=219 // pred_check
            _
          $region233: #{custom-call.14} parent=219 // pred_check_branch
            %1465 = sbr.rel target = $region235
          $region234: #{custom-call.14} parent=219 // pred_region
            _
          $region235: #{custom-call.14} parent=219 // pred_fallthru
            _
        $region220: #{custom-call.14} parent=95 // pred_fallthru
          _
        %1466 = vnop
        %s1467 = smul.addr %s17, 16
        %s1468 = scalar_lea.vmem %s9, %s1467
        // Predicated region
        $region236: #{custom-call.14} parent=95 // pred_check
          _
        $region237: #{custom-call.14} parent=95 // pred_check_branch
          %1470 = sbr.rel (0) target = $region239
        $region238: #{custom-call.14} parent=95 // pred_region
          // Predicated region
          $region240: #{custom-call.14} parent=238 // pred_check
            _
          $region241: #{custom-call.14} parent=238 // pred_check_branch
            %1472 = sbr.rel (0) target = $region243
          $region242: #{custom-call.14} parent=238 // pred_region
            loop: start=0, step=1, limit=1
            $region244: #{custom-call.14} parent=242 // loop_pre_header
              _
            $region245: #{custom-call.14} parent=242 // loop_header
              %s1474 = sphi 0, %s1478
              %p1475 = scmp.ge.s32.totalorder %s1474, 1
              %s1479 = sphi %s1329, %s1329
              %s1480 = sphi %s1468, %s1468
            $region246: #{custom-call.14} parent=242 // loop_header_branch
              %1477 = sbr.rel (%p1475) target = $region250
            $region247: #{custom-call.14} parent=242 // loop_body
              %v1481 = vld [vmem:[%s1479] sm:$0xff]
              %1482 = vst [vmem:[%s1480] sm:$0xff] %v1481
              %v1483 = vld [vmem:[%s1479 + $0x8] sm:$0xff]
              %1484 = vst [vmem:[%s1480 + $0x8] sm:$0xff] %v1483
            $region248: #{custom-call.14} parent=242 // loop_footer
              %s1478 = sadd.s32 1, %s1474
            $region249: #{custom-call.14} parent=242 // loop_footer_branch
              %1473 = sbr.rel target = $region245
            $region250: #{custom-call.14} parent=242 // loop_exit
              _
          $region243: #{custom-call.14} parent=238 // pred_fallthru
            _
          // Predicated region
          $region251: #{custom-call.14} parent=238 // pred_check
            _
          $region252: #{custom-call.14} parent=238 // pred_check_branch
            %1486 = sbr.rel target = $region254
          $region253: #{custom-call.14} parent=238 // pred_region
            _
          $region254: #{custom-call.14} parent=238 // pred_fallthru
            _
        $region239: #{custom-call.14} parent=95 // pred_fallthru
          _
        %1487 = vnop
      $region96: #{custom-call.14} parent=5 // pred_fallthru
        _
      %p1488 = scmp.le.s32.totalorder 2, %s12
      // Predicated region
      $region255: #{custom-call.14} parent=5 // pred_check
        %p1489 = pneg %p1488
      $region256: #{custom-call.14} parent=5 // pred_check_branch
        %1491 = sbr.rel (%p1489) target = $region258
      $region257: #{custom-call.14} parent=5 // pred_region
        %s1492 = ssub.s32 %s12, 2
        // Predicated region
        $region259: #{custom-call.14} parent=257 // pred_check
          %p1493 = pneg %p43
        $region260: #{custom-call.14} parent=257 // pred_check_branch
          %1495 = sbr.rel (%p1493) target = $region262
        $region261: #{custom-call.14} parent=257 // pred_region
          %s1496 = sand.u32 %s28, 1
          %s1497 = sand.u32 %s28, 1
          %s1498 = smul.addr %s1497, 4
          %s1499 = scalar_lea.vmem [#allocation5], %s1498
        $region262: #{custom-call.14} parent=257 // pred_fallthru
          _
        // Predicated region
        $region263: #{custom-call.14} parent=257 // pred_check
          %p1500 = pneg %p71
        $region264: #{custom-call.14} parent=257 // pred_check_branch
          %1502 = sbr.rel (%p1500) target = $region266
        $region265: #{custom-call.14} parent=257 // pred_region
          %s1503 = sand.u32 %s56, 1
          %s1504 = sand.u32 %s56, 1
          %s1505 = smul.addr %s1504, 4
          %s1506 = scalar_lea.vmem [#allocation7], %s1505
        $region266: #{custom-call.14} parent=257 // pred_fallthru
          _
        %s1507 = sand.u32 %s18, 1
        %s1508 = sand.u32 %s18, 1
        %s1509 = smul.addr %s1508, 16
        %s1510 = scalar_lea.vmem [#allocation8], %s1509
        %s1511 = sand.u32 %s18, 1
        %s1512 = sand.u32 %s18, 1
        %s1513 = smul.addr %s1512, 16
        %s1514 = scalar_lea.vmem [#allocation9], %s1513
        %s1515 = sand.u32 %s18, 1
        %s1516 = sand.u32 %s18, 1
        %s1517 = smul.addr %s1516, 16
        %s1518 = scalar_lea.vmem [#allocation10], %s1517
        %s1519 = sand.u32 %s18, 1
        %s1520 = sand.u32 %s18, 1
        %s1521 = smul.addr %s1520, 16
        %s1522 = scalar_lea.vmem [#allocation11], %s1521
      $region258: #{custom-call.14} parent=5 // pred_fallthru
        _
    $region6: #{custom-call.14} parent=1 // loop_footer
      %s16 = sadd.s32 1, %s12
    $region7: #{custom-call.14} parent=1 // loop_footer_branch
      %11 = sbr.rel target = $region3
    $region8: #{custom-call.14} parent=1 // loop_exit
      _

</llo_original>
